<compile_context>
chip_gen: v7x
topology: tpu7x:2x2x1
jax: 0.10.0
libtpu: 0.0.40
codegen_flags: <defaults>
</compile_context>

<pallas_src>
import math
import functools

import numpy as np
import jax
import jax.numpy as jnp
from jax.experimental import pallas as pl
from jax.experimental.pallas import tpu as pltpu


# ----------------------------- in-kernel helpers (pure jnp) -----------------------------

_SQRT1_2 = 0.7071067811865476
_ERF_P = 0.3275911
_ERF_A = (0.254829592, -0.284496736, 1.421413741, -1.453152027, 1.061405429)


def _erf(z):
    """Abramowitz & Stegun 7.1.26 polynomial erf, |err| < 1.5e-7 (f32-exact)."""
    a1, a2, a3, a4, a5 = _ERF_A
    az = jnp.abs(z)
    t = 1.0 / (1.0 + _ERF_P * az)
    poly = ((((a5 * t + a4) * t + a3) * t + a2) * t + a1) * t
    e = 1.0 - poly * jnp.exp(-az * az)
    return jnp.where(z >= 0, e, -e)


def _gelu_exact(x):
    # F.gelu default (exact erf form).
    # TODO(synk): switch to lax.erf if/when Mosaic gains a native erf lowering.
    return 0.5 * x * (1.0 + _erf(x * _SQRT1_2))


def _ln(x, g, b, eps=1e-5):
    """LayerNorm over last axis; x: (rows, D), g/b: (1, D). torch default eps."""
    mu = jnp.mean(x, axis=-1, keepdims=True)
    var = jnp.mean(jnp.square(x - mu), axis=-1, keepdims=True)
    return (x - mu) * jax.lax.rsqrt(var + eps) * g + b


# ----------------------------- packed-slab layout helpers -----------------------------

_INNER_VEC = ("i_ln1g", "i_ln1b", "i_bqkv", "i_bo", "i_ln2g", "i_ln2b", "i_b1", "i_b2")
_OUTER_VEC = ("o_ln1g", "o_ln1b", "o_bqkv", "o_bo", "o_ln2g", "o_ln2b", "o_b1", "o_b2")
_GLOBAL_VEC = ("cls", "ret_w", "ret_b", "lnf_g", "lnf_b")


def _vec_layout(n_inner, n_layer):
    """Row index of every 'vector' parameter inside the single (rows,128) vec slab."""
    rows, r = {}, 0
    for l in range(n_inner):
        for nm in _INNER_VEC:
            rows[(nm, l)] = r
            r += 1
    for l in range(n_layer):
        for nm in _OUTER_VEC:
            rows[(nm, l)] = r
            r += 1
    for nm in _GLOBAL_VEC:
        rows[(nm, 0)] = r
        r += 1
    return rows, r


def _pack_vec_slab(params, cfg):
    """All LN gammas/betas, biases, class token, ret_emb, ln_f into ONE lane-dense slab."""
    D, L, Ni = cfg["n_embd"], cfg["n_layer"], cfg["num_blocks_inner"]
    de = cfg["dim_expand_inner"]
    VW = max(128, 4 * D, 3 * D, de * D)
    rows, nrows = _vec_layout(Ni, L)

    def row(v):
        v = jnp.asarray(v, jnp.float32).reshape(-1)
        return jnp.pad(v, (0, VW - v.shape[0]))

    entries = [None] * nrows

    def put(nm, l, v):
        entries[rows[(nm, l)]] = row(v)

    for l in range(Ni):
        put("i_ln1g", l, params["i_ln1_g"][l]); put("i_ln1b", l, params["i_ln1_b"][l])
        put("i_bqkv", l, params["i_bqkv"][l]);  put("i_bo", l, params["i_bo"][l])
        put("i_ln2g", l, params["i_ln2_g"][l]); put("i_ln2b", l, params["i_ln2_b"][l])
        put("i_b1", l, params["i_b1"][l]);      put("i_b2", l, params["i_b2"][l])
    for l in range(L):
        put("o_ln1g", l, params["o_ln1_g"][l]); put("o_ln1b", l, params["o_ln1_b"][l])
        put("o_bqkv", l, params["o_bqkv"][l]);  put("o_bo", l, params["o_bo"][l])
        put("o_ln2g", l, params["o_ln2_g"][l]); put("o_ln2b", l, params["o_ln2_b"][l])
        put("o_b1", l, params["o_b1"][l]);      put("o_b2", l, params["o_b2"][l])
    put("cls", 0, params["class_token"])
    put("ret_w", 0, params["ret_w"]); put("ret_b", 0, params["ret_b"])
    put("lnf_g", 0, params["lnf_g"]); put("lnf_b", 0, params["lnf_b"])

    nrows_pad = ((nrows + 7) // 8) * 8
    entries += [jnp.zeros((VW,), jnp.float32)] * (nrows_pad - nrows)
    return jnp.stack(entries, axis=0), rows


# ----------------------------- the single fused kernel -----------------------------

def _gpt_tit_kernel(
    obs_ref, aux_ref, const_ref, vec_ref, patch_w_ref,
    i_mats_ref, o_mats_ref, o_w2_ref, head_ref,
    out_ref,
    *, B, ctx, D, n_head, n_layer, n_inner, de, T, vrows,
):
    f32 = jnp.float32
    N = B * ctx
    BT = B * T
    hd = D // n_head

    def vrow(name, l, w=D):
        r = vrows[(name, l)]
        return vec_ref[r:r + 1, 0:w]                      # (1, w) row from the packed vec slab

    # ---- per-batch data (one packed aux slab: rtg | action-emb rows | position emb) ----
    rtg_b = aux_ref[0:N, :]                               # rtg already broadcast to (N, D)
    act_e = aux_ref[N:2 * N, :]                           # embedding rows (gathered outside)
    pos = aux_ref[2 * N:2 * N + BT, :]                    # global_pos_emb[ts] + pos_emb[:T]

    # constant index machinery (precomputed one-hots / additive mask, lane-packed)
    sel_tok = const_ref[:, 0:3 * N]                       # (BT, 3N) interleave selector
    mask = const_ref[:, 3 * N:3 * N + BT]                 # (BT, BT) block-diag causal (-1e30/0)

    # ---- inner TIT: patch embed + class token, 2-token transformer on a stacked tile ----
    patch = jnp.dot(obs_ref[...], patch_w_ref[...], preferred_element_type=f32)       # (N, D)
    t_all = jnp.concatenate(
        [jnp.broadcast_to(vrow("cls", 0), (N, D)), patch], axis=0)                    # (2N, D)
    inner_scale = 1.0 / math.sqrt(D)                      # num_heads_inner == 1 -> head_dim == D
    for l in range(n_inner):
        im = i_mats_ref[l]                                # (D, 6D): wqkv|wo|w1|w2 packed
        wqkv, wo = im[:, :3 * D], im[:, 3 * D:4 * D]
        w1 = im[:, 4 * D:(4 + de) * D]
        w2 = im[:, (4 + de) * D:(5 + de) * D]

        h = _ln(t_all, vrow("i_ln1g", l), vrow("i_ln1b", l))
        qkv = jnp.dot(h, wqkv, preferred_element_type=f32) + vrow("i_bqkv", l, 3 * D)  # (2N,3D)
        q, k, v = qkv[:, :D], qkv[:, D:2 * D], qkv[:, 2 * D:3 * D]
        kc, kp, vc, vp = k[:N], k[N:], v[:N], v[N:]

        def _pair_attn(qq):                               # softmax over the {class, patch} pair
            s0 = jnp.sum(qq * kc, axis=-1, keepdims=True) * inner_scale
            s1 = jnp.sum(qq * kp, axis=-1, keepdims=True) * inner_scale
            m = jnp.maximum(s0, s1)
            e0, e1 = jnp.exp(s0 - m), jnp.exp(s1 - m)
            return (e0 * vc + e1 * vp) / (e0 + e1)

        a_all = jnp.concatenate([_pair_attn(q[:N]), _pair_attn(q[N:])], axis=0)        # (2N, D)
        t_all = t_all + jnp.dot(a_all, wo, preferred_element_type=f32) + vrow("i_bo", l)

        g = _ln(t_all, vrow("i_ln2g", l), vrow("i_ln2b", l))
        f = jnp.maximum(jnp.dot(g, w1, preferred_element_type=f32) + vrow("i_b1", l, de * D), 0.0)
        t_all = t_all + jnp.dot(f, w2, preferred_element_type=f32) + vrow("i_b2", l)

    state_emb = t_all[:N]                                 # class-token outputs (N, D)

    # ---- token assembly (selection matmul instead of per-row masked stores) ----
    rtg_emb = jnp.tanh(rtg_b * vrow("ret_w", 0) + vrow("ret_b", 0))   # ret_emb = Linear(1,D)+Tanh
    act_emb = jnp.tanh(act_e)                                         # Embedding + Tanh
    cat = jnp.concatenate([rtg_emb, state_emb, act_emb], axis=0)      # (3N, D)
    x = jnp.dot(sel_tok, cat, preferred_element_type=f32) + pos       # (BT, D), drop p=0

    # ---- outer GPT blocks (batch folded; block-diagonal causal mask) ----
    attn_scale = 1.0 / math.sqrt(hd)
    for l in range(n_layer):
        om = o_mats_ref[l]                                # (D, 8D): wqkv|wo|w1 packed
        wqkv, wo, w1 = om[:, :3 * D], om[:, 3 * D:4 * D], om[:, 4 * D:8 * D]
        w2 = o_w2_ref[l]                                  # (4D, D)

        h = _ln(x, vrow("o_ln1g", l), vrow("o_ln1b", l))
        qkv = jnp.dot(h, wqkv, preferred_element_type=f32) + vrow("o_bqkv", l, 3 * D)  # (BT,3D)
        heads = []
        for hh in range(n_head):
            q = qkv[:, hh * hd:(hh + 1) * hd]
            k = qkv[:, D + hh * hd:D + (hh + 1) * hd]
            v = qkv[:, 2 * D + hh * hd:2 * D + (hh + 1) * hd]
            s = jnp.einsum("qd,kd->qk", q, k, preferred_element_type=f32) * attn_scale + mask
            s = s - jnp.max(s, axis=-1, keepdims=True)
            p = jnp.exp(s)
            p = p / jnp.sum(p, axis=-1, keepdims=True)    # exact division (numerical parity)
            heads.append(jnp.dot(p, v, preferred_element_type=f32))
        y = jnp.concatenate(heads, axis=-1)               # concat-of-heads (BT, D)
        x = x + jnp.dot(y, wo, preferred_element_type=f32) + vrow("o_bo", l)

        g = _ln(x, vrow("o_ln2g", l), vrow("o_ln2b", l))
        m = _gelu_exact(jnp.dot(g, w1, preferred_element_type=f32) + vrow("o_b1", l, 4 * D))
        x = x + jnp.dot(m, w2, preferred_element_type=f32) + vrow("o_b2", l)

    # ---- final LN + lane-dense head matmul over ALL rows; 1::3 selection happens outside ----
    xf = _ln(x, vrow("lnf_g", 0), vrow("lnf_b", 0))
    out_ref[...] = jnp.dot(xf, head_ref[...], preferred_element_type=f32)   # (BT, 128)


# ----------------------------- parameters -----------------------------

def init_params(key, cfg):
    """Synthetic parameters mirroring GPT_TIT.__init__ shapes (qkv fused into one (D,3D) weight).
    Linear/Embedding/Conv/attn weights ~ N(0, 0.02); biases 0; LN weight 1 / bias 0;
    pos_emb / global_pos_emb are zeros (as in the torch module)."""
    D, V = cfg["n_embd"], cfg["vocab_size"]
    L, Ni, de = cfg["n_layer"], cfg["num_blocks_inner"], cfg["dim_expand_inner"]
    CPP = cfg["obs_C"] * cfg["patch_dim"] ** 2
    keys = iter(jax.random.split(key, 32))

    def nrm(shape):
        return 0.02 * jax.random.normal(next(keys), shape, jnp.float32)

    ones = lambda s: jnp.ones(s, jnp.float32)
    zeros = lambda s: jnp.zeros(s, jnp.float32)

    # NOTE: tok_emb exists in GPT_TIT.__init__ but is unused in forward() -> omitted.
    return {
        "pos_emb": zeros((1, cfg["block_size"] + 1, D)),
        "global_pos_emb": zeros((1, cfg["max_timestep"] + 1, D)),
        # outer blocks (stacked over layers)
        "o_ln1_g": ones((L, 1, D)), "o_ln1_b": zeros((L, 1, D)),
        "o_ln2_g": ones((L, 1, D)), "o_ln2_b": zeros((L, 1, D)),
        "o_wqkv": nrm((L, D, 3 * D)), "o_bqkv": zeros((L, 1, 3 * D)),
        "o_wo": nrm((L, D, D)), "o_bo": zeros((L, 1, D)),
        "o_w1": nrm((L, D, 4 * D)), "o_b1": zeros((L, 1, 4 * D)),
        "o_w2": nrm((L, 4 * D, D)), "o_b2": zeros((L, 1, D)),
        "lnf_g": ones((1, D)), "lnf_b": zeros((1, D)),
        "head_w": nrm((D, V)),
        # inner TIT blocks (nn.MultiheadAttention in_proj fused; out_proj; ReLU ffn)
        "i_ln1_g": ones((Ni, 1, D)), "i_ln1_b": zeros((Ni, 1, D)),
        "i_ln2_g": ones((Ni, 1, D)), "i_ln2_b": zeros((Ni, 1, D)),
        "i_wqkv": nrm((Ni, D, 3 * D)), "i_bqkv": zeros((Ni, 1, 3 * D)),
        "i_wo": nrm((Ni, D, D)), "i_bo": zeros((Ni, 1, D)),
        "i_w1": nrm((Ni, D, de * D)), "i_b1": zeros((Ni, 1, de * D)),
        "i_w2": nrm((Ni, de * D, D)), "i_b2": zeros((Ni, 1, D)),
        # patch conv (flattened (c,kh,kw) x D), class token, return / action embeddings
        "patch_w": nrm((CPP, D)),
        "class_token": nrm((1, D)),
        "ret_w": nrm((1, D)), "ret_b": zeros((1, D)),
        "act_emb": nrm((V, D)),
    }


# ----------------------------- forward (one fused, grid-less pallas_call) -----------------------------

def gpt_tit_forward(params, cfg, states, actions, rtgs, timesteps):
    """model_type == 'reward_conditioned_tit', actions is not None, targets is None."""
    B, ctx, C, H, W = states.shape
    D, V = cfg["n_embd"], cfg["vocab_size"]
    pd = cfg["patch_dim"]
    n_ph, n_pw = H // pd, W // pd
    assert n_ph * n_pw == 1, "kernel specialises to 1 patch per frame (84x84/84 or 16x16/16)"
    assert cfg["dim_expand_inner"] == 1, "packed inner slab assumes square inner FFN weights"
    # TODO(synk): generalise inner-token count / dim_expand_inner if those configs change.
    T = 3 * ctx - 1                                       # targets is None branch
    N, BT = B * ctx, B * T
    HP = max(128, ((V + 127) // 128) * 128)               # lane-dense head / output width

    # ---- tiny JAX glue: patch flattening, integer gathers, slab packing ----
    obs = states.astype(jnp.float32).reshape(B, ctx, C, n_ph, pd, n_pw, pd)
    obs = obs.transpose(0, 1, 3, 5, 2, 4, 6).reshape(N, C * pd * pd)          # (c,kh,kw) per patch
    rtg_b = jnp.broadcast_to(rtgs.astype(jnp.float32).reshape(N, 1), (N, D))
    act_rows = params["act_emb"][actions.astype(jnp.int32).reshape(N)]        # Embedding gather
    ts = timesteps.reshape(B).astype(jnp.int32)
    pos_all = (params["global_pos_emb"][0][ts][:, None, :]
               + params["pos_emb"][0, :T, :][None, :, :]).reshape(BT, D)      # per-(b,t) pos emb
    aux = jnp.concatenate([rtg_b, act_rows, pos_all], axis=0)                 # one (2N+BT, D) DMA

    # constant one-hot interleave selector + block-diagonal causal mask (numpy, trace-time)
    sel_np = np.zeros((BT, 3 * N), np.float32)
    for b in range(B):
        for t in range(T):
            r, i = b * T + t, t // 3
            if t % 3 == 0:
                sel_np[r, b * ctx + i] = 1.0                                  # rtg token
            elif t % 3 == 1:
                sel_np[r, N + b * ctx + i] = 1.0                              # state (class) token
            else:
                sel_np[r, 2 * N + b * ctx + i + 1] = 1.0                      # actions[:, 1:, :]
    mask_np = np.full((BT, BT), -1e30, np.float32)
    for b in range(B):
        for r in range(T):
            mask_np[b * T + r, b * T:b * T + r + 1] = 0.0
    consts = jnp.asarray(np.concatenate([sel_np, mask_np], axis=1))           # (BT, 3N+BT)

    # packed weight slabs (few lane-dense DMAs, single-buffered: no grid -> no double buffers)
    vec_slab, vrows = _pack_vec_slab(params, cfg)
    i_mats = jnp.concatenate([params["i_wqkv"], params["i_wo"],
                              params["i_w1"], params["i_w2"]], axis=-1)       # (Ni, D, 6D)
    o_mats = jnp.concatenate([params["o_wqkv"], params["o_wo"], params["o_w1"]], axis=-1)  # (L,D,8D)
    head_pad = jnp.zeros((D, HP), jnp.float32).at[:, :V].set(params["head_w"])

    kernel = functools.partial(
        _gpt_tit_kernel,
        B=B, ctx=ctx, D=D, n_head=cfg["n_head"], n_layer=cfg["n_layer"],
        n_inner=cfg["num_blocks_inner"], de=cfg["dim_expand_inner"], T=T, vrows=vrows)

    args = (obs, aux, consts, vec_slab, params["patch_w"], i_mats, o_mats,
            params["o_w2"], head_pad)
    vmem = pl.BlockSpec(memory_space=pltpu.MemorySpace.VMEM)                  # whole array in VMEM
    out = pl.pallas_call(
        kernel,
        out_shape=jax.ShapeDtypeStruct((BT, HP), jnp.float32),
        in_specs=[vmem] * len(args),
        out_specs=vmem,
    )(*args)

    logits = out.reshape(B, T, HP)[:, 1::3, :V]            # logits[:, 1::3, :] on lane-padded head
    loss = None                                            # targets is None
    return logits, loss


# ----------------------------- main -----------------------------

if __name__ == "__main__":
    cfg = dict(
        vocab_size=16, n_embd=32, n_head=2, n_layer=2, block_size=8, max_timestep=16,
        model_type="reward_conditioned_tit",
        obs_C=4, patch_dim=16, num_blocks_inner=1, dim_expand_inner=1,
    )
    key = jax.random.PRNGKey(0)
    pkey, skey, akey, rkey, tkey = jax.random.split(key, 5)
    params = init_params(pkey, cfg)

    B, ctx = 2, 3
    states = jax.random.normal(skey, (B, ctx, cfg["obs_C"], cfg["patch_dim"], cfg["patch_dim"]),
                               jnp.float32)
    actions = jax.random.randint(akey, (B, ctx, 1), 0, cfg["vocab_size"], jnp.int32)
    rtgs = jax.random.uniform(rkey, (B, ctx, 1), jnp.float32)
    timesteps = jax.random.randint(tkey, (B, 1, 1), 0, cfg["max_timestep"] + 1, jnp.int32)

    fwd = jax.jit(lambda p, s, a, r, t: gpt_tit_forward(p, cfg, s, a, r, t)[0])
    logits = jax.block_until_ready(fwd(params, states, actions, rtgs, timesteps))

    assert logits.shape == (B, ctx, cfg["vocab_size"]), logits.shape
    assert bool(jnp.all(jnp.isfinite(logits)))
    print("KERNEL_OK")
</pallas_src>

<mosaic_0001>
module attributes {stable_mosaic.version = 11 : i64} {
  func.func @_gpt_tit_kernel(%arg0: memref<6x1024xf32, #tpu.memory_space<vmem>>, %arg1: memref<28x32xf32, #tpu.memory_space<vmem>>, %arg2: memref<16x34xf32, #tpu.memory_space<vmem>>, %arg3: memref<32x128xf32, #tpu.memory_space<vmem>>, %arg4: memref<1024x32xf32, #tpu.memory_space<vmem>>, %arg5: memref<1x32x192xf32, #tpu.memory_space<vmem>>, %arg6: memref<2x32x256xf32, #tpu.memory_space<vmem>>, %arg7: memref<2x128x32xf32, #tpu.memory_space<vmem>>, %arg8: memref<32x128xf32, #tpu.memory_space<vmem>>, %arg9: memref<16x128xf32, #tpu.memory_space<vmem>>) attributes {dimension_semantics = [], scalar_prefetch = 0 : i64, scratch_operands = 0 : i64, tpu.core_type = #tpu.core_type<tc>} {
    %c0 = arith.constant 0 : index
    %c0_0 = arith.constant 0 : index
    %0 = vector.load %arg1[%c0, %c0_0] : memref<28x32xf32, #tpu.memory_space<vmem>>, vector<6x32xf32>
    %c6 = arith.constant 6 : index
    %c0_1 = arith.constant 0 : index
    %1 = vector.load %arg1[%c6, %c0_1] : memref<28x32xf32, #tpu.memory_space<vmem>>, vector<6x32xf32>
    %c12 = arith.constant 12 : index
    %c0_2 = arith.constant 0 : index
    %2 = vector.load %arg1[%c12, %c0_2] : memref<28x32xf32, #tpu.memory_space<vmem>>, vector<16x32xf32>
    %c0_3 = arith.constant 0 : index
    %c0_4 = arith.constant 0 : index
    %3 = vector.load %arg2[%c0_3, %c0_4] : memref<16x34xf32, #tpu.memory_space<vmem>>, vector<16x18xf32>
    %c0_5 = arith.constant 0 : index
    %c18 = arith.constant 18 : index
    %4 = vector.load %arg2[%c0_5, %c18] : memref<16x34xf32, #tpu.memory_space<vmem>>, vector<16x16xf32>
    %c0_6 = arith.constant 0 : index
    %c0_7 = arith.constant 0 : index
    %5 = vector.load %arg0[%c0_6, %c0_7] : memref<6x1024xf32, #tpu.memory_space<vmem>>, vector<6x1024xf32>
    %c0_8 = arith.constant 0 : index
    %c0_9 = arith.constant 0 : index
    %6 = vector.load %arg4[%c0_8, %c0_9] : memref<1024x32xf32, #tpu.memory_space<vmem>>, vector<1024x32xf32>
    %cst = arith.constant dense<0.000000e+00> : vector<6x32xf32>
    %7 = tpu.matmul %5, %6, %cst {dimension_numbers = #tpu.dot_dimension_numbers<[1], [0], [0], [1], [0, 0, 1, 1], [], []>} : vector<6x1024xf32>, vector<1024x32xf32>, vector<6x32xf32> -> vector<6x32xf32>
    %c24 = arith.constant 24 : index
    %c0_10 = arith.constant 0 : index
    %8 = vector.load %arg3[%c24, %c0_10] : memref<32x128xf32, #tpu.memory_space<vmem>>, vector<1x32xf32>
    %9 = vector.shape_cast %8 : vector<1x32xf32> to vector<1x32xf32>
    %10 = vector.broadcast %9 : vector<1x32xf32> to vector<6x32xf32>
    %11 = tpu.concatenate %10, %7 in 0 : vector<6x32xf32>, vector<6x32xf32> -> vector<12x32xf32>
    %c0_11 = arith.constant 0 : index
    %c0_12 = arith.constant 0 : index
    %c0_13 = arith.constant 0 : index
    %12 = vector.load %arg5[%c0_11, %c0_12, %c0_13] : memref<1x32x192xf32, #tpu.memory_space<vmem>>, vector<1x32x192xf32>
    %13 = vector.shape_cast %12 : vector<1x32x192xf32> to vector<32x192xf32>
    %14 = vector.extract_strided_slice %13 {offsets = [0, 0], sizes = [32, 96], strides = [1, 1]} : vector<32x192xf32> to vector<32x96xf32>
    %15 = vector.extract_strided_slice %13 {offsets = [0, 96], sizes = [32, 32], strides = [1, 1]} : vector<32x192xf32> to vector<32x32xf32>
    %16 = vector.extract_strided_slice %13 {offsets = [0, 128], sizes = [32, 32], strides = [1, 1]} : vector<32x192xf32> to vector<32x32xf32>
    %17 = vector.extract_strided_slice %13 {offsets = [0, 160], sizes = [32, 32], strides = [1, 1]} : vector<32x192xf32> to vector<32x32xf32>
    %c0_14 = arith.constant 0 : index
    %c0_15 = arith.constant 0 : index
    %18 = vector.load %arg3[%c0_14, %c0_15] : memref<32x128xf32, #tpu.memory_space<vmem>>, vector<1x32xf32>
    %c1 = arith.constant 1 : index
    %c0_16 = arith.constant 0 : index
    %19 = vector.load %arg3[%c1, %c0_16] : memref<32x128xf32, #tpu.memory_space<vmem>>, vector<1x32xf32>
    %cst_17 = arith.constant dense<0.000000e+00> : vector<12xf32>
    %20 = vector.multi_reduction <add>, %11, %cst_17 [1] : vector<12x32xf32> to vector<12xf32>
    %21 = vector.shape_cast %20 : vector<12xf32> to vector<12x1xf32>
    %cst_18 = arith.constant 3.200000e+01 : f32
    %22 = vector.broadcast %cst_18 : f32 to vector<12x1xf32>
    %23 = arith.divf %21, %22 : vector<12x1xf32>
    %24 = vector.broadcast %23 : vector<12x1xf32> to vector<12x32xf32>
    %25 = arith.subf %11, %24 : vector<12x32xf32>
    %26 = arith.mulf %25, %25 : vector<12x32xf32>
    %cst_19 = arith.constant dense<0.000000e+00> : vector<12xf32>
    %27 = vector.multi_reduction <add>, %26, %cst_19 [1] : vector<12x32xf32> to vector<12xf32>
    %28 = vector.shape_cast %27 : vector<12xf32> to vector<12x1xf32>
    %cst_20 = arith.constant 3.200000e+01 : f32
    %29 = vector.broadcast %cst_20 : f32 to vector<12x1xf32>
    %30 = arith.divf %28, %29 : vector<12x1xf32>
    %31 = vector.broadcast %23 : vector<12x1xf32> to vector<12x32xf32>
    %32 = arith.subf %11, %31 : vector<12x32xf32>
    %cst_21 = arith.constant 9.99999974E-6 : f32
    %33 = vector.broadcast %cst_21 : f32 to vector<12x1xf32>
    %34 = arith.addf %30, %33 : vector<12x1xf32>
    %35 = math.rsqrt %34 : vector<12x1xf32>
    %36 = vector.broadcast %35 : vector<12x1xf32> to vector<12x32xf32>
    %37 = arith.mulf %32, %36 : vector<12x32xf32>
    %38 = vector.broadcast %18 : vector<1x32xf32> to vector<12x32xf32>
    %39 = arith.mulf %37, %38 : vector<12x32xf32>
    %40 = vector.broadcast %19 : vector<1x32xf32> to vector<12x32xf32>
    %41 = arith.addf %39, %40 : vector<12x32xf32>
    %cst_22 = arith.constant dense<0.000000e+00> : vector<12x96xf32>
    %42 = tpu.matmul %41, %14, %cst_22 {dimension_numbers = #tpu.dot_dimension_numbers<[1], [0], [0], [1], [0, 0, 1, 1], [], []>} : vector<12x32xf32>, vector<32x96xf32>, vector<12x96xf32> -> vector<12x96xf32>
    %c2 = arith.constant 2 : index
    %c0_23 = arith.constant 0 : index
    %43 = vector.load %arg3[%c2, %c0_23] : memref<32x128xf32, #tpu.memory_space<vmem>>, vector<1x96xf32>
    %44 = vector.broadcast %43 : vector<1x96xf32> to vector<12x96xf32>
    %45 = arith.addf %42, %44 : vector<12x96xf32>
    %46 = vector.extract_strided_slice %45 {offsets = [0, 0], sizes = [12, 32], strides = [1, 1]} : vector<12x96xf32> to vector<12x32xf32>
    %47 = vector.extract_strided_slice %45 {offsets = [0, 32], sizes = [12, 32], strides = [1, 1]} : vector<12x96xf32> to vector<12x32xf32>
    %48 = vector.extract_strided_slice %45 {offsets = [0, 64], sizes = [12, 32], strides = [1, 1]} : vector<12x96xf32> to vector<12x32xf32>
    %49 = vector.extract_strided_slice %47 {offsets = [0, 0], sizes = [6, 32], strides = [1, 1]} : vector<12x32xf32> to vector<6x32xf32>
    %50 = vector.extract_strided_slice %47 {offsets = [6, 0], sizes = [6, 32], strides = [1, 1]} : vector<12x32xf32> to vector<6x32xf32>
    %51 = vector.extract_strided_slice %48 {offsets = [0, 0], sizes = [6, 32], strides = [1, 1]} : vector<12x32xf32> to vector<6x32xf32>
    %52 = vector.extract_strided_slice %48 {offsets = [6, 0], sizes = [6, 32], strides = [1, 1]} : vector<12x32xf32> to vector<6x32xf32>
    %53 = vector.extract_strided_slice %46 {offsets = [0, 0], sizes = [6, 32], strides = [1, 1]} : vector<12x32xf32> to vector<6x32xf32>
    %54 = arith.mulf %53, %49 : vector<6x32xf32>
    %cst_24 = arith.constant dense<0.000000e+00> : vector<6xf32>
    %55 = vector.multi_reduction <add>, %54, %cst_24 [1] : vector<6x32xf32> to vector<6xf32>
    %56 = vector.shape_cast %55 : vector<6xf32> to vector<6x1xf32>
    %cst_25 = arith.constant 0.176776692 : f32
    %57 = vector.broadcast %cst_25 : f32 to vector<6x1xf32>
    %58 = arith.mulf %56, %57 : vector<6x1xf32>
    %59 = arith.mulf %53, %50 : vector<6x32xf32>
    %cst_26 = arith.constant dense<0.000000e+00> : vector<6xf32>
    %60 = vector.multi_reduction <add>, %59, %cst_26 [1] : vector<6x32xf32> to vector<6xf32>
    %61 = vector.shape_cast %60 : vector<6xf32> to vector<6x1xf32>
    %cst_27 = arith.constant 0.176776692 : f32
    %62 = vector.broadcast %cst_27 : f32 to vector<6x1xf32>
    %63 = arith.mulf %61, %62 : vector<6x1xf32>
    %64 = arith.maximumf %58, %63 : vector<6x1xf32>
    %65 = arith.subf %58, %64 : vector<6x1xf32>
    %66 = math.exp %65 : vector<6x1xf32>
    %67 = arith.subf %63, %64 : vector<6x1xf32>
    %68 = math.exp %67 : vector<6x1xf32>
    %69 = vector.broadcast %66 : vector<6x1xf32> to vector<6x32xf32>
    %70 = arith.mulf %69, %51 : vector<6x32xf32>
    %71 = vector.broadcast %68 : vector<6x1xf32> to vector<6x32xf32>
    %72 = arith.mulf %71, %52 : vector<6x32xf32>
    %73 = arith.addf %70, %72 : vector<6x32xf32>
    %74 = arith.addf %66, %68 : vector<6x1xf32>
    %75 = vector.broadcast %74 : vector<6x1xf32> to vector<6x32xf32>
    %76 = arith.divf %73, %75 : vector<6x32xf32>
    %77 = vector.extract_strided_slice %46 {offsets = [6, 0], sizes = [6, 32], strides = [1, 1]} : vector<12x32xf32> to vector<6x32xf32>
    %78 = arith.mulf %77, %49 : vector<6x32xf32>
    %cst_28 = arith.constant dense<0.000000e+00> : vector<6xf32>
    %79 = vector.multi_reduction <add>, %78, %cst_28 [1] : vector<6x32xf32> to vector<6xf32>
    %80 = vector.shape_cast %79 : vector<6xf32> to vector<6x1xf32>
    %cst_29 = arith.constant 0.176776692 : f32
    %81 = vector.broadcast %cst_29 : f32 to vector<6x1xf32>
    %82 = arith.mulf %80, %81 : vector<6x1xf32>
    %83 = arith.mulf %77, %50 : vector<6x32xf32>
    %cst_30 = arith.constant dense<0.000000e+00> : vector<6xf32>
    %84 = vector.multi_reduction <add>, %83, %cst_30 [1] : vector<6x32xf32> to vector<6xf32>
    %85 = vector.shape_cast %84 : vector<6xf32> to vector<6x1xf32>
    %cst_31 = arith.constant 0.176776692 : f32
    %86 = vector.broadcast %cst_31 : f32 to vector<6x1xf32>
    %87 = arith.mulf %85, %86 : vector<6x1xf32>
    %88 = arith.maximumf %82, %87 : vector<6x1xf32>
    %89 = arith.subf %82, %88 : vector<6x1xf32>
    %90 = math.exp %89 : vector<6x1xf32>
    %91 = arith.subf %87, %88 : vector<6x1xf32>
    %92 = math.exp %91 : vector<6x1xf32>
    %93 = vector.broadcast %90 : vector<6x1xf32> to vector<6x32xf32>
    %94 = arith.mulf %93, %51 : vector<6x32xf32>
    %95 = vector.broadcast %92 : vector<6x1xf32> to vector<6x32xf32>
    %96 = arith.mulf %95, %52 : vector<6x32xf32>
    %97 = arith.addf %94, %96 : vector<6x32xf32>
    %98 = arith.addf %90, %92 : vector<6x1xf32>
    %99 = vector.broadcast %98 : vector<6x1xf32> to vector<6x32xf32>
    %100 = arith.divf %97, %99 : vector<6x32xf32>
    %101 = tpu.concatenate %76, %100 in 0 : vector<6x32xf32>, vector<6x32xf32> -> vector<12x32xf32>
    %cst_32 = arith.constant dense<0.000000e+00> : vector<12x32xf32>
    %102 = tpu.matmul %101, %15, %cst_32 {dimension_numbers = #tpu.dot_dimension_numbers<[1], [0], [0], [1], [0, 0, 1, 1], [], []>} : vector<12x32xf32>, vector<32x32xf32>, vector<12x32xf32> -> vector<12x32xf32>
    %103 = arith.addf %11, %102 : vector<12x32xf32>
    %c3 = arith.constant 3 : index
    %c0_33 = arith.constant 0 : index
    %104 = vector.load %arg3[%c3, %c0_33] : memref<32x128xf32, #tpu.memory_space<vmem>>, vector<1x32xf32>
    %105 = vector.broadcast %104 : vector<1x32xf32> to vector<12x32xf32>
    %106 = arith.addf %103, %105 : vector<12x32xf32>
    %c4 = arith.constant 4 : index
    %c0_34 = arith.constant 0 : index
    %107 = vector.load %arg3[%c4, %c0_34] : memref<32x128xf32, #tpu.memory_space<vmem>>, vector<1x32xf32>
    %c5 = arith.constant 5 : index
    %c0_35 = arith.constant 0 : index
    %108 = vector.load %arg3[%c5, %c0_35] : memref<32x128xf32, #tpu.memory_space<vmem>>, vector<1x32xf32>
    %cst_36 = arith.constant dense<0.000000e+00> : vector<12xf32>
    %109 = vector.multi_reduction <add>, %106, %cst_36 [1] : vector<12x32xf32> to vector<12xf32>
    %110 = vector.shape_cast %109 : vector<12xf32> to vector<12x1xf32>
    %cst_37 = arith.constant 3.200000e+01 : f32
    %111 = vector.broadcast %cst_37 : f32 to vector<12x1xf32>
    %112 = arith.divf %110, %111 : vector<12x1xf32>
    %113 = vector.broadcast %112 : vector<12x1xf32> to vector<12x32xf32>
    %114 = arith.subf %106, %113 : vector<12x32xf32>
    %115 = arith.mulf %114, %114 : vector<12x32xf32>
    %cst_38 = arith.constant dense<0.000000e+00> : vector<12xf32>
    %116 = vector.multi_reduction <add>, %115, %cst_38 [1] : vector<12x32xf32> to vector<12xf32>
    %117 = vector.shape_cast %116 : vector<12xf32> to vector<12x1xf32>
    %cst_39 = arith.constant 3.200000e+01 : f32
    %118 = vector.broadcast %cst_39 : f32 to vector<12x1xf32>
    %119 = arith.divf %117, %118 : vector<12x1xf32>
    %120 = vector.broadcast %112 : vector<12x1xf32> to vector<12x32xf32>
    %121 = arith.subf %106, %120 : vector<12x32xf32>
    %cst_40 = arith.constant 9.99999974E-6 : f32
    %122 = vector.broadcast %cst_40 : f32 to vector<12x1xf32>
    %123 = arith.addf %119, %122 : vector<12x1xf32>
    %124 = math.rsqrt %123 : vector<12x1xf32>
    %125 = vector.broadcast %124 : vector<12x1xf32> to vector<12x32xf32>
    %126 = arith.mulf %121, %125 : vector<12x32xf32>
    %127 = vector.broadcast %107 : vector<1x32xf32> to vector<12x32xf32>
    %128 = arith.mulf %126, %127 : vector<12x32xf32>
    %129 = vector.broadcast %108 : vector<1x32xf32> to vector<12x32xf32>
    %130 = arith.addf %128, %129 : vector<12x32xf32>
    %cst_41 = arith.constant dense<0.000000e+00> : vector<12x32xf32>
    %131 = tpu.matmul %130, %16, %cst_41 {dimension_numbers = #tpu.dot_dimension_numbers<[1], [0], [0], [1], [0, 0, 1, 1], [], []>} : vector<12x32xf32>, vector<32x32xf32>, vector<12x32xf32> -> vector<12x32xf32>
    %c6_42 = arith.constant 6 : index
    %c0_43 = arith.constant 0 : index
    %132 = vector.load %arg3[%c6_42, %c0_43] : memref<32x128xf32, #tpu.memory_space<vmem>>, vector<1x32xf32>
    %133 = vector.broadcast %132 : vector<1x32xf32> to vector<12x32xf32>
    %134 = arith.addf %131, %133 : vector<12x32xf32>
    %cst_44 = arith.constant 0.000000e+00 : f32
    %135 = vector.broadcast %cst_44 : f32 to vector<12x32xf32>
    %136 = arith.maximumf %134, %135 : vector<12x32xf32>
    %cst_45 = arith.constant dense<0.000000e+00> : vector<12x32xf32>
    %137 = tpu.matmul %136, %17, %cst_45 {dimension_numbers = #tpu.dot_dimension_numbers<[1], [0], [0], [1], [0, 0, 1, 1], [], []>} : vector<12x32xf32>, vector<32x32xf32>, vector<12x32xf32> -> vector<12x32xf32>
    %138 = arith.addf %106, %137 : vector<12x32xf32>
    %c7 = arith.constant 7 : index
    %c0_46 = arith.constant 0 : index
    %139 = vector.load %arg3[%c7, %c0_46] : memref<32x128xf32, #tpu.memory_space<vmem>>, vector<1x32xf32>
    %140 = vector.broadcast %139 : vector<1x32xf32> to vector<12x32xf32>
    %141 = arith.addf %138, %140 : vector<12x32xf32>
    %142 = vector.extract_strided_slice %141 {offsets = [0, 0], sizes = [6, 32], strides = [1, 1]} : vector<12x32xf32> to vector<6x32xf32>
    %c25 = arith.constant 25 : index
    %c0_47 = arith.constant 0 : index
    %143 = vector.load %arg3[%c25, %c0_47] : memref<32x128xf32, #tpu.memory_space<vmem>>, vector<1x32xf32>
    %144 = vector.broadcast %143 : vector<1x32xf32> to vector<6x32xf32>
    %145 = arith.mulf %0, %144 : vector<6x32xf32>
    %c26 = arith.constant 26 : index
    %c0_48 = arith.constant 0 : index
    %146 = vector.load %arg3[%c26, %c0_48] : memref<32x128xf32, #tpu.memory_space<vmem>>, vector<1x32xf32>
    %147 = vector.broadcast %146 : vector<1x32xf32> to vector<6x32xf32>
    %148 = arith.addf %145, %147 : vector<6x32xf32>
    %149 = math.tanh %148 : vector<6x32xf32>
    %150 = math.tanh %1 : vector<6x32xf32>
    %151 = tpu.concatenate %149, %142, %150 in 0 : vector<6x32xf32>, vector<6x32xf32>, vector<6x32xf32> -> vector<18x32xf32>
    %cst_49 = arith.constant dense<0.000000e+00> : vector<16x32xf32>
    %152 = tpu.matmul %3, %151, %cst_49 {dimension_numbers = #tpu.dot_dimension_numbers<[1], [0], [0], [1], [0, 0, 1, 1], [], []>} : vector<16x18xf32>, vector<18x32xf32>, vector<16x32xf32> -> vector<16x32xf32>
    %153 = arith.addf %152, %2 : vector<16x32xf32>
    %c0_50 = arith.constant 0 : index
    %c0_51 = arith.constant 0 : index
    %c0_52 = arith.constant 0 : index
    %154 = vector.load %arg6[%c0_50, %c0_51, %c0_52] : memref<2x32x256xf32, #tpu.memory_space<vmem>>, vector<1x32x256xf32>
    %155 = vector.shape_cast %154 : vector<1x32x256xf32> to vector<32x256xf32>
    %156 = vector.extract_strided_slice %155 {offsets = [0, 0], sizes = [32, 96], strides = [1, 1]} : vector<32x256xf32> to vector<32x96xf32>
    %157 = vector.extract_strided_slice %155 {offsets = [0, 96], sizes = [32, 32], strides = [1, 1]} : vector<32x256xf32> to vector<32x32xf32>
    %158 = vector.extract_strided_slice %155 {offsets = [0, 128], sizes = [32, 128], strides = [1, 1]} : vector<32x256xf32> to vector<32x128xf32>
    %c0_53 = arith.constant 0 : index
    %c0_54 = arith.constant 0 : index
    %c0_55 = arith.constant 0 : index
    %159 = vector.load %arg7[%c0_53, %c0_54, %c0_55] : memref<2x128x32xf32, #tpu.memory_space<vmem>>, vector<1x128x32xf32>
    %160 = vector.shape_cast %159 : vector<1x128x32xf32> to vector<128x32xf32>
    %c8 = arith.constant 8 : index
    %c0_56 = arith.constant 0 : index
    %161 = vector.load %arg3[%c8, %c0_56] : memref<32x128xf32, #tpu.memory_space<vmem>>, vector<1x32xf32>
    %c9 = arith.constant 9 : index
    %c0_57 = arith.constant 0 : index
    %162 = vector.load %arg3[%c9, %c0_57] : memref<32x128xf32, #tpu.memory_space<vmem>>, vector<1x32xf32>
    %cst_58 = arith.constant dense<0.000000e+00> : vector<16xf32>
    %163 = vector.multi_reduction <add>, %153, %cst_58 [1] : vector<16x32xf32> to vector<16xf32>
    %164 = vector.shape_cast %163 : vector<16xf32> to vector<16x1xf32>
    %cst_59 = arith.constant 3.200000e+01 : f32
    %165 = vector.broadcast %cst_59 : f32 to vector<16x1xf32>
    %166 = arith.divf %164, %165 : vector<16x1xf32>
    %167 = vector.broadcast %166 : vector<16x1xf32> to vector<16x32xf32>
    %168 = arith.subf %153, %167 : vector<16x32xf32>
    %169 = arith.mulf %168, %168 : vector<16x32xf32>
    %cst_60 = arith.constant dense<0.000000e+00> : vector<16xf32>
    %170 = vector.multi_reduction <add>, %169, %cst_60 [1] : vector<16x32xf32> to vector<16xf32>
    %171 = vector.shape_cast %170 : vector<16xf32> to vector<16x1xf32>
    %cst_61 = arith.constant 3.200000e+01 : f32
    %172 = vector.broadcast %cst_61 : f32 to vector<16x1xf32>
    %173 = arith.divf %171, %172 : vector<16x1xf32>
    %174 = vector.broadcast %166 : vector<16x1xf32> to vector<16x32xf32>
    %175 = arith.subf %153, %174 : vector<16x32xf32>
    %cst_62 = arith.constant 9.99999974E-6 : f32
    %176 = vector.broadcast %cst_62 : f32 to vector<16x1xf32>
    %177 = arith.addf %173, %176 : vector<16x1xf32>
    %178 = math.rsqrt %177 : vector<16x1xf32>
    %179 = vector.broadcast %178 : vector<16x1xf32> to vector<16x32xf32>
    %180 = arith.mulf %175, %179 : vector<16x32xf32>
    %181 = vector.broadcast %161 : vector<1x32xf32> to vector<16x32xf32>
    %182 = arith.mulf %180, %181 : vector<16x32xf32>
    %183 = vector.broadcast %162 : vector<1x32xf32> to vector<16x32xf32>
    %184 = arith.addf %182, %183 : vector<16x32xf32>
    %cst_63 = arith.constant dense<0.000000e+00> : vector<16x96xf32>
    %185 = tpu.matmul %184, %156, %cst_63 {dimension_numbers = #tpu.dot_dimension_numbers<[1], [0], [0], [1], [0, 0, 1, 1], [], []>} : vector<16x32xf32>, vector<32x96xf32>, vector<16x96xf32> -> vector<16x96xf32>
    %c10 = arith.constant 10 : index
    %c0_64 = arith.constant 0 : index
    %186 = vector.load %arg3[%c10, %c0_64] : memref<32x128xf32, #tpu.memory_space<vmem>>, vector<1x96xf32>
    %187 = vector.broadcast %186 : vector<1x96xf32> to vector<16x96xf32>
    %188 = arith.addf %185, %187 : vector<16x96xf32>
    %189 = vector.extract_strided_slice %188 {offsets = [0, 0], sizes = [16, 16], strides = [1, 1]} : vector<16x96xf32> to vector<16x16xf32>
    %190 = vector.extract_strided_slice %188 {offsets = [0, 32], sizes = [16, 16], strides = [1, 1]} : vector<16x96xf32> to vector<16x16xf32>
    %191 = vector.extract_strided_slice %188 {offsets = [0, 64], sizes = [16, 16], strides = [1, 1]} : vector<16x96xf32> to vector<16x16xf32>
    "tpu.trace_start"() <{level = 10 : i32, message = "qd,kd->qk"}> : () -> ()
    %cst_65 = arith.constant dense<0.000000e+00> : vector<16x16xf32>
    %192 = tpu.matmul %189, %190, %cst_65 {dimension_numbers = #tpu.dot_dimension_numbers<[1], [1], [0], [0], [0, 0, 1, 0], [], []>} : vector<16x16xf32>, vector<16x16xf32>, vector<16x16xf32> -> vector<16x16xf32>
    "tpu.trace_stop"() : () -> ()
    %cst_66 = arith.constant 2.500000e-01 : f32
    %193 = vector.broadcast %cst_66 : f32 to vector<16x16xf32>
    %194 = arith.mulf %192, %193 : vector<16x16xf32>
    %195 = arith.addf %194, %4 : vector<16x16xf32>
    %cst_67 = arith.constant dense<0xFF800000> : vector<16xf32>
    %196 = vector.multi_reduction <maximumf>, %195, %cst_67 [1] : vector<16x16xf32> to vector<16xf32>
    %197 = vector.shape_cast %196 : vector<16xf32> to vector<16x1xf32>
    %198 = vector.broadcast %197 : vector<16x1xf32> to vector<16x16xf32>
    %199 = arith.subf %195, %198 : vector<16x16xf32>
    %200 = math.exp %199 : vector<16x16xf32>
    %cst_68 = arith.constant dense<0.000000e+00> : vector<16xf32>
    %201 = vector.multi_reduction <add>, %200, %cst_68 [1] : vector<16x16xf32> to vector<16xf32>
    %202 = vector.shape_cast %201 : vector<16xf32> to vector<16x1xf32>
    %203 = vector.broadcast %202 : vector<16x1xf32> to vector<16x16xf32>
    %204 = arith.divf %200, %203 : vector<16x16xf32>
    %cst_69 = arith.constant dense<0.000000e+00> : vector<16x16xf32>
    %205 = tpu.matmul %204, %191, %cst_69 {dimension_numbers = #tpu.dot_dimension_numbers<[1], [0], [0], [1], [0, 0, 1, 1], [], []>} : vector<16x16xf32>, vector<16x16xf32>, vector<16x16xf32> -> vector<16x16xf32>
    %206 = vector.extract_strided_slice %188 {offsets = [0, 16], sizes = [16, 16], strides = [1, 1]} : vector<16x96xf32> to vector<16x16xf32>
    %207 = vector.extract_strided_slice %188 {offsets = [0, 48], sizes = [16, 16], strides = [1, 1]} : vector<16x96xf32> to vector<16x16xf32>
    %208 = vector.extract_strided_slice %188 {offsets = [0, 80], sizes = [16, 16], strides = [1, 1]} : vector<16x96xf32> to vector<16x16xf32>
    "tpu.trace_start"() <{level = 10 : i32, message = "qd,kd->qk"}> : () -> ()
    %cst_70 = arith.constant dense<0.000000e+00> : vector<16x16xf32>
    %209 = tpu.matmul %206, %207, %cst_70 {dimension_numbers = #tpu.dot_dimension_numbers<[1], [1], [0], [0], [0, 0, 1, 0], [], []>} : vector<16x16xf32>, vector<16x16xf32>, vector<16x16xf32> -> vector<16x16xf32>
    "tpu.trace_stop"() : () -> ()
    %cst_71 = arith.constant 2.500000e-01 : f32
    %210 = vector.broadcast %cst_71 : f32 to vector<16x16xf32>
    %211 = arith.mulf %209, %210 : vector<16x16xf32>
    %212 = arith.addf %211, %4 : vector<16x16xf32>
    %cst_72 = arith.constant dense<0xFF800000> : vector<16xf32>
    %213 = vector.multi_reduction <maximumf>, %212, %cst_72 [1] : vector<16x16xf32> to vector<16xf32>
    %214 = vector.shape_cast %213 : vector<16xf32> to vector<16x1xf32>
    %215 = vector.broadcast %214 : vector<16x1xf32> to vector<16x16xf32>
    %216 = arith.subf %212, %215 : vector<16x16xf32>
    %217 = math.exp %216 : vector<16x16xf32>
    %cst_73 = arith.constant dense<0.000000e+00> : vector<16xf32>
    %218 = vector.multi_reduction <add>, %217, %cst_73 [1] : vector<16x16xf32> to vector<16xf32>
    %219 = vector.shape_cast %218 : vector<16xf32> to vector<16x1xf32>
    %220 = vector.broadcast %219 : vector<16x1xf32> to vector<16x16xf32>
    %221 = arith.divf %217, %220 : vector<16x16xf32>
    %cst_74 = arith.constant dense<0.000000e+00> : vector<16x16xf32>
    %222 = tpu.matmul %221, %208, %cst_74 {dimension_numbers = #tpu.dot_dimension_numbers<[1], [0], [0], [1], [0, 0, 1, 1], [], []>} : vector<16x16xf32>, vector<16x16xf32>, vector<16x16xf32> -> vector<16x16xf32>
    %223 = tpu.concatenate %205, %222 in 1 : vector<16x16xf32>, vector<16x16xf32> -> vector<16x32xf32>
    %cst_75 = arith.constant dense<0.000000e+00> : vector<16x32xf32>
    %224 = tpu.matmul %223, %157, %cst_75 {dimension_numbers = #tpu.dot_dimension_numbers<[1], [0], [0], [1], [0, 0, 1, 1], [], []>} : vector<16x32xf32>, vector<32x32xf32>, vector<16x32xf32> -> vector<16x32xf32>
    %225 = arith.addf %153, %224 : vector<16x32xf32>
    %c11 = arith.constant 11 : index
    %c0_76 = arith.constant 0 : index
    %226 = vector.load %arg3[%c11, %c0_76] : memref<32x128xf32, #tpu.memory_space<vmem>>, vector<1x32xf32>
    %227 = vector.broadcast %226 : vector<1x32xf32> to vector<16x32xf32>
    %228 = arith.addf %225, %227 : vector<16x32xf32>
    %c12_77 = arith.constant 12 : index
    %c0_78 = arith.constant 0 : index
    %229 = vector.load %arg3[%c12_77, %c0_78] : memref<32x128xf32, #tpu.memory_space<vmem>>, vector<1x32xf32>
    %c13 = arith.constant 13 : index
    %c0_79 = arith.constant 0 : index
    %230 = vector.load %arg3[%c13, %c0_79] : memref<32x128xf32, #tpu.memory_space<vmem>>, vector<1x32xf32>
    %cst_80 = arith.constant dense<0.000000e+00> : vector<16xf32>
    %231 = vector.multi_reduction <add>, %228, %cst_80 [1] : vector<16x32xf32> to vector<16xf32>
    %232 = vector.shape_cast %231 : vector<16xf32> to vector<16x1xf32>
    %cst_81 = arith.constant 3.200000e+01 : f32
    %233 = vector.broadcast %cst_81 : f32 to vector<16x1xf32>
    %234 = arith.divf %232, %233 : vector<16x1xf32>
    %235 = vector.broadcast %234 : vector<16x1xf32> to vector<16x32xf32>
    %236 = arith.subf %228, %235 : vector<16x32xf32>
    %237 = arith.mulf %236, %236 : vector<16x32xf32>
    %cst_82 = arith.constant dense<0.000000e+00> : vector<16xf32>
    %238 = vector.multi_reduction <add>, %237, %cst_82 [1] : vector<16x32xf32> to vector<16xf32>
    %239 = vector.shape_cast %238 : vector<16xf32> to vector<16x1xf32>
    %cst_83 = arith.constant 3.200000e+01 : f32
    %240 = vector.broadcast %cst_83 : f32 to vector<16x1xf32>
    %241 = arith.divf %239, %240 : vector<16x1xf32>
    %242 = vector.broadcast %234 : vector<16x1xf32> to vector<16x32xf32>
    %243 = arith.subf %228, %242 : vector<16x32xf32>
    %cst_84 = arith.constant 9.99999974E-6 : f32
    %244 = vector.broadcast %cst_84 : f32 to vector<16x1xf32>
    %245 = arith.addf %241, %244 : vector<16x1xf32>
    %246 = math.rsqrt %245 : vector<16x1xf32>
    %247 = vector.broadcast %246 : vector<16x1xf32> to vector<16x32xf32>
    %248 = arith.mulf %243, %247 : vector<16x32xf32>
    %249 = vector.broadcast %229 : vector<1x32xf32> to vector<16x32xf32>
    %250 = arith.mulf %248, %249 : vector<16x32xf32>
    %251 = vector.broadcast %230 : vector<1x32xf32> to vector<16x32xf32>
    %252 = arith.addf %250, %251 : vector<16x32xf32>
    %cst_85 = arith.constant dense<0.000000e+00> : vector<16x128xf32>
    %253 = tpu.matmul %252, %158, %cst_85 {dimension_numbers = #tpu.dot_dimension_numbers<[1], [0], [0], [1], [0, 0, 1, 1], [], []>} : vector<16x32xf32>, vector<32x128xf32>, vector<16x128xf32> -> vector<16x128xf32>
    %c14 = arith.constant 14 : index
    %c0_86 = arith.constant 0 : index
    %254 = vector.load %arg3[%c14, %c0_86] : memref<32x128xf32, #tpu.memory_space<vmem>>, vector<1x128xf32>
    %255 = vector.broadcast %254 : vector<1x128xf32> to vector<16x128xf32>
    %256 = arith.addf %253, %255 : vector<16x128xf32>
    %cst_87 = arith.constant 5.000000e-01 : f32
    %257 = vector.broadcast %cst_87 : f32 to vector<16x128xf32>
    %258 = arith.mulf %257, %256 : vector<16x128xf32>
    %cst_88 = arith.constant 0.707106769 : f32
    %259 = vector.broadcast %cst_88 : f32 to vector<16x128xf32>
    %260 = arith.mulf %256, %259 : vector<16x128xf32>
    %261 = math.absf %260 : vector<16x128xf32>
    %cst_89 = arith.constant 0.327591091 : f32
    %262 = vector.broadcast %cst_89 : f32 to vector<16x128xf32>
    %263 = arith.mulf %262, %261 : vector<16x128xf32>
    %cst_90 = arith.constant 1.000000e+00 : f32
    %264 = vector.broadcast %cst_90 : f32 to vector<16x128xf32>
    %265 = arith.addf %264, %263 : vector<16x128xf32>
    %cst_91 = arith.constant 1.000000e+00 : f32
    %266 = vector.broadcast %cst_91 : f32 to vector<16x128xf32>
    %267 = arith.divf %266, %265 : vector<16x128xf32>
    %cst_92 = arith.constant 1.06140542 : f32
    %268 = vector.broadcast %cst_92 : f32 to vector<16x128xf32>
    %269 = arith.mulf %268, %267 : vector<16x128xf32>
    %cst_93 = arith.constant -1.45315206 : f32
    %270 = vector.broadcast %cst_93 : f32 to vector<16x128xf32>
    %271 = arith.addf %269, %270 : vector<16x128xf32>
    %272 = arith.mulf %271, %267 : vector<16x128xf32>
    %cst_94 = arith.constant 1.42141378 : f32
    %273 = vector.broadcast %cst_94 : f32 to vector<16x128xf32>
    %274 = arith.addf %272, %273 : vector<16x128xf32>
    %275 = arith.mulf %274, %267 : vector<16x128xf32>
    %cst_95 = arith.constant -0.284496725 : f32
    %276 = vector.broadcast %cst_95 : f32 to vector<16x128xf32>
    %277 = arith.addf %275, %276 : vector<16x128xf32>
    %278 = arith.mulf %277, %267 : vector<16x128xf32>
    %cst_96 = arith.constant 0.254829586 : f32
    %279 = vector.broadcast %cst_96 : f32 to vector<16x128xf32>
    %280 = arith.addf %278, %279 : vector<16x128xf32>
    %281 = arith.mulf %280, %267 : vector<16x128xf32>
    %cst_97 = arith.constant 0.000000e+00 : f32
    %282 = vector.broadcast %cst_97 : f32 to vector<16x128xf32>
    %283 = arith.subf %282, %261 : vector<16x128xf32>
    %284 = arith.mulf %283, %261 : vector<16x128xf32>
    %285 = math.exp %284 : vector<16x128xf32>
    %286 = arith.mulf %281, %285 : vector<16x128xf32>
    %cst_98 = arith.constant 1.000000e+00 : f32
    %287 = vector.broadcast %cst_98 : f32 to vector<16x128xf32>
    %288 = arith.subf %287, %286 : vector<16x128xf32>
    %cst_99 = arith.constant 0.000000e+00 : f32
    %289 = vector.broadcast %cst_99 : f32 to vector<16x128xf32>
    %290 = arith.cmpf oge, %260, %289 : vector<16x128xf32>
    %cst_100 = arith.constant 0.000000e+00 : f32
    %291 = vector.broadcast %cst_100 : f32 to vector<16x128xf32>
    %292 = arith.subf %291, %288 : vector<16x128xf32>
    %293 = arith.select %290, %288, %292 : vector<16x128xi1>, vector<16x128xf32>
    %cst_101 = arith.constant 1.000000e+00 : f32
    %294 = vector.broadcast %cst_101 : f32 to vector<16x128xf32>
    %295 = arith.addf %294, %293 : vector<16x128xf32>
    %296 = arith.mulf %258, %295 : vector<16x128xf32>
    %cst_102 = arith.constant dense<0.000000e+00> : vector<16x32xf32>
    %297 = tpu.matmul %296, %160, %cst_102 {dimension_numbers = #tpu.dot_dimension_numbers<[1], [0], [0], [1], [0, 0, 1, 1], [], []>} : vector<16x128xf32>, vector<128x32xf32>, vector<16x32xf32> -> vector<16x32xf32>
    %298 = arith.addf %228, %297 : vector<16x32xf32>
    %c15 = arith.constant 15 : index
    %c0_103 = arith.constant 0 : index
    %299 = vector.load %arg3[%c15, %c0_103] : memref<32x128xf32, #tpu.memory_space<vmem>>, vector<1x32xf32>
    %300 = vector.broadcast %299 : vector<1x32xf32> to vector<16x32xf32>
    %301 = arith.addf %298, %300 : vector<16x32xf32>
    %c1_104 = arith.constant 1 : index
    %c0_105 = arith.constant 0 : index
    %c0_106 = arith.constant 0 : index
    %302 = vector.load %arg6[%c1_104, %c0_105, %c0_106] : memref<2x32x256xf32, #tpu.memory_space<vmem>>, vector<1x32x256xf32>
    %303 = vector.shape_cast %302 : vector<1x32x256xf32> to vector<32x256xf32>
    %304 = vector.extract_strided_slice %303 {offsets = [0, 0], sizes = [32, 96], strides = [1, 1]} : vector<32x256xf32> to vector<32x96xf32>
    %305 = vector.extract_strided_slice %303 {offsets = [0, 96], sizes = [32, 32], strides = [1, 1]} : vector<32x256xf32> to vector<32x32xf32>
    %306 = vector.extract_strided_slice %303 {offsets = [0, 128], sizes = [32, 128], strides = [1, 1]} : vector<32x256xf32> to vector<32x128xf32>
    %c1_107 = arith.constant 1 : index
    %c0_108 = arith.constant 0 : index
    %c0_109 = arith.constant 0 : index
    %307 = vector.load %arg7[%c1_107, %c0_108, %c0_109] : memref<2x128x32xf32, #tpu.memory_space<vmem>>, vector<1x128x32xf32>
    %308 = vector.shape_cast %307 : vector<1x128x32xf32> to vector<128x32xf32>
    %c16 = arith.constant 16 : index
    %c0_110 = arith.constant 0 : index
    %309 = vector.load %arg3[%c16, %c0_110] : memref<32x128xf32, #tpu.memory_space<vmem>>, vector<1x32xf32>
    %c17 = arith.constant 17 : index
    %c0_111 = arith.constant 0 : index
    %310 = vector.load %arg3[%c17, %c0_111] : memref<32x128xf32, #tpu.memory_space<vmem>>, vector<1x32xf32>
    %cst_112 = arith.constant dense<0.000000e+00> : vector<16xf32>
    %311 = vector.multi_reduction <add>, %301, %cst_112 [1] : vector<16x32xf32> to vector<16xf32>
    %312 = vector.shape_cast %311 : vector<16xf32> to vector<16x1xf32>
    %cst_113 = arith.constant 3.200000e+01 : f32
    %313 = vector.broadcast %cst_113 : f32 to vector<16x1xf32>
    %314 = arith.divf %312, %313 : vector<16x1xf32>
    %315 = vector.broadcast %314 : vector<16x1xf32> to vector<16x32xf32>
    %316 = arith.subf %301, %315 : vector<16x32xf32>
    %317 = arith.mulf %316, %316 : vector<16x32xf32>
    %cst_114 = arith.constant dense<0.000000e+00> : vector<16xf32>
    %318 = vector.multi_reduction <add>, %317, %cst_114 [1] : vector<16x32xf32> to vector<16xf32>
    %319 = vector.shape_cast %318 : vector<16xf32> to vector<16x1xf32>
    %cst_115 = arith.constant 3.200000e+01 : f32
    %320 = vector.broadcast %cst_115 : f32 to vector<16x1xf32>
    %321 = arith.divf %319, %320 : vector<16x1xf32>
    %322 = vector.broadcast %314 : vector<16x1xf32> to vector<16x32xf32>
    %323 = arith.subf %301, %322 : vector<16x32xf32>
    %cst_116 = arith.constant 9.99999974E-6 : f32
    %324 = vector.broadcast %cst_116 : f32 to vector<16x1xf32>
    %325 = arith.addf %321, %324 : vector<16x1xf32>
    %326 = math.rsqrt %325 : vector<16x1xf32>
    %327 = vector.broadcast %326 : vector<16x1xf32> to vector<16x32xf32>
    %328 = arith.mulf %323, %327 : vector<16x32xf32>
    %329 = vector.broadcast %309 : vector<1x32xf32> to vector<16x32xf32>
    %330 = arith.mulf %328, %329 : vector<16x32xf32>
    %331 = vector.broadcast %310 : vector<1x32xf32> to vector<16x32xf32>
    %332 = arith.addf %330, %331 : vector<16x32xf32>
    %cst_117 = arith.constant dense<0.000000e+00> : vector<16x96xf32>
    %333 = tpu.matmul %332, %304, %cst_117 {dimension_numbers = #tpu.dot_dimension_numbers<[1], [0], [0], [1], [0, 0, 1, 1], [], []>} : vector<16x32xf32>, vector<32x96xf32>, vector<16x96xf32> -> vector<16x96xf32>
    %c18_118 = arith.constant 18 : index
    %c0_119 = arith.constant 0 : index
    %334 = vector.load %arg3[%c18_118, %c0_119] : memref<32x128xf32, #tpu.memory_space<vmem>>, vector<1x96xf32>
    %335 = vector.broadcast %334 : vector<1x96xf32> to vector<16x96xf32>
    %336 = arith.addf %333, %335 : vector<16x96xf32>
    %337 = vector.extract_strided_slice %336 {offsets = [0, 0], sizes = [16, 16], strides = [1, 1]} : vector<16x96xf32> to vector<16x16xf32>
    %338 = vector.extract_strided_slice %336 {offsets = [0, 32], sizes = [16, 16], strides = [1, 1]} : vector<16x96xf32> to vector<16x16xf32>
    %339 = vector.extract_strided_slice %336 {offsets = [0, 64], sizes = [16, 16], strides = [1, 1]} : vector<16x96xf32> to vector<16x16xf32>
    "tpu.trace_start"() <{level = 10 : i32, message = "qd,kd->qk"}> : () -> ()
    %cst_120 = arith.constant dense<0.000000e+00> : vector<16x16xf32>
    %340 = tpu.matmul %337, %338, %cst_120 {dimension_numbers = #tpu.dot_dimension_numbers<[1], [1], [0], [0], [0, 0, 1, 0], [], []>} : vector<16x16xf32>, vector<16x16xf32>, vector<16x16xf32> -> vector<16x16xf32>
    "tpu.trace_stop"() : () -> ()
    %cst_121 = arith.constant 2.500000e-01 : f32
    %341 = vector.broadcast %cst_121 : f32 to vector<16x16xf32>
    %342 = arith.mulf %340, %341 : vector<16x16xf32>
    %343 = arith.addf %342, %4 : vector<16x16xf32>
    %cst_122 = arith.constant dense<0xFF800000> : vector<16xf32>
    %344 = vector.multi_reduction <maximumf>, %343, %cst_122 [1] : vector<16x16xf32> to vector<16xf32>
    %345 = vector.shape_cast %344 : vector<16xf32> to vector<16x1xf32>
    %346 = vector.broadcast %345 : vector<16x1xf32> to vector<16x16xf32>
    %347 = arith.subf %343, %346 : vector<16x16xf32>
    %348 = math.exp %347 : vector<16x16xf32>
    %cst_123 = arith.constant dense<0.000000e+00> : vector<16xf32>
    %349 = vector.multi_reduction <add>, %348, %cst_123 [1] : vector<16x16xf32> to vector<16xf32>
    %350 = vector.shape_cast %349 : vector<16xf32> to vector<16x1xf32>
    %351 = vector.broadcast %350 : vector<16x1xf32> to vector<16x16xf32>
    %352 = arith.divf %348, %351 : vector<16x16xf32>
    %cst_124 = arith.constant dense<0.000000e+00> : vector<16x16xf32>
    %353 = tpu.matmul %352, %339, %cst_124 {dimension_numbers = #tpu.dot_dimension_numbers<[1], [0], [0], [1], [0, 0, 1, 1], [], []>} : vector<16x16xf32>, vector<16x16xf32>, vector<16x16xf32> -> vector<16x16xf32>
    %354 = vector.extract_strided_slice %336 {offsets = [0, 16], sizes = [16, 16], strides = [1, 1]} : vector<16x96xf32> to vector<16x16xf32>
    %355 = vector.extract_strided_slice %336 {offsets = [0, 48], sizes = [16, 16], strides = [1, 1]} : vector<16x96xf32> to vector<16x16xf32>
    %356 = vector.extract_strided_slice %336 {offsets = [0, 80], sizes = [16, 16], strides = [1, 1]} : vector<16x96xf32> to vector<16x16xf32>
    "tpu.trace_start"() <{level = 10 : i32, message = "qd,kd->qk"}> : () -> ()
    %cst_125 = arith.constant dense<0.000000e+00> : vector<16x16xf32>
    %357 = tpu.matmul %354, %355, %cst_125 {dimension_numbers = #tpu.dot_dimension_numbers<[1], [1], [0], [0], [0, 0, 1, 0], [], []>} : vector<16x16xf32>, vector<16x16xf32>, vector<16x16xf32> -> vector<16x16xf32>
    "tpu.trace_stop"() : () -> ()
    %cst_126 = arith.constant 2.500000e-01 : f32
    %358 = vector.broadcast %cst_126 : f32 to vector<16x16xf32>
    %359 = arith.mulf %357, %358 : vector<16x16xf32>
    %360 = arith.addf %359, %4 : vector<16x16xf32>
    %cst_127 = arith.constant dense<0xFF800000> : vector<16xf32>
    %361 = vector.multi_reduction <maximumf>, %360, %cst_127 [1] : vector<16x16xf32> to vector<16xf32>
    %362 = vector.shape_cast %361 : vector<16xf32> to vector<16x1xf32>
    %363 = vector.broadcast %362 : vector<16x1xf32> to vector<16x16xf32>
    %364 = arith.subf %360, %363 : vector<16x16xf32>
    %365 = math.exp %364 : vector<16x16xf32>
    %cst_128 = arith.constant dense<0.000000e+00> : vector<16xf32>
    %366 = vector.multi_reduction <add>, %365, %cst_128 [1] : vector<16x16xf32> to vector<16xf32>
    %367 = vector.shape_cast %366 : vector<16xf32> to vector<16x1xf32>
    %368 = vector.broadcast %367 : vector<16x1xf32> to vector<16x16xf32>
    %369 = arith.divf %365, %368 : vector<16x16xf32>
    %cst_129 = arith.constant dense<0.000000e+00> : vector<16x16xf32>
    %370 = tpu.matmul %369, %356, %cst_129 {dimension_numbers = #tpu.dot_dimension_numbers<[1], [0], [0], [1], [0, 0, 1, 1], [], []>} : vector<16x16xf32>, vector<16x16xf32>, vector<16x16xf32> -> vector<16x16xf32>
    %371 = tpu.concatenate %353, %370 in 1 : vector<16x16xf32>, vector<16x16xf32> -> vector<16x32xf32>
    %cst_130 = arith.constant dense<0.000000e+00> : vector<16x32xf32>
    %372 = tpu.matmul %371, %305, %cst_130 {dimension_numbers = #tpu.dot_dimension_numbers<[1], [0], [0], [1], [0, 0, 1, 1], [], []>} : vector<16x32xf32>, vector<32x32xf32>, vector<16x32xf32> -> vector<16x32xf32>
    %373 = arith.addf %301, %372 : vector<16x32xf32>
    %c19 = arith.constant 19 : index
    %c0_131 = arith.constant 0 : index
    %374 = vector.load %arg3[%c19, %c0_131] : memref<32x128xf32, #tpu.memory_space<vmem>>, vector<1x32xf32>
    %375 = vector.broadcast %374 : vector<1x32xf32> to vector<16x32xf32>
    %376 = arith.addf %373, %375 : vector<16x32xf32>
    %c20 = arith.constant 20 : index
    %c0_132 = arith.constant 0 : index
    %377 = vector.load %arg3[%c20, %c0_132] : memref<32x128xf32, #tpu.memory_space<vmem>>, vector<1x32xf32>
    %c21 = arith.constant 21 : index
    %c0_133 = arith.constant 0 : index
    %378 = vector.load %arg3[%c21, %c0_133] : memref<32x128xf32, #tpu.memory_space<vmem>>, vector<1x32xf32>
    %cst_134 = arith.constant dense<0.000000e+00> : vector<16xf32>
    %379 = vector.multi_reduction <add>, %376, %cst_134 [1] : vector<16x32xf32> to vector<16xf32>
    %380 = vector.shape_cast %379 : vector<16xf32> to vector<16x1xf32>
    %cst_135 = arith.constant 3.200000e+01 : f32
    %381 = vector.broadcast %cst_135 : f32 to vector<16x1xf32>
    %382 = arith.divf %380, %381 : vector<16x1xf32>
    %383 = vector.broadcast %382 : vector<16x1xf32> to vector<16x32xf32>
    %384 = arith.subf %376, %383 : vector<16x32xf32>
    %385 = arith.mulf %384, %384 : vector<16x32xf32>
    %cst_136 = arith.constant dense<0.000000e+00> : vector<16xf32>
    %386 = vector.multi_reduction <add>, %385, %cst_136 [1] : vector<16x32xf32> to vector<16xf32>
    %387 = vector.shape_cast %386 : vector<16xf32> to vector<16x1xf32>
    %cst_137 = arith.constant 3.200000e+01 : f32
    %388 = vector.broadcast %cst_137 : f32 to vector<16x1xf32>
    %389 = arith.divf %387, %388 : vector<16x1xf32>
    %390 = vector.broadcast %382 : vector<16x1xf32> to vector<16x32xf32>
    %391 = arith.subf %376, %390 : vector<16x32xf32>
    %cst_138 = arith.constant 9.99999974E-6 : f32
    %392 = vector.broadcast %cst_138 : f32 to vector<16x1xf32>
    %393 = arith.addf %389, %392 : vector<16x1xf32>
    %394 = math.rsqrt %393 : vector<16x1xf32>
    %395 = vector.broadcast %394 : vector<16x1xf32> to vector<16x32xf32>
    %396 = arith.mulf %391, %395 : vector<16x32xf32>
    %397 = vector.broadcast %377 : vector<1x32xf32> to vector<16x32xf32>
    %398 = arith.mulf %396, %397 : vector<16x32xf32>
    %399 = vector.broadcast %378 : vector<1x32xf32> to vector<16x32xf32>
    %400 = arith.addf %398, %399 : vector<16x32xf32>
    %cst_139 = arith.constant dense<0.000000e+00> : vector<16x128xf32>
    %401 = tpu.matmul %400, %306, %cst_139 {dimension_numbers = #tpu.dot_dimension_numbers<[1], [0], [0], [1], [0, 0, 1, 1], [], []>} : vector<16x32xf32>, vector<32x128xf32>, vector<16x128xf32> -> vector<16x128xf32>
    %c22 = arith.constant 22 : index
    %c0_140 = arith.constant 0 : index
    %402 = vector.load %arg3[%c22, %c0_140] : memref<32x128xf32, #tpu.memory_space<vmem>>, vector<1x128xf32>
    %403 = vector.broadcast %402 : vector<1x128xf32> to vector<16x128xf32>
    %404 = arith.addf %401, %403 : vector<16x128xf32>
    %cst_141 = arith.constant 5.000000e-01 : f32
    %405 = vector.broadcast %cst_141 : f32 to vector<16x128xf32>
    %406 = arith.mulf %405, %404 : vector<16x128xf32>
    %cst_142 = arith.constant 0.707106769 : f32
    %407 = vector.broadcast %cst_142 : f32 to vector<16x128xf32>
    %408 = arith.mulf %404, %407 : vector<16x128xf32>
    %409 = math.absf %408 : vector<16x128xf32>
    %cst_143 = arith.constant 0.327591091 : f32
    %410 = vector.broadcast %cst_143 : f32 to vector<16x128xf32>
    %411 = arith.mulf %410, %409 : vector<16x128xf32>
    %cst_144 = arith.constant 1.000000e+00 : f32
    %412 = vector.broadcast %cst_144 : f32 to vector<16x128xf32>
    %413 = arith.addf %412, %411 : vector<16x128xf32>
    %cst_145 = arith.constant 1.000000e+00 : f32
    %414 = vector.broadcast %cst_145 : f32 to vector<16x128xf32>
    %415 = arith.divf %414, %413 : vector<16x128xf32>
    %cst_146 = arith.constant 1.06140542 : f32
    %416 = vector.broadcast %cst_146 : f32 to vector<16x128xf32>
    %417 = arith.mulf %416, %415 : vector<16x128xf32>
    %cst_147 = arith.constant -1.45315206 : f32
    %418 = vector.broadcast %cst_147 : f32 to vector<16x128xf32>
    %419 = arith.addf %417, %418 : vector<16x128xf32>
    %420 = arith.mulf %419, %415 : vector<16x128xf32>
    %cst_148 = arith.constant 1.42141378 : f32
    %421 = vector.broadcast %cst_148 : f32 to vector<16x128xf32>
    %422 = arith.addf %420, %421 : vector<16x128xf32>
    %423 = arith.mulf %422, %415 : vector<16x128xf32>
    %cst_149 = arith.constant -0.284496725 : f32
    %424 = vector.broadcast %cst_149 : f32 to vector<16x128xf32>
    %425 = arith.addf %423, %424 : vector<16x128xf32>
    %426 = arith.mulf %425, %415 : vector<16x128xf32>
    %cst_150 = arith.constant 0.254829586 : f32
    %427 = vector.broadcast %cst_150 : f32 to vector<16x128xf32>
    %428 = arith.addf %426, %427 : vector<16x128xf32>
    %429 = arith.mulf %428, %415 : vector<16x128xf32>
    %cst_151 = arith.constant 0.000000e+00 : f32
    %430 = vector.broadcast %cst_151 : f32 to vector<16x128xf32>
    %431 = arith.subf %430, %409 : vector<16x128xf32>
    %432 = arith.mulf %431, %409 : vector<16x128xf32>
    %433 = math.exp %432 : vector<16x128xf32>
    %434 = arith.mulf %429, %433 : vector<16x128xf32>
    %cst_152 = arith.constant 1.000000e+00 : f32
    %435 = vector.broadcast %cst_152 : f32 to vector<16x128xf32>
    %436 = arith.subf %435, %434 : vector<16x128xf32>
    %cst_153 = arith.constant 0.000000e+00 : f32
    %437 = vector.broadcast %cst_153 : f32 to vector<16x128xf32>
    %438 = arith.cmpf oge, %408, %437 : vector<16x128xf32>
    %cst_154 = arith.constant 0.000000e+00 : f32
    %439 = vector.broadcast %cst_154 : f32 to vector<16x128xf32>
    %440 = arith.subf %439, %436 : vector<16x128xf32>
    %441 = arith.select %438, %436, %440 : vector<16x128xi1>, vector<16x128xf32>
    %cst_155 = arith.constant 1.000000e+00 : f32
    %442 = vector.broadcast %cst_155 : f32 to vector<16x128xf32>
    %443 = arith.addf %442, %441 : vector<16x128xf32>
    %444 = arith.mulf %406, %443 : vector<16x128xf32>
    %cst_156 = arith.constant dense<0.000000e+00> : vector<16x32xf32>
    %445 = tpu.matmul %444, %308, %cst_156 {dimension_numbers = #tpu.dot_dimension_numbers<[1], [0], [0], [1], [0, 0, 1, 1], [], []>} : vector<16x128xf32>, vector<128x32xf32>, vector<16x32xf32> -> vector<16x32xf32>
    %446 = arith.addf %376, %445 : vector<16x32xf32>
    %c23 = arith.constant 23 : index
    %c0_157 = arith.constant 0 : index
    %447 = vector.load %arg3[%c23, %c0_157] : memref<32x128xf32, #tpu.memory_space<vmem>>, vector<1x32xf32>
    %448 = vector.broadcast %447 : vector<1x32xf32> to vector<16x32xf32>
    %449 = arith.addf %446, %448 : vector<16x32xf32>
    %c27 = arith.constant 27 : index
    %c0_158 = arith.constant 0 : index
    %450 = vector.load %arg3[%c27, %c0_158] : memref<32x128xf32, #tpu.memory_space<vmem>>, vector<1x32xf32>
    %c28 = arith.constant 28 : index
    %c0_159 = arith.constant 0 : index
    %451 = vector.load %arg3[%c28, %c0_159] : memref<32x128xf32, #tpu.memory_space<vmem>>, vector<1x32xf32>
    %cst_160 = arith.constant dense<0.000000e+00> : vector<16xf32>
    %452 = vector.multi_reduction <add>, %449, %cst_160 [1] : vector<16x32xf32> to vector<16xf32>
    %453 = vector.shape_cast %452 : vector<16xf32> to vector<16x1xf32>
    %cst_161 = arith.constant 3.200000e+01 : f32
    %454 = vector.broadcast %cst_161 : f32 to vector<16x1xf32>
    %455 = arith.divf %453, %454 : vector<16x1xf32>
    %456 = vector.broadcast %455 : vector<16x1xf32> to vector<16x32xf32>
    %457 = arith.subf %449, %456 : vector<16x32xf32>
    %458 = arith.mulf %457, %457 : vector<16x32xf32>
    %cst_162 = arith.constant dense<0.000000e+00> : vector<16xf32>
    %459 = vector.multi_reduction <add>, %458, %cst_162 [1] : vector<16x32xf32> to vector<16xf32>
    %460 = vector.shape_cast %459 : vector<16xf32> to vector<16x1xf32>
    %cst_163 = arith.constant 3.200000e+01 : f32
    %461 = vector.broadcast %cst_163 : f32 to vector<16x1xf32>
    %462 = arith.divf %460, %461 : vector<16x1xf32>
    %463 = vector.broadcast %455 : vector<16x1xf32> to vector<16x32xf32>
    %464 = arith.subf %449, %463 : vector<16x32xf32>
    %cst_164 = arith.constant 9.99999974E-6 : f32
    %465 = vector.broadcast %cst_164 : f32 to vector<16x1xf32>
    %466 = arith.addf %462, %465 : vector<16x1xf32>
    %467 = math.rsqrt %466 : vector<16x1xf32>
    %468 = vector.broadcast %467 : vector<16x1xf32> to vector<16x32xf32>
    %469 = arith.mulf %464, %468 : vector<16x32xf32>
    %470 = vector.broadcast %450 : vector<1x32xf32> to vector<16x32xf32>
    %471 = arith.mulf %469, %470 : vector<16x32xf32>
    %472 = vector.broadcast %451 : vector<1x32xf32> to vector<16x32xf32>
    %473 = arith.addf %471, %472 : vector<16x32xf32>
    %c0_165 = arith.constant 0 : index
    %c0_166 = arith.constant 0 : index
    %474 = vector.load %arg8[%c0_165, %c0_166] : memref<32x128xf32, #tpu.memory_space<vmem>>, vector<32x128xf32>
    %cst_167 = arith.constant dense<0.000000e+00> : vector<16x128xf32>
    %475 = tpu.matmul %473, %474, %cst_167 {dimension_numbers = #tpu.dot_dimension_numbers<[1], [0], [0], [1], [0, 0, 1, 1], [], []>} : vector<16x32xf32>, vector<32x128xf32>, vector<16x128xf32> -> vector<16x128xf32>
    %c0_168 = arith.constant 0 : index
    %c0_169 = arith.constant 0 : index
    %476 = vector.load %arg9[%c0_168, %c0_169] : memref<16x128xf32, #tpu.memory_space<vmem>>, vector<16x128xf32>
    tpu.vector_store %arg9[%c0_168, %c0_169], %475 {strides = array<i32>} : memref<16x128xf32, #tpu.memory_space<vmem>>, vector<16x128xf32>,
    return
  }
}

</mosaic_0001>

<llo_original>
// kernel: _lambda_.1
$region0: #{_lambda_.1}
  #allocation0 [shape = 'u32[]', space=smem, size = 0x4, offset = 0x4, fixed_abs, tag = 'smem constant byte address 0x4 - core index']
  #allocation1 [shape = 'u32[144,128]{1,0:T(1,128)}', space=vmem, size = 0x12000, scoped, tag = 'internal scratch']
  %s0 = inlined_call_operand.vmem [shape: f32[6,1024], index: 0, kind: input, shape index: {}]
  %s1 = inlined_call_operand.vmem [shape: f32[28,32], index: 1, kind: input, shape index: {}]
  %s2 = inlined_call_operand.vmem [shape: f32[16,34], index: 2, kind: input, shape index: {}]
  %s3 = inlined_call_operand.vmem [shape: f32[32,128], index: 3, kind: input, shape index: {}]
  %s4 = inlined_call_operand.vmem [shape: f32[1024,32], index: 4, kind: input, shape index: {}]
  %s5 = inlined_call_operand.vmem [shape: f32[1,32,192], index: 5, kind: input, shape index: {}]
  %s6 = inlined_call_operand.vmem [shape: f32[2,32,256], index: 6, kind: input, shape index: {}]
  %s7 = inlined_call_operand.vmem [shape: f32[2,128,32], index: 7, kind: input, shape index: {}]
  %s8 = inlined_call_operand.vmem [shape: f32[32,128], index: 8, kind: input, shape index: {}]
  %s9 = inlined_call_operand.vmem [shape: f32[16,128], index: 9, kind: output, shape index: {}]
  %s10 = sld [smem:[#allocation0]]
  $region46: #{_lambda_.1} parent=0
    _
  %s12 = ssub.s32 1, %s10
  %s13 = scalar_select 0, %s12, %s10
  // Predicated region
  $region2: #{_lambda_.1} parent=0 // pred_check
    _
  $region3: #{_lambda_.1} parent=0 // pred_check_branch
    %15 = sbr.rel (0) target = $region5
  $region4: #{_lambda_.1} parent=0 // pred_region
    _
  $region5: #{_lambda_.1} parent=0 // pred_fallthru
    _
  // Predicated region
  $region6: #{_lambda_.1} parent=0 // pred_check
    _
  $region7: #{_lambda_.1} parent=0 // pred_check_branch
    %17 = sbr.rel (0) target = $region9
  $region8: #{_lambda_.1} parent=0 // pred_region
    _
  $region9: #{_lambda_.1} parent=0 // pred_fallthru
    _
  // Predicated region
  $region10: #{_lambda_.1} parent=0 // pred_check
    _
  $region11: #{_lambda_.1} parent=0 // pred_check_branch
    %19 = sbr.rel (0) target = $region13
  $region12: #{_lambda_.1} parent=0 // pred_region
    _
  $region13: #{_lambda_.1} parent=0 // pred_fallthru
    _
  // Predicated region
  $region14: #{_lambda_.1} parent=0 // pred_check
    _
  $region15: #{_lambda_.1} parent=0 // pred_check_branch
    %21 = sbr.rel (0) target = $region17
  $region16: #{_lambda_.1} parent=0 // pred_region
    _
  $region17: #{_lambda_.1} parent=0 // pred_fallthru
    _
  // Predicated region
  $region18: #{_lambda_.1} parent=0 // pred_check
    _
  $region19: #{_lambda_.1} parent=0 // pred_check_branch
    %23 = sbr.rel (0) target = $region21
  $region20: #{_lambda_.1} parent=0 // pred_region
    _
  $region21: #{_lambda_.1} parent=0 // pred_fallthru
    _
  // Predicated region
  $region22: #{_lambda_.1} parent=0 // pred_check
    _
  $region23: #{_lambda_.1} parent=0 // pred_check_branch
    %25 = sbr.rel (0) target = $region25
  $region24: #{_lambda_.1} parent=0 // pred_region
    _
  $region25: #{_lambda_.1} parent=0 // pred_fallthru
    _
  // Predicated region
  $region26: #{_lambda_.1} parent=0 // pred_check
    _
  $region27: #{_lambda_.1} parent=0 // pred_check_branch
    %27 = sbr.rel (0) target = $region29
  $region28: #{_lambda_.1} parent=0 // pred_region
    _
  $region29: #{_lambda_.1} parent=0 // pred_fallthru
    _
  // Predicated region
  $region30: #{_lambda_.1} parent=0 // pred_check
    _
  $region31: #{_lambda_.1} parent=0 // pred_check_branch
    %29 = sbr.rel (0) target = $region33
  $region32: #{_lambda_.1} parent=0 // pred_region
    _
  $region33: #{_lambda_.1} parent=0 // pred_fallthru
    _
  // Predicated region
  $region34: #{_lambda_.1} parent=0 // pred_check
    _
  $region35: #{_lambda_.1} parent=0 // pred_check_branch
    %31 = sbr.rel (0) target = $region37
  $region36: #{_lambda_.1} parent=0 // pred_region
    _
  $region37: #{_lambda_.1} parent=0 // pred_fallthru
    _
  %v32 = vld [vmem:[%s1] sm:$0x3f]
  %v33 = vld [vmem:[%s1 + $0x6] sm:$0x3f]
  %v34 = vld [vmem:[%s1 + $0xc] sm:$0xff]
  %v35 = vld [vmem:[%s1 + $0x14] sm:$0xff]
  %v36 = vld [vmem:[%s2] sm:$0xff]
  %v37 = vld [vmem:[%s2 + $0x8] sm:$0xff]
  %v38 = vld [vmem:[%s0] sm:$0x3f]
  %v39 = vld [vmem:[%s0 + $0x8] sm:$0x3f]
  %v40 = vld [vmem:[%s0 + $0x10] sm:$0x3f]
  %v41 = vld [vmem:[%s0 + $0x18] sm:$0x3f]
  %v42 = vld [vmem:[%s0 + $0x20] sm:$0x3f]
  %v43 = vld [vmem:[%s0 + $0x28] sm:$0x3f]
  %v44 = vld [vmem:[%s0 + $0x30] sm:$0x3f]
  %v45 = vld [vmem:[%s0 + $0x38] sm:$0x3f]
  %v46 = vld [vmem:[%s4] sm:$0xff]
  %v47 = vld [vmem:[%s4 + $0x8] sm:$0xff]
  %v48 = vld [vmem:[%s4 + $0x10] sm:$0xff]
  %v49 = vld [vmem:[%s4 + $0x18] sm:$0xff]
  %v50 = vld [vmem:[%s4 + $0x20] sm:$0xff]
  %v51 = vld [vmem:[%s4 + $0x28] sm:$0xff]
  %v52 = vld [vmem:[%s4 + $0x30] sm:$0xff]
  %v53 = vld [vmem:[%s4 + $0x38] sm:$0xff]
  %v54 = vld [vmem:[%s4 + $0x40] sm:$0xff]
  %v55 = vld [vmem:[%s4 + $0x48] sm:$0xff]
  %v56 = vld [vmem:[%s4 + $0x50] sm:$0xff]
  %v57 = vld [vmem:[%s4 + $0x58] sm:$0xff]
  %v58 = vld [vmem:[%s4 + $0x60] sm:$0xff]
  %v59 = vld [vmem:[%s4 + $0x68] sm:$0xff]
  %v60 = vld [vmem:[%s4 + $0x70] sm:$0xff]
  %v61 = vld [vmem:[%s4 + $0x78] sm:$0xff]
  %v62 = vld [vmem:[%s4 + $0x80] sm:$0xff]
  %v63 = vld [vmem:[%s4 + $0x88] sm:$0xff]
  %v64 = vld [vmem:[%s4 + $0x90] sm:$0xff]
  %v65 = vld [vmem:[%s4 + $0x98] sm:$0xff]
  %v66 = vld [vmem:[%s4 + $0xa0] sm:$0xff]
  %v67 = vld [vmem:[%s4 + $0xa8] sm:$0xff]
  %v68 = vld [vmem:[%s4 + $0xb0] sm:$0xff]
  %v69 = vld [vmem:[%s4 + $0xb8] sm:$0xff]
  %v70 = vld [vmem:[%s4 + $0xc0] sm:$0xff]
  %v71 = vld [vmem:[%s4 + $0xc8] sm:$0xff]
  %v72 = vld [vmem:[%s4 + $0xd0] sm:$0xff]
  %v73 = vld [vmem:[%s4 + $0xd8] sm:$0xff]
  %v74 = vld [vmem:[%s4 + $0xe0] sm:$0xff]
  %v75 = vld [vmem:[%s4 + $0xe8] sm:$0xff]
  %v76 = vld [vmem:[%s4 + $0xf0] sm:$0xff]
  %v77 = vld [vmem:[%s4 + $0xf8] sm:$0xff]
  %v78 = vld [vmem:[%s4 + $0x100] sm:$0xff]
  %v79 = vld [vmem:[%s4 + $0x108] sm:$0xff]
  %v80 = vld [vmem:[%s4 + $0x110] sm:$0xff]
  %v81 = vld [vmem:[%s4 + $0x118] sm:$0xff]
  %v82 = vld [vmem:[%s4 + $0x120] sm:$0xff]
  %v83 = vld [vmem:[%s4 + $0x128] sm:$0xff]
  %v84 = vld [vmem:[%s4 + $0x130] sm:$0xff]
  %v85 = vld [vmem:[%s4 + $0x138] sm:$0xff]
  %v86 = vld [vmem:[%s4 + $0x140] sm:$0xff]
  %v87 = vld [vmem:[%s4 + $0x148] sm:$0xff]
  %v88 = vld [vmem:[%s4 + $0x150] sm:$0xff]
  %v89 = vld [vmem:[%s4 + $0x158] sm:$0xff]
  %v90 = vld [vmem:[%s4 + $0x160] sm:$0xff]
  %v91 = vld [vmem:[%s4 + $0x168] sm:$0xff]
  %v92 = vld [vmem:[%s4 + $0x170] sm:$0xff]
  %v93 = vld [vmem:[%s4 + $0x178] sm:$0xff]
  %v94 = vld [vmem:[%s4 + $0x180] sm:$0xff]
  %v95 = vld [vmem:[%s4 + $0x188] sm:$0xff]
  %v96 = vld [vmem:[%s4 + $0x190] sm:$0xff]
  %v97 = vld [vmem:[%s4 + $0x198] sm:$0xff]
  %v98 = vld [vmem:[%s4 + $0x1a0] sm:$0xff]
  %v99 = vld [vmem:[%s4 + $0x1a8] sm:$0xff]
  %v100 = vld [vmem:[%s4 + $0x1b0] sm:$0xff]
  %v101 = vld [vmem:[%s4 + $0x1b8] sm:$0xff]
  %v102 = vld [vmem:[%s4 + $0x1c0] sm:$0xff]
  %v103 = vld [vmem:[%s4 + $0x1c8] sm:$0xff]
  %v104 = vld [vmem:[%s4 + $0x1d0] sm:$0xff]
  %v105 = vld [vmem:[%s4 + $0x1d8] sm:$0xff]
  %v106 = vld [vmem:[%s4 + $0x1e0] sm:$0xff]
  %v107 = vld [vmem:[%s4 + $0x1e8] sm:$0xff]
  %v108 = vld [vmem:[%s4 + $0x1f0] sm:$0xff]
  %v109 = vld [vmem:[%s4 + $0x1f8] sm:$0xff]
  %v110 = vld [vmem:[%s4 + $0x200] sm:$0xff]
  %v111 = vld [vmem:[%s4 + $0x208] sm:$0xff]
  %v112 = vld [vmem:[%s4 + $0x210] sm:$0xff]
  %v113 = vld [vmem:[%s4 + $0x218] sm:$0xff]
  %v114 = vld [vmem:[%s4 + $0x220] sm:$0xff]
  %v115 = vld [vmem:[%s4 + $0x228] sm:$0xff]
  %v116 = vld [vmem:[%s4 + $0x230] sm:$0xff]
  %v117 = vld [vmem:[%s4 + $0x238] sm:$0xff]
  %v118 = vld [vmem:[%s4 + $0x240] sm:$0xff]
  %v119 = vld [vmem:[%s4 + $0x248] sm:$0xff]
  %v120 = vld [vmem:[%s4 + $0x250] sm:$0xff]
  %v121 = vld [vmem:[%s4 + $0x258] sm:$0xff]
  %v122 = vld [vmem:[%s4 + $0x260] sm:$0xff]
  %v123 = vld [vmem:[%s4 + $0x268] sm:$0xff]
  %v124 = vld [vmem:[%s4 + $0x270] sm:$0xff]
  %v125 = vld [vmem:[%s4 + $0x278] sm:$0xff]
  %v126 = vld [vmem:[%s4 + $0x280] sm:$0xff]
  %v127 = vld [vmem:[%s4 + $0x288] sm:$0xff]
  %v128 = vld [vmem:[%s4 + $0x290] sm:$0xff]
  %v129 = vld [vmem:[%s4 + $0x298] sm:$0xff]
  %v130 = vld [vmem:[%s4 + $0x2a0] sm:$0xff]
  %v131 = vld [vmem:[%s4 + $0x2a8] sm:$0xff]
  %v132 = vld [vmem:[%s4 + $0x2b0] sm:$0xff]
  %v133 = vld [vmem:[%s4 + $0x2b8] sm:$0xff]
  %v134 = vld [vmem:[%s4 + $0x2c0] sm:$0xff]
  %v135 = vld [vmem:[%s4 + $0x2c8] sm:$0xff]
  %v136 = vld [vmem:[%s4 + $0x2d0] sm:$0xff]
  %v137 = vld [vmem:[%s4 + $0x2d8] sm:$0xff]
  %v138 = vld [vmem:[%s4 + $0x2e0] sm:$0xff]
  %v139 = vld [vmem:[%s4 + $0x2e8] sm:$0xff]
  %v140 = vld [vmem:[%s4 + $0x2f0] sm:$0xff]
  %v141 = vld [vmem:[%s4 + $0x2f8] sm:$0xff]
  %v142 = vld [vmem:[%s4 + $0x300] sm:$0xff]
  %v143 = vld [vmem:[%s4 + $0x308] sm:$0xff]
  %v144 = vld [vmem:[%s4 + $0x310] sm:$0xff]
  %v145 = vld [vmem:[%s4 + $0x318] sm:$0xff]
  %v146 = vld [vmem:[%s4 + $0x320] sm:$0xff]
  %v147 = vld [vmem:[%s4 + $0x328] sm:$0xff]
  %v148 = vld [vmem:[%s4 + $0x330] sm:$0xff]
  %v149 = vld [vmem:[%s4 + $0x338] sm:$0xff]
  %v150 = vld [vmem:[%s4 + $0x340] sm:$0xff]
  %v151 = vld [vmem:[%s4 + $0x348] sm:$0xff]
  %v152 = vld [vmem:[%s4 + $0x350] sm:$0xff]
  %v153 = vld [vmem:[%s4 + $0x358] sm:$0xff]
  %v154 = vld [vmem:[%s4 + $0x360] sm:$0xff]
  %v155 = vld [vmem:[%s4 + $0x368] sm:$0xff]
  %v156 = vld [vmem:[%s4 + $0x370] sm:$0xff]
  %v157 = vld [vmem:[%s4 + $0x378] sm:$0xff]
  %v158 = vld [vmem:[%s4 + $0x380] sm:$0xff]
  %v159 = vld [vmem:[%s4 + $0x388] sm:$0xff]
  %v160 = vld [vmem:[%s4 + $0x390] sm:$0xff]
  %v161 = vld [vmem:[%s4 + $0x398] sm:$0xff]
  %v162 = vld [vmem:[%s4 + $0x3a0] sm:$0xff]
  %v163 = vld [vmem:[%s4 + $0x3a8] sm:$0xff]
  %v164 = vld [vmem:[%s4 + $0x3b0] sm:$0xff]
  %v165 = vld [vmem:[%s4 + $0x3b8] sm:$0xff]
  %v166 = vld [vmem:[%s4 + $0x3c0] sm:$0xff]
  %v167 = vld [vmem:[%s4 + $0x3c8] sm:$0xff]
  %v168 = vld [vmem:[%s4 + $0x3d0] sm:$0xff]
  %v169 = vld [vmem:[%s4 + $0x3d8] sm:$0xff]
  %v170 = vld [vmem:[%s4 + $0x3e0] sm:$0xff]
  %v171 = vld [vmem:[%s4 + $0x3e8] sm:$0xff]
  %v172 = vld [vmem:[%s4 + $0x3f0] sm:$0xff]
  %v173 = vld [vmem:[%s4 + $0x3f8] sm:$0xff]
  %174 = vmatprep.subr.mxu0 0.0
  %175 = vmatpush1.msra.mxu0 %v46
  %176 = vmatprep.subr.mxu0 0.0
  %177 = vmatpush1.msra.mxu0 %v47
  %178 = vmatprep.subr.mxu0 0.0
  %179 = vmatpush1.msra.mxu0 %v48
  %180 = vmatprep.subr.mxu0 0.0
  %181 = vmatpush1.msra.mxu0 %v49
  %182 = vmatprep.subr.mxu0 0.0
  %183 = vmatpush1.msra.mxu0 %v50
  %184 = vmatprep.subr.mxu0 0.0
  %185 = vmatpush1.msra.mxu0 %v51
  %186 = vmatprep.subr.mxu0 0.0
  %187 = vmatpush1.msra.mxu0 %v52
  %188 = vmatprep.subr.mxu0 0.0
  %189 = vmatpush1.msra.mxu0 %v53
  %190 = vmatprep.subr.mxu0 0.0
  %191 = vmatpush1.msra.mxu0 %v54
  %192 = vmatprep.subr.mxu0 0.0
  %193 = vmatpush1.msra.mxu0 %v55
  %194 = vmatprep.subr.mxu0 0.0
  %195 = vmatpush1.msra.mxu0 %v56
  %196 = vmatprep.subr.mxu0 0.0
  %197 = vmatpush1.msra.mxu0 %v57
  %198 = vmatprep.subr.mxu0 0.0
  %199 = vmatpush1.msra.mxu0 %v58
  %200 = vmatprep.subr.mxu0 0.0
  %201 = vmatpush1.msra.mxu0 %v59
  %202 = vmatprep.subr.mxu0 0.0
  %203 = vmatpush1.msra.mxu0 %v60
  %204 = vmatprep.subr.mxu0 0.0
  %205 = vmatpush1.msra.mxu0 %v61
  %206 = vmatprep.subr.mxu0 0.0
  %207 = vmatpush1.msra.mxu0 %v62
  %208 = vmatprep.subr.mxu0 0.0
  %209 = vmatpush1.msra.mxu0 %v63
  %210 = vmatprep.subr.mxu0 0.0
  %211 = vmatpush1.msra.mxu0 %v64
  %212 = vmatprep.subr.mxu0 0.0
  %213 = vmatpush1.msra.mxu0 %v65
  %214 = vmatprep.subr.mxu0 0.0
  %215 = vmatpush1.msra.mxu0 %v66
  %216 = vmatprep.subr.mxu0 0.0
  %217 = vmatpush1.msra.mxu0 %v67
  %218 = vmatprep.subr.mxu0 0.0
  %219 = vmatpush1.msra.mxu0 %v68
  %220 = vmatprep.subr.mxu0 0.0
  %221 = vmatpush1.msra.mxu0 %v69
  %222 = vmatprep.subr.mxu0 0.0
  %223 = vmatpush1.msra.mxu0 %v70
  %224 = vmatprep.subr.mxu0 0.0
  %225 = vmatpush1.msra.mxu0 %v71
  %226 = vmatprep.subr.mxu0 0.0
  %227 = vmatpush1.msra.mxu0 %v72
  %228 = vmatprep.subr.mxu0 0.0
  %229 = vmatpush1.msra.mxu0 %v73
  %230 = vmatprep.subr.mxu0 0.0
  %231 = vmatpush1.msra.mxu0 %v74
  %232 = vmatprep.subr.mxu0 0.0
  %233 = vmatpush1.msra.mxu0 %v75
  %234 = vmatprep.subr.mxu0 0.0
  %235 = vmatpush1.msra.mxu0 %v76
  %236 = vmatprep.subr.mxu0 0.0
  %237 = vmatpush1.msra.mxu0 %v77
  %238 = vmatprep.mubr.f32.mxu0 %v39
  %239 = vmatmul.mubr.f32.gmra.mrb[0].mxu0 %v38
  %v240 = vpop.f32.mrb[0].mxu0
  %v241 = vadd.f32 0.0, %v240
  %v242 = vpop.f32.mrb[0].mxu0
  %243 = vdwg.mxu0
  %244 = vmatprep.subr.mxu0 0.0
  %245 = vmatpush1.msra.mxu0 %v78
  %246 = vmatprep.subr.mxu0 0.0
  %247 = vmatpush1.msra.mxu0 %v79
  %248 = vmatprep.subr.mxu0 0.0
  %249 = vmatpush1.msra.mxu0 %v80
  %250 = vmatprep.subr.mxu0 0.0
  %251 = vmatpush1.msra.mxu0 %v81
  %252 = vmatprep.subr.mxu0 0.0
  %253 = vmatpush1.msra.mxu0 %v82
  %254 = vmatprep.subr.mxu0 0.0
  %255 = vmatpush1.msra.mxu0 %v83
  %256 = vmatprep.subr.mxu0 0.0
  %257 = vmatpush1.msra.mxu0 %v84
  %258 = vmatprep.subr.mxu0 0.0
  %259 = vmatpush1.msra.mxu0 %v85
  %260 = vmatprep.subr.mxu0 0.0
  %261 = vmatpush1.msra.mxu0 %v86
  %262 = vmatprep.subr.mxu0 0.0
  %263 = vmatpush1.msra.mxu0 %v87
  %264 = vmatprep.subr.mxu0 0.0
  %265 = vmatpush1.msra.mxu0 %v88
  %266 = vmatprep.subr.mxu0 0.0
  %267 = vmatpush1.msra.mxu0 %v89
  %268 = vmatprep.subr.mxu0 0.0
  %269 = vmatpush1.msra.mxu0 %v90
  %270 = vmatprep.subr.mxu0 0.0
  %271 = vmatpush1.msra.mxu0 %v91
  %272 = vmatprep.subr.mxu0 0.0
  %273 = vmatpush1.msra.mxu0 %v92
  %274 = vmatprep.subr.mxu0 0.0
  %275 = vmatpush1.msra.mxu0 %v93
  %276 = vmatprep.subr.mxu0 0.0
  %277 = vmatpush1.msra.mxu0 %v94
  %278 = vmatprep.subr.mxu0 0.0
  %279 = vmatpush1.msra.mxu0 %v95
  %280 = vmatprep.subr.mxu0 0.0
  %281 = vmatpush1.msra.mxu0 %v96
  %282 = vmatprep.subr.mxu0 0.0
  %283 = vmatpush1.msra.mxu0 %v97
  %284 = vmatprep.subr.mxu0 0.0
  %285 = vmatpush1.msra.mxu0 %v98
  %286 = vmatprep.subr.mxu0 0.0
  %287 = vmatpush1.msra.mxu0 %v99
  %288 = vmatprep.subr.mxu0 0.0
  %289 = vmatpush1.msra.mxu0 %v100
  %290 = vmatprep.subr.mxu0 0.0
  %291 = vmatpush1.msra.mxu0 %v101
  %292 = vmatprep.subr.mxu0 0.0
  %293 = vmatpush1.msra.mxu0 %v102
  %294 = vmatprep.subr.mxu0 0.0
  %295 = vmatpush1.msra.mxu0 %v103
  %296 = vmatprep.subr.mxu0 0.0
  %297 = vmatpush1.msra.mxu0 %v104
  %298 = vmatprep.subr.mxu0 0.0
  %299 = vmatpush1.msra.mxu0 %v105
  %300 = vmatprep.subr.mxu0 0.0
  %301 = vmatpush1.msra.mxu0 %v106
  %302 = vmatprep.subr.mxu0 0.0
  %303 = vmatpush1.msra.mxu0 %v107
  %304 = vmatprep.subr.mxu0 0.0
  %305 = vmatpush1.msra.mxu0 %v108
  %306 = vmatprep.subr.mxu0 0.0
  %307 = vmatpush1.msra.mxu0 %v109
  %308 = vmatprep.mubr.f32.mxu0 %v41
  %309 = vmatmul.mubr.f32.gmra.mrb[0].mxu0 %v40
  %v310 = vpop.f32.mrb[0].mxu0
  %v311 = vadd.f32 %v241, %v310
  %v312 = vpop.f32.mrb[0].mxu0
  %313 = vdwg.mxu0
  %314 = vmatprep.subr.mxu0 0.0
  %315 = vmatpush1.msra.mxu0 %v110
  %316 = vmatprep.subr.mxu0 0.0
  %317 = vmatpush1.msra.mxu0 %v111
  %318 = vmatprep.subr.mxu0 0.0
  %319 = vmatpush1.msra.mxu0 %v112
  %320 = vmatprep.subr.mxu0 0.0
  %321 = vmatpush1.msra.mxu0 %v113
  %322 = vmatprep.subr.mxu0 0.0
  %323 = vmatpush1.msra.mxu0 %v114
  %324 = vmatprep.subr.mxu0 0.0
  %325 = vmatpush1.msra.mxu0 %v115
  %326 = vmatprep.subr.mxu0 0.0
  %327 = vmatpush1.msra.mxu0 %v116
  %328 = vmatprep.subr.mxu0 0.0
  %329 = vmatpush1.msra.mxu0 %v117
  %330 = vmatprep.subr.mxu0 0.0
  %331 = vmatpush1.msra.mxu0 %v118
  %332 = vmatprep.subr.mxu0 0.0
  %333 = vmatpush1.msra.mxu0 %v119
  %334 = vmatprep.subr.mxu0 0.0
  %335 = vmatpush1.msra.mxu0 %v120
  %336 = vmatprep.subr.mxu0 0.0
  %337 = vmatpush1.msra.mxu0 %v121
  %338 = vmatprep.subr.mxu0 0.0
  %339 = vmatpush1.msra.mxu0 %v122
  %340 = vmatprep.subr.mxu0 0.0
  %341 = vmatpush1.msra.mxu0 %v123
  %342 = vmatprep.subr.mxu0 0.0
  %343 = vmatpush1.msra.mxu0 %v124
  %344 = vmatprep.subr.mxu0 0.0
  %345 = vmatpush1.msra.mxu0 %v125
  %346 = vmatprep.subr.mxu0 0.0
  %347 = vmatpush1.msra.mxu0 %v126
  %348 = vmatprep.subr.mxu0 0.0
  %349 = vmatpush1.msra.mxu0 %v127
  %350 = vmatprep.subr.mxu0 0.0
  %351 = vmatpush1.msra.mxu0 %v128
  %352 = vmatprep.subr.mxu0 0.0
  %353 = vmatpush1.msra.mxu0 %v129
  %354 = vmatprep.subr.mxu0 0.0
  %355 = vmatpush1.msra.mxu0 %v130
  %356 = vmatprep.subr.mxu0 0.0
  %357 = vmatpush1.msra.mxu0 %v131
  %358 = vmatprep.subr.mxu0 0.0
  %359 = vmatpush1.msra.mxu0 %v132
  %360 = vmatprep.subr.mxu0 0.0
  %361 = vmatpush1.msra.mxu0 %v133
  %362 = vmatprep.subr.mxu0 0.0
  %363 = vmatpush1.msra.mxu0 %v134
  %364 = vmatprep.subr.mxu0 0.0
  %365 = vmatpush1.msra.mxu0 %v135
  %366 = vmatprep.subr.mxu0 0.0
  %367 = vmatpush1.msra.mxu0 %v136
  %368 = vmatprep.subr.mxu0 0.0
  %369 = vmatpush1.msra.mxu0 %v137
  %370 = vmatprep.subr.mxu0 0.0
  %371 = vmatpush1.msra.mxu0 %v138
  %372 = vmatprep.subr.mxu0 0.0
  %373 = vmatpush1.msra.mxu0 %v139
  %374 = vmatprep.subr.mxu0 0.0
  %375 = vmatpush1.msra.mxu0 %v140
  %376 = vmatprep.subr.mxu0 0.0
  %377 = vmatpush1.msra.mxu0 %v141
  %378 = vmatprep.mubr.f32.mxu0 %v43
  %379 = vmatmul.mubr.f32.gmra.mrb[0].mxu0 %v42
  %v380 = vpop.f32.mrb[0].mxu0
  %v381 = vadd.f32 %v311, %v380
  %v382 = vpop.f32.mrb[0].mxu0
  %383 = vdwg.mxu0
  %384 = vmatprep.subr.mxu0 0.0
  %385 = vmatpush1.msra.mxu0 %v142
  %386 = vmatprep.subr.mxu0 0.0
  %387 = vmatpush1.msra.mxu0 %v143
  %388 = vmatprep.subr.mxu0 0.0
  %389 = vmatpush1.msra.mxu0 %v144
  %390 = vmatprep.subr.mxu0 0.0
  %391 = vmatpush1.msra.mxu0 %v145
  %392 = vmatprep.subr.mxu0 0.0
  %393 = vmatpush1.msra.mxu0 %v146
  %394 = vmatprep.subr.mxu0 0.0
  %395 = vmatpush1.msra.mxu0 %v147
  %396 = vmatprep.subr.mxu0 0.0
  %397 = vmatpush1.msra.mxu0 %v148
  %398 = vmatprep.subr.mxu0 0.0
  %399 = vmatpush1.msra.mxu0 %v149
  %400 = vmatprep.subr.mxu0 0.0
  %401 = vmatpush1.msra.mxu0 %v150
  %402 = vmatprep.subr.mxu0 0.0
  %403 = vmatpush1.msra.mxu0 %v151
  %404 = vmatprep.subr.mxu0 0.0
  %405 = vmatpush1.msra.mxu0 %v152
  %406 = vmatprep.subr.mxu0 0.0
  %407 = vmatpush1.msra.mxu0 %v153
  %408 = vmatprep.subr.mxu0 0.0
  %409 = vmatpush1.msra.mxu0 %v154
  %410 = vmatprep.subr.mxu0 0.0
  %411 = vmatpush1.msra.mxu0 %v155
  %412 = vmatprep.subr.mxu0 0.0
  %413 = vmatpush1.msra.mxu0 %v156
  %414 = vmatprep.subr.mxu0 0.0
  %415 = vmatpush1.msra.mxu0 %v157
  %416 = vmatprep.subr.mxu0 0.0
  %417 = vmatpush1.msra.mxu0 %v158
  %418 = vmatprep.subr.mxu0 0.0
  %419 = vmatpush1.msra.mxu0 %v159
  %420 = vmatprep.subr.mxu0 0.0
  %421 = vmatpush1.msra.mxu0 %v160
  %422 = vmatprep.subr.mxu0 0.0
  %423 = vmatpush1.msra.mxu0 %v161
  %424 = vmatprep.subr.mxu0 0.0
  %425 = vmatpush1.msra.mxu0 %v162
  %426 = vmatprep.subr.mxu0 0.0
  %427 = vmatpush1.msra.mxu0 %v163
  %428 = vmatprep.subr.mxu0 0.0
  %429 = vmatpush1.msra.mxu0 %v164
  %430 = vmatprep.subr.mxu0 0.0
  %431 = vmatpush1.msra.mxu0 %v165
  %432 = vmatprep.subr.mxu0 0.0
  %433 = vmatpush1.msra.mxu0 %v166
  %434 = vmatprep.subr.mxu0 0.0
  %435 = vmatpush1.msra.mxu0 %v167
  %436 = vmatprep.subr.mxu0 0.0
  %437 = vmatpush1.msra.mxu0 %v168
  %438 = vmatprep.subr.mxu0 0.0
  %439 = vmatpush1.msra.mxu0 %v169
  %440 = vmatprep.subr.mxu0 0.0
  %441 = vmatpush1.msra.mxu0 %v170
  %442 = vmatprep.subr.mxu0 0.0
  %443 = vmatpush1.msra.mxu0 %v171
  %444 = vmatprep.subr.mxu0 0.0
  %445 = vmatpush1.msra.mxu0 %v172
  %446 = vmatprep.subr.mxu0 0.0
  %447 = vmatpush1.msra.mxu0 %v173
  %448 = vmatprep.mubr.f32.mxu0 %v45
  %449 = vmatmul.mubr.f32.gmra.mrb[0].mxu0 %v44
  %v450 = vpop.f32.mrb[0].mxu0
  %v451 = vadd.f32 %v381, %v450
  %v452 = vpop.f32.mrb[0].mxu0
  %453 = vdwg.mxu0
  %v454 = vld [vmem:[%s3 + $0x18] sm:$0x1]
  %v455 = vlaneseq
  %v456 = vshrl.u32 %v455, 7
  %v457 = vsub.s32 0, %v456
  %v458 = vrot.slane %v454, %v457
  %v460 = vrot.slane %v451, 2
  %vm462 = vcmask 1045504
  %v463 = vsel %vm462, %v458, %v460
  %v464 = vld [vmem:[%s5] sm:$0xff]
  %v465 = vld [vmem:[%s5 + $0x8] sm:$0xff]
  %v466 = vld [vmem:[%s5 + $0x10] sm:$0xff]
  %v467 = vld [vmem:[%s5 + $0x18] sm:$0xff]
  %v468 = vld [vmem:[%s5 + $0x20] sm:$0xff]
  %v469 = vld [vmem:[%s5 + $0x28] sm:$0xff]
  %v470 = vld [vmem:[%s5 + $0x30] sm:$0xff]
  %v471 = vld [vmem:[%s5 + $0x38] sm:$0xff]
  %v472 = vld [vmem:[%s3] sm:$0x1]
  %v473 = vld [vmem:[%s3 + $0x1] sm:$0x1]
  %vm474 = vcmask 261120
  %v475 = vsel %vm474, %v463, 0.0
  %476 = vadd.xlane.f32.xlu0 %v475
  %v477 = vpop.xlane.xlu0 %476
  %vm478 = vcmask 257024
  %v479 = vsel %vm478, %v460, 0.0
  %480 = vadd.xlane.f32.xlu0 %v479
  %v481 = vpop.xlane.xlu0 %480
  %v482 = vrcp.pop 32.0
  %v483 = vmul.f32 %v477, %v482
  %v484 = vmul.f32 %v481, %v482
  %v485 = vsub.f32 %v463, %v483
  %v486 = vsub.f32 %v460, %v484
  %v487 = vmul.f32 %v485, %v485
  %v488 = vmul.f32 %v486, %v486
  %v489 = vsel %vm474, %v487, 0.0
  %490 = vadd.xlane.f32.xlu0 %v489
  %v491 = vpop.xlane.xlu0 %490
  %v492 = vsel %vm478, %v488, 0.0
  %493 = vadd.xlane.f32.xlu0 %v492
  %v494 = vpop.xlane.xlu0 %493
  %v495 = vmul.f32 %v491, %v482
  %v496 = vmul.f32 %v494, %v482
  %v497 = vadd.f32 %v495, 1e-05
  %v498 = vadd.f32 %v496, 1e-05
  %v499 = vrsqrt.pop %v497
  %v500 = vrsqrt.pop %v498
  %v501 = vmul.f32 %v485, %v499
  %v502 = vmul.f32 %v486, %v500
  %v503 = vlaneseq
  %v504 = vshrl.u32 %v503, 7
  %v505 = vsub.s32 0, %v504
  %v506 = vrot.slane %v472, %v505
  %v507 = vmul.f32 %v501, %v506
  %v508 = vmul.f32 %v502, %v506
  %v509 = vlaneseq
  %v510 = vshrl.u32 %v509, 7
  %v511 = vsub.s32 0, %v510
  %v512 = vrot.slane %v473, %v511
  %v513 = vadd.f32 %v507, %v512
  %v514 = vadd.f32 %v508, %v512
  %v515 = vld [vmem:[%s3 + $0x2] sm:$0x1]
  %v516 = vlaneseq
  %v517 = vshrl.u32 %v516, 7
  %v518 = vsub.s32 0, %v517
  %v519 = vrot.slane %v515, %v518
  %v521 = vsel %vm474, %v513, 0
  %v524 = vsel %vm474, %v514, 0
  %526 = vmatprep.subr.mxu0 0.0
  %527 = vmatpush1.msra.mxu0 %v464
  %528 = vmatprep.subr.mxu0 0.0
  %529 = vmatpush1.msra.mxu0 %v466
  %530 = vmatprep.subr.mxu0 0.0
  %531 = vmatpush1.msra.mxu0 %v468
  %532 = vmatprep.subr.mxu0 0.0
  %533 = vmatpush1.msra.mxu0 %v470
  %534 = vmatprep.subr.mxu0 0.0
  %535 = vmatpush1.msra.mxu0 0.0
  %536 = vmatprep.subr.mxu0 0.0
  %537 = vmatpush1.msra.mxu0 0.0
  %538 = vmatprep.subr.mxu0 0.0
  %539 = vmatpush1.msra.mxu0 0.0
  %540 = vmatprep.subr.mxu0 0.0
  %541 = vmatpush1.msra.mxu0 0.0
  %542 = vmatprep.subr.mxu0 0.0
  %543 = vmatpush1.msra.mxu0 0.0
  %544 = vmatprep.subr.mxu0 0.0
  %545 = vmatpush1.msra.mxu0 0.0
  %546 = vmatprep.subr.mxu0 0.0
  %547 = vmatpush1.msra.mxu0 0.0
  %548 = vmatprep.subr.mxu0 0.0
  %549 = vmatpush1.msra.mxu0 0.0
  %550 = vmatprep.subr.mxu0 0.0
  %551 = vmatpush1.msra.mxu0 0.0
  %552 = vmatprep.subr.mxu0 0.0
  %553 = vmatpush1.msra.mxu0 0.0
  %554 = vmatprep.subr.mxu0 0.0
  %555 = vmatpush1.msra.mxu0 0.0
  %556 = vmatprep.subr.mxu0 0.0
  %557 = vmatpush1.msra.mxu0 0.0
  %558 = vmatprep.subr.mxu0 0.0
  %559 = vmatpush1.msra.mxu0 0.0
  %560 = vmatprep.subr.mxu0 0.0
  %561 = vmatpush1.msra.mxu0 0.0
  %562 = vmatprep.subr.mxu0 0.0
  %563 = vmatpush1.msra.mxu0 0.0
  %564 = vmatprep.subr.mxu0 0.0
  %565 = vmatpush1.msra.mxu0 0.0
  %566 = vmatprep.subr.mxu0 0.0
  %567 = vmatpush1.msra.mxu0 0.0
  %568 = vmatprep.subr.mxu0 0.0
  %569 = vmatpush1.msra.mxu0 0.0
  %570 = vmatprep.subr.mxu0 0.0
  %571 = vmatpush1.msra.mxu0 0.0
  %572 = vmatprep.subr.mxu0 0.0
  %573 = vmatpush1.msra.mxu0 0.0
  %574 = vmatprep.subr.mxu0 0.0
  %575 = vmatpush1.msra.mxu0 0.0
  %576 = vmatprep.subr.mxu0 0.0
  %577 = vmatpush1.msra.mxu0 0.0
  %578 = vmatprep.subr.mxu0 0.0
  %579 = vmatpush1.msra.mxu0 0.0
  %580 = vmatprep.subr.mxu0 0.0
  %581 = vmatpush1.msra.mxu0 0.0
  %582 = vmatprep.subr.mxu0 0.0
  %583 = vmatpush1.msra.mxu0 0.0
  %584 = vmatprep.subr.mxu0 0.0
  %585 = vmatpush1.msra.mxu0 0.0
  %586 = vmatprep.subr.mxu0 0.0
  %587 = vmatpush1.msra.mxu0 0.0
  %588 = vmatprep.subr.mxu0 0.0
  %589 = vmatpush1.msra.mxu0 0.0
  %590 = vmatprep.mubr.f32.mxu0 0.0
  %591 = vmatmul.mubr.f32.gmra.mrb[0].mxu0 %v521
  %v592 = vpop.f32.mrb[0].mxu0
  %v593 = vadd.f32 %v519, %v592
  %v594 = vpop.f32.mrb[0].mxu0
  %595 = vmatprep.mubr.f32.mxu0 0.0
  %596 = vmatmul.mubr.f32.gmra.mrb[0].mxu0 %v524
  %v597 = vpop.f32.mrb[0].mxu0
  %v598 = vadd.f32 %v519, %v597
  %v599 = vpop.f32.mrb[0].mxu0
  %600 = vdwg.mxu0
  %602 = vrot.lane.b32.xlu0 %v593, 96
  %v603 = vpop.permute.xlu0 %602
  %v605 = vmul.f32 %v593, %v603
  %vm606 = vcmask 259072
  %v607 = vsel %vm606, %v605, 0.0
  %608 = vadd.xlane.f32.xlu0 %v607
  %v609 = vpop.xlane.xlu0 %608
  %v610 = vmul.f32 %v609, 0.17677669
  %vm612 = vcmask 1041408
  %v613 = vrot.slane %v593, 6
  %v614 = vrot.slane %v598, 6
  %v615 = vsel %vm612, %v613, %v614
  %616 = vrot.lane.b32.xlu0 %v615, 96
  %v617 = vpop.permute.xlu0 %616
  %v619 = vmul.f32 %v593, %v617
  %v620 = vsel %vm606, %v619, 0.0
  %621 = vadd.xlane.f32.xlu0 %v620
  %v622 = vpop.xlane.xlu0 %621
  %v623 = vmul.f32 %v622, 0.17677669
  %v624 = vmax.f32 %v610, %v623
  %v625 = vsub.f32 %v610, %v624
  %v626 = vmul.f32 %v625, 1.442695
  %v627 = vpow.pop %v626
  %v628 = vsub.f32 %v623, %v624
  %v629 = vmul.f32 %v628, 1.442695
  %v630 = vpow.pop %v629
  %v631 = vmul.f32 %v627, %v593
  %632 = vrot.lane.b32.xlu0 %v615, 64
  %v633 = vpop.permute.xlu0 %632
  %v635 = vmul.f32 %v630, %v633
  %637 = vrot.lane.b32.xlu0 %v635, 64
  %v638 = vpop.permute.xlu0 %637
  %v640 = vadd.f32 %v631, %v638
  %v641 = vadd.f32 %v627, %v630
  %v642 = vrcp.pop %v641
  %v643 = vmul.f32 %v640, %v642
  %v644 = vrot.slane %v593, 2
  %645 = vrot.lane.b32.xlu0 %v644, 96
  %v646 = vpop.permute.xlu0 %645
  %v648 = vmul.f32 %v593, %v646
  %v649 = vmul.f32 %v598, %v646
  %vm650 = vcmask 261126
  %v651 = vsel %vm650, %v648, 0.0
  %652 = vadd.xlane.f32.xlu0 %v651
  %v653 = vpop.xlane.xlu0 %652
  %v654 = vsel %vm478, %v649, 0.0
  %655 = vadd.xlane.f32.xlu0 %v654
  %v656 = vpop.xlane.xlu0 %655
  %v657 = vmul.f32 %v653, 0.17677669
  %v658 = vmul.f32 %v656, 0.17677669
  %659 = vrot.lane.b32.xlu0 %v598, 96
  %v660 = vpop.permute.xlu0 %659
  %v662 = vmul.f32 %v598, %v660
  %v663 = vsel %vm650, %v605, 0.0
  %664 = vadd.xlane.f32.xlu0 %v663
  %v665 = vpop.xlane.xlu0 %664
  %v666 = vsel %vm478, %v662, 0.0
  %667 = vadd.xlane.f32.xlu0 %v666
  %v668 = vpop.xlane.xlu0 %667
  %v669 = vmul.f32 %v665, 0.17677669
  %v670 = vmul.f32 %v668, 0.17677669
  %v671 = vmax.f32 %v657, %v669
  %v672 = vmax.f32 %v658, %v670
  %v673 = vsub.f32 %v657, %v671
  %v674 = vsub.f32 %v658, %v672
  %v675 = vmul.f32 %v673, 1.442695
  %v676 = vpow.pop %v675
  %v677 = vmul.f32 %v674, 1.442695
  %v678 = vpow.pop %v677
  %v679 = vsub.f32 %v669, %v671
  %v680 = vsub.f32 %v670, %v672
  %v681 = vmul.f32 %v679, 1.442695
  %v682 = vpow.pop %v681
  %v683 = vmul.f32 %v680, 1.442695
  %v684 = vpow.pop %v683
  %685 = vrot.lane.b32.xlu0 %v644, 64
  %v686 = vpop.permute.xlu0 %685
  %v688 = vmul.f32 %v676, %v686
  %v689 = vmul.f32 %v678, %v686
  %v690 = vmul.f32 %v682, %v593
  %v691 = vmul.f32 %v684, %v598
  %694 = vrot.lane.b32.xlu0 %v690, 64
  %v695 = vpop.permute.xlu0 %694
  %696 = vrot.lane.b32.xlu0 %v691, 64
  %v697 = vpop.permute.xlu0 %696
  %v700 = vadd.f32 %v688, %v695
  %v701 = vadd.f32 %v689, %v697
  %v702 = vadd.f32 %v676, %v682
  %v703 = vadd.f32 %v678, %v684
  %v704 = vrcp.pop %v702
  %v705 = vmul.f32 %v700, %v704
  %v706 = vrcp.pop %v703
  %v707 = vmul.f32 %v701, %v706
  %710 = vrot.lane.b32.xlu0 %v705, 64
  %v711 = vpop.permute.xlu0 %710
  %712 = vrot.lane.b32.xlu0 %v707, 64
  %v713 = vpop.permute.xlu0 %712
  %v715 = vsel %vm462, %v643, %v711
  %717 = vrot.lane.b32.xlu0 %v715, 64
  %v718 = vpop.permute.xlu0 %717
  %719 = vrot.lane.b32.xlu0 %v713, 64
  %v720 = vpop.permute.xlu0 %719
  %725 = vrot.lane.b32.xlu0 %v464, 32
  %v726 = vpop.permute.xlu0 %725
  %727 = vrot.lane.b32.xlu0 %v466, 32
  %v728 = vpop.permute.xlu0 %727
  %729 = vrot.lane.b32.xlu0 %v468, 32
  %v730 = vpop.permute.xlu0 %729
  %731 = vrot.lane.b32.xlu0 %v470, 32
  %v732 = vpop.permute.xlu0 %731
  %v737 = vsel %vm474, %v718, 0
  %v739 = vsel %vm474, %v720, 0
  %741 = vmatprep.subr.mxu0 0.0
  %742 = vmatpush1.msra.mxu0 %v726
  %743 = vmatprep.subr.mxu0 0.0
  %744 = vmatpush1.msra.mxu0 %v728
  %745 = vmatprep.subr.mxu0 0.0
  %746 = vmatpush1.msra.mxu0 %v730
  %747 = vmatprep.subr.mxu0 0.0
  %748 = vmatpush1.msra.mxu0 %v732
  %749 = vmatprep.subr.mxu0 0.0
  %750 = vmatpush1.msra.mxu0 0.0
  %751 = vmatprep.subr.mxu0 0.0
  %752 = vmatpush1.msra.mxu0 0.0
  %753 = vmatprep.subr.mxu0 0.0
  %754 = vmatpush1.msra.mxu0 0.0
  %755 = vmatprep.subr.mxu0 0.0
  %756 = vmatpush1.msra.mxu0 0.0
  %757 = vmatprep.subr.mxu0 0.0
  %758 = vmatpush1.msra.mxu0 0.0
  %759 = vmatprep.subr.mxu0 0.0
  %760 = vmatpush1.msra.mxu0 0.0
  %761 = vmatprep.subr.mxu0 0.0
  %762 = vmatpush1.msra.mxu0 0.0
  %763 = vmatprep.subr.mxu0 0.0
  %764 = vmatpush1.msra.mxu0 0.0
  %765 = vmatprep.subr.mxu0 0.0
  %766 = vmatpush1.msra.mxu0 0.0
  %767 = vmatprep.subr.mxu0 0.0
  %768 = vmatpush1.msra.mxu0 0.0
  %769 = vmatprep.subr.mxu0 0.0
  %770 = vmatpush1.msra.mxu0 0.0
  %771 = vmatprep.subr.mxu0 0.0
  %772 = vmatpush1.msra.mxu0 0.0
  %773 = vmatprep.subr.mxu0 0.0
  %774 = vmatpush1.msra.mxu0 0.0
  %775 = vmatprep.subr.mxu0 0.0
  %776 = vmatpush1.msra.mxu0 0.0
  %777 = vmatprep.subr.mxu0 0.0
  %778 = vmatpush1.msra.mxu0 0.0
  %779 = vmatprep.subr.mxu0 0.0
  %780 = vmatpush1.msra.mxu0 0.0
  %781 = vmatprep.subr.mxu0 0.0
  %782 = vmatpush1.msra.mxu0 0.0
  %783 = vmatprep.subr.mxu0 0.0
  %784 = vmatpush1.msra.mxu0 0.0
  %785 = vmatprep.subr.mxu0 0.0
  %786 = vmatpush1.msra.mxu0 0.0
  %787 = vmatprep.subr.mxu0 0.0
  %788 = vmatpush1.msra.mxu0 0.0
  %789 = vmatprep.subr.mxu0 0.0
  %790 = vmatpush1.msra.mxu0 0.0
  %791 = vmatprep.subr.mxu0 0.0
  %792 = vmatpush1.msra.mxu0 0.0
  %793 = vmatprep.subr.mxu0 0.0
  %794 = vmatpush1.msra.mxu0 0.0
  %795 = vmatprep.subr.mxu0 0.0
  %796 = vmatpush1.msra.mxu0 0.0
  %797 = vmatprep.subr.mxu0 0.0
  %798 = vmatpush1.msra.mxu0 0.0
  %799 = vmatprep.subr.mxu0 0.0
  %800 = vmatpush1.msra.mxu0 0.0
  %801 = vmatprep.subr.mxu0 0.0
  %802 = vmatpush1.msra.mxu0 0.0
  %803 = vmatprep.subr.mxu0 0.0
  %804 = vmatpush1.msra.mxu0 0.0
  %805 = vmatprep.mubr.f32.mxu0 0.0
  %806 = vmatmul.mubr.f32.gmra.mrb[0].mxu0 %v737
  %v807 = vpop.f32.mrb[0].mxu0
  %v808 = vadd.f32 0.0, %v807
  %v809 = vpop.f32.mrb[0].mxu0
  %810 = vmatprep.mubr.f32.mxu0 0.0
  %811 = vmatmul.mubr.f32.gmra.mrb[0].mxu0 %v739
  %v812 = vpop.f32.mrb[0].mxu0
  %v813 = vadd.f32 0.0, %v812
  %v814 = vpop.f32.mrb[0].mxu0
  %815 = vdwg.mxu0
  %v816 = vadd.f32 %v463, %v808
  %v817 = vadd.f32 %v460, %v813
  %v818 = vld [vmem:[%s3 + $0x3] sm:$0x1]
  %v819 = vlaneseq
  %v820 = vshrl.u32 %v819, 7
  %v821 = vsub.s32 0, %v820
  %v822 = vrot.slane %v818, %v821
  %v823 = vadd.f32 %v816, %v822
  %v824 = vadd.f32 %v817, %v822
  %v825 = vld [vmem:[%s3 + $0x4] sm:$0x1]
  %v826 = vld [vmem:[%s3 + $0x5] sm:$0x1]
  %v827 = vsel %vm474, %v823, 0.0
  %828 = vadd.xlane.f32.xlu0 %v827
  %v829 = vpop.xlane.xlu0 %828
  %v830 = vsel %vm478, %v824, 0.0
  %831 = vadd.xlane.f32.xlu0 %v830
  %v832 = vpop.xlane.xlu0 %831
  %v833 = vmul.f32 %v829, %v482
  %v834 = vmul.f32 %v832, %v482
  %v835 = vsub.f32 %v823, %v833
  %v836 = vsub.f32 %v824, %v834
  %v837 = vmul.f32 %v835, %v835
  %v838 = vmul.f32 %v836, %v836
  %v839 = vsel %vm474, %v837, 0.0
  %840 = vadd.xlane.f32.xlu0 %v839
  %v841 = vpop.xlane.xlu0 %840
  %v842 = vsel %vm478, %v838, 0.0
  %843 = vadd.xlane.f32.xlu0 %v842
  %v844 = vpop.xlane.xlu0 %843
  %v845 = vmul.f32 %v841, %v482
  %v846 = vmul.f32 %v844, %v482
  %v847 = vadd.f32 %v845, 1e-05
  %v848 = vadd.f32 %v846, 1e-05
  %v849 = vrsqrt.pop %v847
  %v850 = vrsqrt.pop %v848
  %v851 = vmul.f32 %v835, %v849
  %v852 = vmul.f32 %v836, %v850
  %v853 = vlaneseq
  %v854 = vshrl.u32 %v853, 7
  %v855 = vsub.s32 0, %v854
  %v856 = vrot.slane %v825, %v855
  %v857 = vmul.f32 %v851, %v856
  %v858 = vmul.f32 %v852, %v856
  %v859 = vlaneseq
  %v860 = vshrl.u32 %v859, 7
  %v861 = vsub.s32 0, %v860
  %v862 = vrot.slane %v826, %v861
  %v863 = vadd.f32 %v857, %v862
  %v864 = vadd.f32 %v858, %v862
  %v865 = vld [vmem:[%s3 + $0x6] sm:$0x1]
  %v866 = vlaneseq
  %v867 = vshrl.u32 %v866, 7
  %v868 = vsub.s32 0, %v867
  %v869 = vrot.slane %v865, %v868
  %v871 = vsel %vm474, %v863, 0
  %v874 = vsel %vm474, %v864, 0
  %876 = vmatprep.subr.mxu0 0.0
  %877 = vmatpush1.msra.mxu0 %v465
  %878 = vmatprep.subr.mxu0 0.0
  %879 = vmatpush1.msra.mxu0 %v467
  %880 = vmatprep.subr.mxu0 0.0
  %881 = vmatpush1.msra.mxu0 %v469
  %882 = vmatprep.subr.mxu0 0.0
  %883 = vmatpush1.msra.mxu0 %v471
  %884 = vmatprep.subr.mxu0 0.0
  %885 = vmatpush1.msra.mxu0 0.0
  %886 = vmatprep.subr.mxu0 0.0
  %887 = vmatpush1.msra.mxu0 0.0
  %888 = vmatprep.subr.mxu0 0.0
  %889 = vmatpush1.msra.mxu0 0.0
  %890 = vmatprep.subr.mxu0 0.0
  %891 = vmatpush1.msra.mxu0 0.0
  %892 = vmatprep.subr.mxu0 0.0
  %893 = vmatpush1.msra.mxu0 0.0
  %894 = vmatprep.subr.mxu0 0.0
  %895 = vmatpush1.msra.mxu0 0.0
  %896 = vmatprep.subr.mxu0 0.0
  %897 = vmatpush1.msra.mxu0 0.0
  %898 = vmatprep.subr.mxu0 0.0
  %899 = vmatpush1.msra.mxu0 0.0
  %900 = vmatprep.subr.mxu0 0.0
  %901 = vmatpush1.msra.mxu0 0.0
  %902 = vmatprep.subr.mxu0 0.0
  %903 = vmatpush1.msra.mxu0 0.0
  %904 = vmatprep.subr.mxu0 0.0
  %905 = vmatpush1.msra.mxu0 0.0
  %906 = vmatprep.subr.mxu0 0.0
  %907 = vmatpush1.msra.mxu0 0.0
  %908 = vmatprep.subr.mxu0 0.0
  %909 = vmatpush1.msra.mxu0 0.0
  %910 = vmatprep.subr.mxu0 0.0
  %911 = vmatpush1.msra.mxu0 0.0
  %912 = vmatprep.subr.mxu0 0.0
  %913 = vmatpush1.msra.mxu0 0.0
  %914 = vmatprep.subr.mxu0 0.0
  %915 = vmatpush1.msra.mxu0 0.0
  %916 = vmatprep.subr.mxu0 0.0
  %917 = vmatpush1.msra.mxu0 0.0
  %918 = vmatprep.subr.mxu0 0.0
  %919 = vmatpush1.msra.mxu0 0.0
  %920 = vmatprep.subr.mxu0 0.0
  %921 = vmatpush1.msra.mxu0 0.0
  %922 = vmatprep.subr.mxu0 0.0
  %923 = vmatpush1.msra.mxu0 0.0
  %924 = vmatprep.subr.mxu0 0.0
  %925 = vmatpush1.msra.mxu0 0.0
  %926 = vmatprep.subr.mxu0 0.0
  %927 = vmatpush1.msra.mxu0 0.0
  %928 = vmatprep.subr.mxu0 0.0
  %929 = vmatpush1.msra.mxu0 0.0
  %930 = vmatprep.subr.mxu0 0.0
  %931 = vmatpush1.msra.mxu0 0.0
  %932 = vmatprep.subr.mxu0 0.0
  %933 = vmatpush1.msra.mxu0 0.0
  %934 = vmatprep.subr.mxu0 0.0
  %935 = vmatpush1.msra.mxu0 0.0
  %936 = vmatprep.subr.mxu0 0.0
  %937 = vmatpush1.msra.mxu0 0.0
  %938 = vmatprep.subr.mxu0 0.0
  %939 = vmatpush1.msra.mxu0 0.0
  %940 = vmatprep.mubr.f32.mxu0 0.0
  %941 = vmatmul.mubr.f32.gmra.mrb[0].mxu0 %v871
  %v942 = vpop.f32.mrb[0].mxu0
  %v943 = vadd.f32 %v869, %v942
  %v944 = vpop.f32.mrb[0].mxu0
  %945 = vmatprep.mubr.f32.mxu0 0.0
  %946 = vmatmul.mubr.f32.gmra.mrb[0].mxu0 %v874
  %v947 = vpop.f32.mrb[0].mxu0
  %v948 = vadd.f32 %v869, %v947
  %v949 = vpop.f32.mrb[0].mxu0
  %950 = vdwg.mxu0
  %v951 = vmax.f32 %v943, 0.0
  %v952 = vmax.f32 %v948, 0.0
  %957 = vrot.lane.b32.xlu0 %v465, 96
  %v958 = vpop.permute.xlu0 %957
  %959 = vrot.lane.b32.xlu0 %v467, 96
  %v960 = vpop.permute.xlu0 %959
  %961 = vrot.lane.b32.xlu0 %v469, 96
  %v962 = vpop.permute.xlu0 %961
  %963 = vrot.lane.b32.xlu0 %v471, 96
  %v964 = vpop.permute.xlu0 %963
  %v970 = vsel %vm474, %v951, 0
  %v973 = vsel %vm474, %v952, 0
  %975 = vmatprep.subr.mxu0 0.0
  %976 = vmatpush1.msra.mxu0 %v958
  %977 = vmatprep.subr.mxu0 0.0
  %978 = vmatpush1.msra.mxu0 %v960
  %979 = vmatprep.subr.mxu0 0.0
  %980 = vmatpush1.msra.mxu0 %v962
  %981 = vmatprep.subr.mxu0 0.0
  %982 = vmatpush1.msra.mxu0 %v964
  %983 = vmatprep.subr.mxu0 0.0
  %984 = vmatpush1.msra.mxu0 0.0
  %985 = vmatprep.subr.mxu0 0.0
  %986 = vmatpush1.msra.mxu0 0.0
  %987 = vmatprep.subr.mxu0 0.0
  %988 = vmatpush1.msra.mxu0 0.0
  %989 = vmatprep.subr.mxu0 0.0
  %990 = vmatpush1.msra.mxu0 0.0
  %991 = vmatprep.subr.mxu0 0.0
  %992 = vmatpush1.msra.mxu0 0.0
  %993 = vmatprep.subr.mxu0 0.0
  %994 = vmatpush1.msra.mxu0 0.0
  %995 = vmatprep.subr.mxu0 0.0
  %996 = vmatpush1.msra.mxu0 0.0
  %997 = vmatprep.subr.mxu0 0.0
  %998 = vmatpush1.msra.mxu0 0.0
  %999 = vmatprep.subr.mxu0 0.0
  %1000 = vmatpush1.msra.mxu0 0.0
  %1001 = vmatprep.subr.mxu0 0.0
  %1002 = vmatpush1.msra.mxu0 0.0
  %1003 = vmatprep.subr.mxu0 0.0
  %1004 = vmatpush1.msra.mxu0 0.0
  %1005 = vmatprep.subr.mxu0 0.0
  %1006 = vmatpush1.msra.mxu0 0.0
  %1007 = vmatprep.subr.mxu0 0.0
  %1008 = vmatpush1.msra.mxu0 0.0
  %1009 = vmatprep.subr.mxu0 0.0
  %1010 = vmatpush1.msra.mxu0 0.0
  %1011 = vmatprep.subr.mxu0 0.0
  %1012 = vmatpush1.msra.mxu0 0.0
  %1013 = vmatprep.subr.mxu0 0.0
  %1014 = vmatpush1.msra.mxu0 0.0
  %1015 = vmatprep.subr.mxu0 0.0
  %1016 = vmatpush1.msra.mxu0 0.0
  %1017 = vmatprep.subr.mxu0 0.0
  %1018 = vmatpush1.msra.mxu0 0.0
  %1019 = vmatprep.subr.mxu0 0.0
  %1020 = vmatpush1.msra.mxu0 0.0
  %1021 = vmatprep.subr.mxu0 0.0
  %1022 = vmatpush1.msra.mxu0 0.0
  %1023 = vmatprep.subr.mxu0 0.0
  %1024 = vmatpush1.msra.mxu0 0.0
  %1025 = vmatprep.subr.mxu0 0.0
  %1026 = vmatpush1.msra.mxu0 0.0
  %1027 = vmatprep.subr.mxu0 0.0
  %1028 = vmatpush1.msra.mxu0 0.0
  %1029 = vmatprep.subr.mxu0 0.0
  %1030 = vmatpush1.msra.mxu0 0.0
  %1031 = vmatprep.subr.mxu0 0.0
  %1032 = vmatpush1.msra.mxu0 0.0
  %1033 = vmatprep.subr.mxu0 0.0
  %1034 = vmatpush1.msra.mxu0 0.0
  %1035 = vmatprep.subr.mxu0 0.0
  %1036 = vmatpush1.msra.mxu0 0.0
  %1037 = vmatprep.subr.mxu0 0.0
  %1038 = vmatpush1.msra.mxu0 0.0
  %1039 = vmatprep.mubr.f32.mxu0 0.0
  %1040 = vmatmul.mubr.f32.gmra.mrb[0].mxu0 %v970
  %v1041 = vpop.f32.mrb[0].mxu0
  %v1042 = vadd.f32 0.0, %v1041
  %v1043 = vpop.f32.mrb[0].mxu0
  %1044 = vmatprep.mubr.f32.mxu0 0.0
  %1045 = vmatmul.mubr.f32.gmra.mrb[0].mxu0 %v973
  %v1046 = vpop.f32.mrb[0].mxu0
  %v1047 = vpop.f32.mrb[0].mxu0
  %1048 = vdwg.mxu0
  %v1049 = vadd.f32 %v823, %v1042
  %v1050 = vld [vmem:[%s3 + $0x7] sm:$0x1]
  %v1051 = vlaneseq
  %v1052 = vshrl.u32 %v1051, 7
  %v1053 = vsub.s32 0, %v1052
  %v1054 = vrot.slane %v1050, %v1053
  %v1055 = vadd.f32 %v1049, %v1054
  %v1056 = vld [vmem:[%s3 + $0x19] sm:$0x1]
  %v1057 = vlaneseq
  %v1058 = vshrl.u32 %v1057, 7
  %v1059 = vsub.s32 0, %v1058
  %v1060 = vrot.slane %v1056, %v1059
  %v1061 = vmul.f32 %v32, %v1060
  %v1062 = vld [vmem:[%s3 + $0x1a] sm:$0x1]
  %v1063 = vlaneseq
  %v1064 = vshrl.u32 %v1063, 7
  %v1065 = vsub.s32 0, %v1064
  %v1066 = vrot.slane %v1062, %v1065
  %v1067 = vadd.f32 %v1061, %v1066
  %v1068 = vtanh.pop %v1067
  %v1069 = vtanh.pop %v33
  %v1071 = vrot.slane %v1055, 2
  %v1074 = vrot.slane %v1069, 4
  %v1076 = vsel %vm462, %v1068, %v1071
  %vm1077 = vcmask 1043456
  %v1078 = vsel %vm1077, %v1071, %v1074
  %vm1079 = vcmask 146432
  %v1081 = vsel %vm1079, %v36, 0
  %v1084 = vsel %vm1079, %v37, 0
  %v1086 = vsel %vm612, %v1074, 0
  %1088 = vmatprep.subr.mxu0 0.0
  %1089 = vmatpush1.msra.mxu0 %v1076
  %1090 = vmatprep.subr.mxu0 0.0
  %1091 = vmatpush1.msra.mxu0 %v1078
  %1092 = vmatprep.subr.mxu0 0.0
  %1093 = vmatpush1.msra.mxu0 %v1086
  %1094 = vmatprep.subr.mxu0 0.0
  %1095 = vmatpush1.msra.mxu0 0.0
  %1096 = vmatprep.subr.mxu0 0.0
  %1097 = vmatpush1.msra.mxu0 0.0
  %1098 = vmatprep.subr.mxu0 0.0
  %1099 = vmatpush1.msra.mxu0 0.0
  %1100 = vmatprep.subr.mxu0 0.0
  %1101 = vmatpush1.msra.mxu0 0.0
  %1102 = vmatprep.subr.mxu0 0.0
  %1103 = vmatpush1.msra.mxu0 0.0
  %1104 = vmatprep.subr.mxu0 0.0
  %1105 = vmatpush1.msra.mxu0 0.0
  %1106 = vmatprep.subr.mxu0 0.0
  %1107 = vmatpush1.msra.mxu0 0.0
  %1108 = vmatprep.subr.mxu0 0.0
  %1109 = vmatpush1.msra.mxu0 0.0
  %1110 = vmatprep.subr.mxu0 0.0
  %1111 = vmatpush1.msra.mxu0 0.0
  %1112 = vmatprep.subr.mxu0 0.0
  %1113 = vmatpush1.msra.mxu0 0.0
  %1114 = vmatprep.subr.mxu0 0.0
  %1115 = vmatpush1.msra.mxu0 0.0
  %1116 = vmatprep.subr.mxu0 0.0
  %1117 = vmatpush1.msra.mxu0 0.0
  %1118 = vmatprep.subr.mxu0 0.0
  %1119 = vmatpush1.msra.mxu0 0.0
  %1120 = vmatprep.subr.mxu0 0.0
  %1121 = vmatpush1.msra.mxu0 0.0
  %1122 = vmatprep.subr.mxu0 0.0
  %1123 = vmatpush1.msra.mxu0 0.0
  %1124 = vmatprep.subr.mxu0 0.0
  %1125 = vmatpush1.msra.mxu0 0.0
  %1126 = vmatprep.subr.mxu0 0.0
  %1127 = vmatpush1.msra.mxu0 0.0
  %1128 = vmatprep.subr.mxu0 0.0
  %1129 = vmatpush1.msra.mxu0 0.0
  %1130 = vmatprep.subr.mxu0 0.0
  %1131 = vmatpush1.msra.mxu0 0.0
  %1132 = vmatprep.subr.mxu0 0.0
  %1133 = vmatpush1.msra.mxu0 0.0
  %1134 = vmatprep.subr.mxu0 0.0
  %1135 = vmatpush1.msra.mxu0 0.0
  %1136 = vmatprep.subr.mxu0 0.0
  %1137 = vmatpush1.msra.mxu0 0.0
  %1138 = vmatprep.subr.mxu0 0.0
  %1139 = vmatpush1.msra.mxu0 0.0
  %1140 = vmatprep.subr.mxu0 0.0
  %1141 = vmatpush1.msra.mxu0 0.0
  %1142 = vmatprep.subr.mxu0 0.0
  %1143 = vmatpush1.msra.mxu0 0.0
  %1144 = vmatprep.subr.mxu0 0.0
  %1145 = vmatpush1.msra.mxu0 0.0
  %1146 = vmatprep.subr.mxu0 0.0
  %1147 = vmatpush1.msra.mxu0 0.0
  %1148 = vmatprep.subr.mxu0 0.0
  %1149 = vmatpush1.msra.mxu0 0.0
  %1150 = vmatprep.subr.mxu0 0.0
  %1151 = vmatpush1.msra.mxu0 0.0
  %1152 = vmatprep.mubr.f32.mxu0 0.0
  %1153 = vmatmul.mubr.f32.gmra.mrb[0].mxu0 %v1081
  %v1154 = vpop.f32.mrb[0].mxu0
  %v1155 = vadd.f32 %v34, %v1154
  %v1156 = vpop.f32.mrb[0].mxu0
  %1157 = vmatprep.mubr.f32.mxu0 0.0
  %1158 = vmatmul.mubr.f32.gmra.mrb[0].mxu0 %v1084
  %v1159 = vpop.f32.mrb[0].mxu0
  %v1160 = vadd.f32 %v35, %v1159
  %v1161 = vpop.f32.mrb[0].mxu0
  %1162 = vdwg.mxu0
  %v1163 = vld [vmem:[%s6] sm:$0xff]
  %v1164 = vld [vmem:[%s6 + $0x8] sm:$0xff]
  %v1165 = vld [vmem:[%s6 + $0x10] sm:$0xff]
  %v1166 = vld [vmem:[%s6 + $0x18] sm:$0xff]
  %v1167 = vld [vmem:[%s6 + $0x20] sm:$0xff]
  %v1168 = vld [vmem:[%s6 + $0x28] sm:$0xff]
  %v1169 = vld [vmem:[%s6 + $0x30] sm:$0xff]
  %v1170 = vld [vmem:[%s6 + $0x38] sm:$0xff]
  %v1171 = vld [vmem:[%s7] sm:$0xff]
  %v1172 = vld [vmem:[%s7 + $0x8] sm:$0xff]
  %v1173 = vld [vmem:[%s7 + $0x10] sm:$0xff]
  %v1174 = vld [vmem:[%s7 + $0x18] sm:$0xff]
  %v1175 = vld [vmem:[%s7 + $0x20] sm:$0xff]
  %v1176 = vld [vmem:[%s7 + $0x28] sm:$0xff]
  %v1177 = vld [vmem:[%s7 + $0x30] sm:$0xff]
  %v1178 = vld [vmem:[%s7 + $0x38] sm:$0xff]
  %v1179 = vld [vmem:[%s7 + $0x40] sm:$0xff]
  %v1180 = vld [vmem:[%s7 + $0x48] sm:$0xff]
  %v1181 = vld [vmem:[%s7 + $0x50] sm:$0xff]
  %v1182 = vld [vmem:[%s7 + $0x58] sm:$0xff]
  %v1183 = vld [vmem:[%s7 + $0x60] sm:$0xff]
  %v1184 = vld [vmem:[%s7 + $0x68] sm:$0xff]
  %v1185 = vld [vmem:[%s7 + $0x70] sm:$0xff]
  %v1186 = vld [vmem:[%s7 + $0x78] sm:$0xff]
  %v1187 = vld [vmem:[%s3 + $0x8] sm:$0x1]
  %v1188 = vld [vmem:[%s3 + $0x9] sm:$0x1]
  %v1189 = vsel %vm474, %v1155, 0.0
  %1190 = vadd.xlane.f32.xlu0 %v1189
  %v1191 = vpop.xlane.xlu0 %1190
  %v1192 = vsel %vm474, %v1160, 0.0
  %1193 = vadd.xlane.f32.xlu0 %v1192
  %v1194 = vpop.xlane.xlu0 %1193
  %v1195 = vmul.f32 %v1191, %v482
  %v1196 = vmul.f32 %v1194, %v482
  %v1197 = vsub.f32 %v1155, %v1195
  %v1198 = vsub.f32 %v1160, %v1196
  %v1199 = vmul.f32 %v1197, %v1197
  %v1200 = vmul.f32 %v1198, %v1198
  %v1201 = vsel %vm474, %v1199, 0.0
  %1202 = vadd.xlane.f32.xlu0 %v1201
  %v1203 = vpop.xlane.xlu0 %1202
  %v1204 = vsel %vm474, %v1200, 0.0
  %1205 = vadd.xlane.f32.xlu0 %v1204
  %v1206 = vpop.xlane.xlu0 %1205
  %v1207 = vmul.f32 %v1203, %v482
  %v1208 = vmul.f32 %v1206, %v482
  %v1209 = vadd.f32 %v1207, 1e-05
  %v1210 = vadd.f32 %v1208, 1e-05
  %v1211 = vrsqrt.pop %v1209
  %v1212 = vrsqrt.pop %v1210
  %v1213 = vmul.f32 %v1197, %v1211
  %v1214 = vmul.f32 %v1198, %v1212
  %v1215 = vlaneseq
  %v1216 = vshrl.u32 %v1215, 7
  %v1217 = vsub.s32 0, %v1216
  %v1218 = vrot.slane %v1187, %v1217
  %v1219 = vmul.f32 %v1213, %v1218
  %v1220 = vmul.f32 %v1214, %v1218
  %v1221 = vlaneseq
  %v1222 = vshrl.u32 %v1221, 7
  %v1223 = vsub.s32 0, %v1222
  %v1224 = vrot.slane %v1188, %v1223
  %v1225 = vadd.f32 %v1219, %v1224
  %v1226 = vadd.f32 %v1220, %v1224
  %v1227 = vld [vmem:[%s3 + $0xa] sm:$0x1]
  %v1228 = vlaneseq
  %v1229 = vshrl.u32 %v1228, 7
  %v1230 = vsub.s32 0, %v1229
  %v1231 = vrot.slane %v1227, %v1230
  %v1233 = vsel %vm474, %v1225, 0
  %v1236 = vsel %vm474, %v1226, 0
  %1238 = vmatprep.subr.mxu0 0.0
  %1239 = vmatpush1.msra.mxu0 %v1163
  %1240 = vmatprep.subr.mxu0 0.0
  %1241 = vmatpush1.msra.mxu0 %v1165
  %1242 = vmatprep.subr.mxu0 0.0
  %1243 = vmatpush1.msra.mxu0 %v1167
  %1244 = vmatprep.subr.mxu0 0.0
  %1245 = vmatpush1.msra.mxu0 %v1169
  %1246 = vmatprep.subr.mxu0 0.0
  %1247 = vmatpush1.msra.mxu0 0.0
  %1248 = vmatprep.subr.mxu0 0.0
  %1249 = vmatpush1.msra.mxu0 0.0
  %1250 = vmatprep.subr.mxu0 0.0
  %1251 = vmatpush1.msra.mxu0 0.0
  %1252 = vmatprep.subr.mxu0 0.0
  %1253 = vmatpush1.msra.mxu0 0.0
  %1254 = vmatprep.subr.mxu0 0.0
  %1255 = vmatpush1.msra.mxu0 0.0
  %1256 = vmatprep.subr.mxu0 0.0
  %1257 = vmatpush1.msra.mxu0 0.0
  %1258 = vmatprep.subr.mxu0 0.0
  %1259 = vmatpush1.msra.mxu0 0.0
  %1260 = vmatprep.subr.mxu0 0.0
  %1261 = vmatpush1.msra.mxu0 0.0
  %1262 = vmatprep.subr.mxu0 0.0
  %1263 = vmatpush1.msra.mxu0 0.0
  %1264 = vmatprep.subr.mxu0 0.0
  %1265 = vmatpush1.msra.mxu0 0.0
  %1266 = vmatprep.subr.mxu0 0.0
  %1267 = vmatpush1.msra.mxu0 0.0
  %1268 = vmatprep.subr.mxu0 0.0
  %1269 = vmatpush1.msra.mxu0 0.0
  %1270 = vmatprep.subr.mxu0 0.0
  %1271 = vmatpush1.msra.mxu0 0.0
  %1272 = vmatprep.subr.mxu0 0.0
  %1273 = vmatpush1.msra.mxu0 0.0
  %1274 = vmatprep.subr.mxu0 0.0
  %1275 = vmatpush1.msra.mxu0 0.0
  %1276 = vmatprep.subr.mxu0 0.0
  %1277 = vmatpush1.msra.mxu0 0.0
  %1278 = vmatprep.subr.mxu0 0.0
  %1279 = vmatpush1.msra.mxu0 0.0
  %1280 = vmatprep.subr.mxu0 0.0
  %1281 = vmatpush1.msra.mxu0 0.0
  %1282 = vmatprep.subr.mxu0 0.0
  %1283 = vmatpush1.msra.mxu0 0.0
  %1284 = vmatprep.subr.mxu0 0.0
  %1285 = vmatpush1.msra.mxu0 0.0
  %1286 = vmatprep.subr.mxu0 0.0
  %1287 = vmatpush1.msra.mxu0 0.0
  %1288 = vmatprep.subr.mxu0 0.0
  %1289 = vmatpush1.msra.mxu0 0.0
  %1290 = vmatprep.subr.mxu0 0.0
  %1291 = vmatpush1.msra.mxu0 0.0
  %1292 = vmatprep.subr.mxu0 0.0
  %1293 = vmatpush1.msra.mxu0 0.0
  %1294 = vmatprep.subr.mxu0 0.0
  %1295 = vmatpush1.msra.mxu0 0.0
  %1296 = vmatprep.subr.mxu0 0.0
  %1297 = vmatpush1.msra.mxu0 0.0
  %1298 = vmatprep.subr.mxu0 0.0
  %1299 = vmatpush1.msra.mxu0 0.0
  %1300 = vmatprep.subr.mxu0 0.0
  %1301 = vmatpush1.msra.mxu0 0.0
  %1302 = vmatprep.mubr.f32.mxu0 0.0
  %1303 = vmatmul.mubr.f32.gmra.mrb[0].mxu0 %v1233
  %v1304 = vpop.f32.mrb[0].mxu0
  %v1305 = vadd.f32 %v1231, %v1304
  %v1306 = vpop.f32.mrb[0].mxu0
  %1307 = vmatprep.mubr.f32.mxu0 0.0
  %1308 = vmatmul.mubr.f32.gmra.mrb[0].mxu0 %v1236
  %v1309 = vpop.f32.mrb[0].mxu0
  %v1310 = vadd.f32 %v1231, %v1309
  %v1311 = vpop.f32.mrb[0].mxu0
  %1312 = vdwg.mxu0
  %1315 = vrot.lane.b32.xlu0 %v1305, 96
  %v1316 = vpop.permute.xlu0 %1315
  %1317 = vrot.lane.b32.xlu0 %v1310, 96
  %v1318 = vpop.permute.xlu0 %1317
  %vm1319 = vcmask 130048
  %v1320 = vsel %vm1319, %v1305, 0
  %v1322 = vsel %vm1319, %v1310, 0
  %v1324 = vsel %vm1319, %v1316, 0
  %v1326 = vsel %vm1319, %v1318, 0
  %1328 = vmatprep.subr.mxu0 0.0
  %1329 = vmatpush1.xpose.msra.mxu0 %v1324
  %1330 = vmatprep.subr.mxu0 0.0
  %1331 = vmatpush1.xpose.msra.mxu0 %v1326
  %1332 = vmatprep.subr.mxu0 0.0
  %1333 = vmatpush1.xpose.msra.mxu0 0.0
  %1334 = vmatprep.subr.mxu0 0.0
  %1335 = vmatpush1.xpose.msra.mxu0 0.0
  %1336 = vmatprep.subr.mxu0 0.0
  %1337 = vmatpush1.xpose.msra.mxu0 0.0
  %1338 = vmatprep.subr.mxu0 0.0
  %1339 = vmatpush1.xpose.msra.mxu0 0.0
  %1340 = vmatprep.subr.mxu0 0.0
  %1341 = vmatpush1.xpose.msra.mxu0 0.0
  %1342 = vmatprep.subr.mxu0 0.0
  %1343 = vmatpush1.xpose.msra.mxu0 0.0
  %1344 = vmatprep.subr.mxu0 0.0
  %1345 = vmatpush1.xpose.msra.mxu0 0.0
  %1346 = vmatprep.subr.mxu0 0.0
  %1347 = vmatpush1.xpose.msra.mxu0 0.0
  %1348 = vmatprep.subr.mxu0 0.0
  %1349 = vmatpush1.xpose.msra.mxu0 0.0
  %1350 = vmatprep.subr.mxu0 0.0
  %1351 = vmatpush1.xpose.msra.mxu0 0.0
  %1352 = vmatprep.subr.mxu0 0.0
  %1353 = vmatpush1.xpose.msra.mxu0 0.0
  %1354 = vmatprep.subr.mxu0 0.0
  %1355 = vmatpush1.xpose.msra.mxu0 0.0
  %1356 = vmatprep.subr.mxu0 0.0
  %1357 = vmatpush1.xpose.msra.mxu0 0.0
  %1358 = vmatprep.subr.mxu0 0.0
  %1359 = vmatpush1.xpose.msra.mxu0 0.0
  %1360 = vmatprep.subr.mxu0 0.0
  %1361 = vmatpush1.xpose.msra.mxu0 0.0
  %1362 = vmatprep.subr.mxu0 0.0
  %1363 = vmatpush1.xpose.msra.mxu0 0.0
  %1364 = vmatprep.subr.mxu0 0.0
  %1365 = vmatpush1.xpose.msra.mxu0 0.0
  %1366 = vmatprep.subr.mxu0 0.0
  %1367 = vmatpush1.xpose.msra.mxu0 0.0
  %1368 = vmatprep.subr.mxu0 0.0
  %1369 = vmatpush1.xpose.msra.mxu0 0.0
  %1370 = vmatprep.subr.mxu0 0.0
  %1371 = vmatpush1.xpose.msra.mxu0 0.0
  %1372 = vmatprep.subr.mxu0 0.0
  %1373 = vmatpush1.xpose.msra.mxu0 0.0
  %1374 = vmatprep.subr.mxu0 0.0
  %1375 = vmatpush1.xpose.msra.mxu0 0.0
  %1376 = vmatprep.subr.mxu0 0.0
  %1377 = vmatpush1.xpose.msra.mxu0 0.0
  %1378 = vmatprep.subr.mxu0 0.0
  %1379 = vmatpush1.xpose.msra.mxu0 0.0
  %1380 = vmatprep.subr.mxu0 0.0
  %1381 = vmatpush1.xpose.msra.mxu0 0.0
  %1382 = vmatprep.subr.mxu0 0.0
  %1383 = vmatpush1.xpose.msra.mxu0 0.0
  %1384 = vmatprep.subr.mxu0 0.0
  %1385 = vmatpush1.xpose.msra.mxu0 0.0
  %1386 = vmatprep.subr.mxu0 0.0
  %1387 = vmatpush1.xpose.msra.mxu0 0.0
  %1388 = vmatprep.subr.mxu0 0.0
  %1389 = vmatpush1.xpose.msra.mxu0 0.0
  %1390 = vmatprep.subr.mxu0 0.0
  %1391 = vmatpush1.xpose.msra.mxu0 0.0
  %1392 = vmatprep.mubr.f32.mxu0 0.0
  %1393 = vmatmul.mubr.f32.gmra.mrb[0].mxu0 %v1320
  %v1394 = vpop.f32.mrb[0].mxu0
  %v1395 = vadd.f32 0.0, %v1394
  %v1396 = vpop.f32.mrb[0].mxu0
  %1397 = vmatprep.mubr.f32.mxu0 0.0
  %1398 = vmatmul.mubr.f32.gmra.mrb[0].mxu0 %v1322
  %v1399 = vpop.f32.mrb[0].mxu0
  %v1400 = vadd.f32 0.0, %v1399
  %v1401 = vpop.f32.mrb[0].mxu0
  %1402 = vdwg.mxu0
  %v1403 = vmul.f32 %v1395, 0.25
  %v1404 = vmul.f32 %v1400, 0.25
  %1405 = vrot.lane.b32.xlu0 %v36, 110
  %v1406 = vpop.permute.xlu0 %1405
  %1407 = vrot.lane.b32.xlu0 %v37, 110
  %v1408 = vpop.permute.xlu0 %1407
  %v1411 = vadd.f32 %v1403, %v1406
  %v1412 = vadd.f32 %v1404, %v1408
  %v1413 = vsel %vm1319, %v1411, -inf
  %1414 = vmax.xlane.f32.xlu0 %v1413
  %v1415 = vpop.xlane.xlu0 %1414
  %v1416 = vsel %vm1319, %v1412, -inf
  %1417 = vmax.xlane.f32.xlu0 %v1416
  %v1418 = vpop.xlane.xlu0 %1417
  %v1419 = vsub.f32 %v1411, %v1415
  %v1420 = vsub.f32 %v1412, %v1418
  %v1421 = vmul.f32 %v1419, 1.442695
  %v1422 = vpow.pop %v1421
  %v1423 = vmul.f32 %v1420, 1.442695
  %v1424 = vpow.pop %v1423
  %v1425 = vsel %vm1319, %v1422, 0.0
  %1426 = vadd.xlane.f32.xlu0 %v1425
  %v1427 = vpop.xlane.xlu0 %1426
  %v1428 = vsel %vm1319, %v1424, 0.0
  %1429 = vadd.xlane.f32.xlu0 %v1428
  %v1430 = vpop.xlane.xlu0 %1429
  %v1431 = vrcp.pop %v1427
  %v1432 = vmul.f32 %v1422, %v1431
  %v1433 = vrcp.pop %v1430
  %v1434 = vmul.f32 %v1424, %v1433
  %1435 = vrot.lane.b32.xlu0 %v1305, 64
  %v1436 = vpop.permute.xlu0 %1435
  %1437 = vrot.lane.b32.xlu0 %v1310, 64
  %v1438 = vpop.permute.xlu0 %1437
  %v1442 = vsel %vm1319, %v1432, 0
  %v1445 = vsel %vm1319, %v1434, 0
  %1447 = vmatprep.subr.mxu0 0.0
  %1448 = vmatpush1.msra.mxu0 %v1436
  %1449 = vmatprep.subr.mxu0 0.0
  %1450 = vmatpush1.msra.mxu0 %v1438
  %1451 = vmatprep.subr.mxu0 0.0
  %1452 = vmatpush1.msra.mxu0 0.0
  %1453 = vmatprep.subr.mxu0 0.0
  %1454 = vmatpush1.msra.mxu0 0.0
  %1455 = vmatprep.subr.mxu0 0.0
  %1456 = vmatpush1.msra.mxu0 0.0
  %1457 = vmatprep.subr.mxu0 0.0
  %1458 = vmatpush1.msra.mxu0 0.0
  %1459 = vmatprep.subr.mxu0 0.0
  %1460 = vmatpush1.msra.mxu0 0.0
  %1461 = vmatprep.subr.mxu0 0.0
  %1462 = vmatpush1.msra.mxu0 0.0
  %1463 = vmatprep.subr.mxu0 0.0
  %1464 = vmatpush1.msra.mxu0 0.0
  %1465 = vmatprep.subr.mxu0 0.0
  %1466 = vmatpush1.msra.mxu0 0.0
  %1467 = vmatprep.subr.mxu0 0.0
  %1468 = vmatpush1.msra.mxu0 0.0
  %1469 = vmatprep.subr.mxu0 0.0
  %1470 = vmatpush1.msra.mxu0 0.0
  %1471 = vmatprep.subr.mxu0 0.0
  %1472 = vmatpush1.msra.mxu0 0.0
  %1473 = vmatprep.subr.mxu0 0.0
  %1474 = vmatpush1.msra.mxu0 0.0
  %1475 = vmatprep.subr.mxu0 0.0
  %1476 = vmatpush1.msra.mxu0 0.0
  %1477 = vmatprep.subr.mxu0 0.0
  %1478 = vmatpush1.msra.mxu0 0.0
  %1479 = vmatprep.subr.mxu0 0.0
  %1480 = vmatpush1.msra.mxu0 0.0
  %1481 = vmatprep.subr.mxu0 0.0
  %1482 = vmatpush1.msra.mxu0 0.0
  %1483 = vmatprep.subr.mxu0 0.0
  %1484 = vmatpush1.msra.mxu0 0.0
  %1485 = vmatprep.subr.mxu0 0.0
  %1486 = vmatpush1.msra.mxu0 0.0
  %1487 = vmatprep.subr.mxu0 0.0
  %1488 = vmatpush1.msra.mxu0 0.0
  %1489 = vmatprep.subr.mxu0 0.0
  %1490 = vmatpush1.msra.mxu0 0.0
  %1491 = vmatprep.subr.mxu0 0.0
  %1492 = vmatpush1.msra.mxu0 0.0
  %1493 = vmatprep.subr.mxu0 0.0
  %1494 = vmatpush1.msra.mxu0 0.0
  %1495 = vmatprep.subr.mxu0 0.0
  %1496 = vmatpush1.msra.mxu0 0.0
  %1497 = vmatprep.subr.mxu0 0.0
  %1498 = vmatpush1.msra.mxu0 0.0
  %1499 = vmatprep.subr.mxu0 0.0
  %1500 = vmatpush1.msra.mxu0 0.0
  %1501 = vmatprep.subr.mxu0 0.0
  %1502 = vmatpush1.msra.mxu0 0.0
  %1503 = vmatprep.subr.mxu0 0.0
  %1504 = vmatpush1.msra.mxu0 0.0
  %1505 = vmatprep.subr.mxu0 0.0
  %1506 = vmatpush1.msra.mxu0 0.0
  %1507 = vmatprep.subr.mxu0 0.0
  %1508 = vmatpush1.msra.mxu0 0.0
  %1509 = vmatprep.subr.mxu0 0.0
  %1510 = vmatpush1.msra.mxu0 0.0
  %1511 = vmatprep.mubr.f32.mxu0 0.0
  %1512 = vmatmul.mubr.f32.gmra.mrb[0].mxu0 %v1442
  %v1513 = vpop.f32.mrb[0].mxu0
  %v1514 = vadd.f32 0.0, %v1513
  %v1515 = vpop.f32.mrb[0].mxu0
  %1516 = vmatprep.mubr.f32.mxu0 0.0
  %1517 = vmatmul.mubr.f32.gmra.mrb[0].mxu0 %v1445
  %v1518 = vpop.f32.mrb[0].mxu0
  %v1519 = vadd.f32 0.0, %v1518
  %v1520 = vpop.f32.mrb[0].mxu0
  %1521 = vdwg.mxu0
  %1522 = vrot.lane.b32.xlu0 %v1305, 112
  %v1523 = vpop.permute.xlu0 %1522
  %1524 = vrot.lane.b32.xlu0 %v1310, 112
  %v1525 = vpop.permute.xlu0 %1524
  %1526 = vrot.lane.b32.xlu0 %v1305, 80
  %v1527 = vpop.permute.xlu0 %1526
  %1528 = vrot.lane.b32.xlu0 %v1310, 80
  %v1529 = vpop.permute.xlu0 %1528
  %v1530 = vsel %vm1319, %v1523, 0
  %v1532 = vsel %vm1319, %v1525, 0
  %v1534 = vsel %vm1319, %v1527, 0
  %v1536 = vsel %vm1319, %v1529, 0
  %1538 = vmatprep.subr.mxu0 0.0
  %1539 = vmatpush1.xpose.msra.mxu0 %v1534
  %1540 = vmatprep.subr.mxu0 0.0
  %1541 = vmatpush1.xpose.msra.mxu0 %v1536
  %1542 = vmatprep.subr.mxu0 0.0
  %1543 = vmatpush1.xpose.msra.mxu0 0.0
  %1544 = vmatprep.subr.mxu0 0.0
  %1545 = vmatpush1.xpose.msra.mxu0 0.0
  %1546 = vmatprep.subr.mxu0 0.0
  %1547 = vmatpush1.xpose.msra.mxu0 0.0
  %1548 = vmatprep.subr.mxu0 0.0
  %1549 = vmatpush1.xpose.msra.mxu0 0.0
  %1550 = vmatprep.subr.mxu0 0.0
  %1551 = vmatpush1.xpose.msra.mxu0 0.0
  %1552 = vmatprep.subr.mxu0 0.0
  %1553 = vmatpush1.xpose.msra.mxu0 0.0
  %1554 = vmatprep.subr.mxu0 0.0
  %1555 = vmatpush1.xpose.msra.mxu0 0.0
  %1556 = vmatprep.subr.mxu0 0.0
  %1557 = vmatpush1.xpose.msra.mxu0 0.0
  %1558 = vmatprep.subr.mxu0 0.0
  %1559 = vmatpush1.xpose.msra.mxu0 0.0
  %1560 = vmatprep.subr.mxu0 0.0
  %1561 = vmatpush1.xpose.msra.mxu0 0.0
  %1562 = vmatprep.subr.mxu0 0.0
  %1563 = vmatpush1.xpose.msra.mxu0 0.0
  %1564 = vmatprep.subr.mxu0 0.0
  %1565 = vmatpush1.xpose.msra.mxu0 0.0
  %1566 = vmatprep.subr.mxu0 0.0
  %1567 = vmatpush1.xpose.msra.mxu0 0.0
  %1568 = vmatprep.subr.mxu0 0.0
  %1569 = vmatpush1.xpose.msra.mxu0 0.0
  %1570 = vmatprep.subr.mxu0 0.0
  %1571 = vmatpush1.xpose.msra.mxu0 0.0
  %1572 = vmatprep.subr.mxu0 0.0
  %1573 = vmatpush1.xpose.msra.mxu0 0.0
  %1574 = vmatprep.subr.mxu0 0.0
  %1575 = vmatpush1.xpose.msra.mxu0 0.0
  %1576 = vmatprep.subr.mxu0 0.0
  %1577 = vmatpush1.xpose.msra.mxu0 0.0
  %1578 = vmatprep.subr.mxu0 0.0
  %1579 = vmatpush1.xpose.msra.mxu0 0.0
  %1580 = vmatprep.subr.mxu0 0.0
  %1581 = vmatpush1.xpose.msra.mxu0 0.0
  %1582 = vmatprep.subr.mxu0 0.0
  %1583 = vmatpush1.xpose.msra.mxu0 0.0
  %1584 = vmatprep.subr.mxu0 0.0
  %1585 = vmatpush1.xpose.msra.mxu0 0.0
  %1586 = vmatprep.subr.mxu0 0.0
  %1587 = vmatpush1.xpose.msra.mxu0 0.0
  %1588 = vmatprep.subr.mxu0 0.0
  %1589 = vmatpush1.xpose.msra.mxu0 0.0
  %1590 = vmatprep.subr.mxu0 0.0
  %1591 = vmatpush1.xpose.msra.mxu0 0.0
  %1592 = vmatprep.subr.mxu0 0.0
  %1593 = vmatpush1.xpose.msra.mxu0 0.0
  %1594 = vmatprep.subr.mxu0 0.0
  %1595 = vmatpush1.xpose.msra.mxu0 0.0
  %1596 = vmatprep.subr.mxu0 0.0
  %1597 = vmatpush1.xpose.msra.mxu0 0.0
  %1598 = vmatprep.subr.mxu0 0.0
  %1599 = vmatpush1.xpose.msra.mxu0 0.0
  %1600 = vmatprep.subr.mxu0 0.0
  %1601 = vmatpush1.xpose.msra.mxu0 0.0
  %1602 = vmatprep.mubr.f32.mxu0 0.0
  %1603 = vmatmul.mubr.f32.gmra.mrb[0].mxu0 %v1530
  %v1604 = vpop.f32.mrb[0].mxu0
  %v1605 = vadd.f32 0.0, %v1604
  %v1606 = vpop.f32.mrb[0].mxu0
  %1607 = vmatprep.mubr.f32.mxu0 0.0
  %1608 = vmatmul.mubr.f32.gmra.mrb[0].mxu0 %v1532
  %v1609 = vpop.f32.mrb[0].mxu0
  %v1610 = vadd.f32 0.0, %v1609
  %v1611 = vpop.f32.mrb[0].mxu0
  %1612 = vdwg.mxu0
  %v1613 = vmul.f32 %v1605, 0.25
  %v1614 = vmul.f32 %v1610, 0.25
  %v1615 = vadd.f32 %v1613, %v1406
  %v1616 = vadd.f32 %v1614, %v1408
  %v1617 = vsel %vm1319, %v1615, -inf
  %1618 = vmax.xlane.f32.xlu0 %v1617
  %v1619 = vpop.xlane.xlu0 %1618
  %v1620 = vsel %vm1319, %v1616, -inf
  %1621 = vmax.xlane.f32.xlu0 %v1620
  %v1622 = vpop.xlane.xlu0 %1621
  %v1623 = vsub.f32 %v1615, %v1619
  %v1624 = vsub.f32 %v1616, %v1622
  %v1625 = vmul.f32 %v1623, 1.442695
  %v1626 = vpow.pop %v1625
  %v1627 = vmul.f32 %v1624, 1.442695
  %v1628 = vpow.pop %v1627
  %v1629 = vsel %vm1319, %v1626, 0.0
  %1630 = vadd.xlane.f32.xlu0 %v1629
  %v1631 = vpop.xlane.xlu0 %1630
  %v1632 = vsel %vm1319, %v1628, 0.0
  %1633 = vadd.xlane.f32.xlu0 %v1632
  %v1634 = vpop.xlane.xlu0 %1633
  %v1635 = vrcp.pop %v1631
  %v1636 = vmul.f32 %v1626, %v1635
  %v1637 = vrcp.pop %v1634
  %v1638 = vmul.f32 %v1628, %v1637
  %1639 = vrot.lane.b32.xlu0 %v1305, 48
  %v1640 = vpop.permute.xlu0 %1639
  %1641 = vrot.lane.b32.xlu0 %v1310, 48
  %v1642 = vpop.permute.xlu0 %1641
  %v1646 = vsel %vm1319, %v1636, 0
  %v1649 = vsel %vm1319, %v1638, 0
  %1651 = vmatprep.subr.mxu0 0.0
  %1652 = vmatpush1.msra.mxu0 %v1640
  %1653 = vmatprep.subr.mxu0 0.0
  %1654 = vmatpush1.msra.mxu0 %v1642
  %1655 = vmatprep.subr.mxu0 0.0
  %1656 = vmatpush1.msra.mxu0 0.0
  %1657 = vmatprep.subr.mxu0 0.0
  %1658 = vmatpush1.msra.mxu0 0.0
  %1659 = vmatprep.subr.mxu0 0.0
  %1660 = vmatpush1.msra.mxu0 0.0
  %1661 = vmatprep.subr.mxu0 0.0
  %1662 = vmatpush1.msra.mxu0 0.0
  %1663 = vmatprep.subr.mxu0 0.0
  %1664 = vmatpush1.msra.mxu0 0.0
  %1665 = vmatprep.subr.mxu0 0.0
  %1666 = vmatpush1.msra.mxu0 0.0
  %1667 = vmatprep.subr.mxu0 0.0
  %1668 = vmatpush1.msra.mxu0 0.0
  %1669 = vmatprep.subr.mxu0 0.0
  %1670 = vmatpush1.msra.mxu0 0.0
  %1671 = vmatprep.subr.mxu0 0.0
  %1672 = vmatpush1.msra.mxu0 0.0
  %1673 = vmatprep.subr.mxu0 0.0
  %1674 = vmatpush1.msra.mxu0 0.0
  %1675 = vmatprep.subr.mxu0 0.0
  %1676 = vmatpush1.msra.mxu0 0.0
  %1677 = vmatprep.subr.mxu0 0.0
  %1678 = vmatpush1.msra.mxu0 0.0
  %1679 = vmatprep.subr.mxu0 0.0
  %1680 = vmatpush1.msra.mxu0 0.0
  %1681 = vmatprep.subr.mxu0 0.0
  %1682 = vmatpush1.msra.mxu0 0.0
  %1683 = vmatprep.subr.mxu0 0.0
  %1684 = vmatpush1.msra.mxu0 0.0
  %1685 = vmatprep.subr.mxu0 0.0
  %1686 = vmatpush1.msra.mxu0 0.0
  %1687 = vmatprep.subr.mxu0 0.0
  %1688 = vmatpush1.msra.mxu0 0.0
  %1689 = vmatprep.subr.mxu0 0.0
  %1690 = vmatpush1.msra.mxu0 0.0
  %1691 = vmatprep.subr.mxu0 0.0
  %1692 = vmatpush1.msra.mxu0 0.0
  %1693 = vmatprep.subr.mxu0 0.0
  %1694 = vmatpush1.msra.mxu0 0.0
  %1695 = vmatprep.subr.mxu0 0.0
  %1696 = vmatpush1.msra.mxu0 0.0
  %1697 = vmatprep.subr.mxu0 0.0
  %1698 = vmatpush1.msra.mxu0 0.0
  %1699 = vmatprep.subr.mxu0 0.0
  %1700 = vmatpush1.msra.mxu0 0.0
  %1701 = vmatprep.subr.mxu0 0.0
  %1702 = vmatpush1.msra.mxu0 0.0
  %1703 = vmatprep.subr.mxu0 0.0
  %1704 = vmatpush1.msra.mxu0 0.0
  %1705 = vmatprep.subr.mxu0 0.0
  %1706 = vmatpush1.msra.mxu0 0.0
  %1707 = vmatprep.subr.mxu0 0.0
  %1708 = vmatpush1.msra.mxu0 0.0
  %1709 = vmatprep.subr.mxu0 0.0
  %1710 = vmatpush1.msra.mxu0 0.0
  %1711 = vmatprep.subr.mxu0 0.0
  %1712 = vmatpush1.msra.mxu0 0.0
  %1713 = vmatprep.subr.mxu0 0.0
  %1714 = vmatpush1.msra.mxu0 0.0
  %1715 = vmatprep.mubr.f32.mxu0 0.0
  %1716 = vmatmul.mubr.f32.gmra.mrb[0].mxu0 %v1646
  %v1717 = vpop.f32.mrb[0].mxu0
  %v1718 = vadd.f32 0.0, %v1717
  %v1719 = vpop.f32.mrb[0].mxu0
  %1720 = vmatprep.mubr.f32.mxu0 0.0
  %1721 = vmatmul.mubr.f32.gmra.mrb[0].mxu0 %v1649
  %v1722 = vpop.f32.mrb[0].mxu0
  %v1723 = vadd.f32 0.0, %v1722
  %v1724 = vpop.f32.mrb[0].mxu0
  %1725 = vdwg.mxu0
  %1728 = vrot.lane.b32.xlu0 %v1718, 16
  %v1729 = vpop.permute.xlu0 %1728
  %1730 = vrot.lane.b32.xlu0 %v1723, 16
  %v1731 = vpop.permute.xlu0 %1730
  %v1734 = vsel %vm1319, %v1514, %v1729
  %v1735 = vsel %vm1319, %v1519, %v1731
  %1740 = vrot.lane.b32.xlu0 %v1163, 32
  %v1741 = vpop.permute.xlu0 %1740
  %1742 = vrot.lane.b32.xlu0 %v1165, 32
  %v1743 = vpop.permute.xlu0 %1742
  %1744 = vrot.lane.b32.xlu0 %v1167, 32
  %v1745 = vpop.permute.xlu0 %1744
  %1746 = vrot.lane.b32.xlu0 %v1169, 32
  %v1747 = vpop.permute.xlu0 %1746
  %v1753 = vsel %vm474, %v1734, 0
  %v1756 = vsel %vm474, %v1735, 0
  %1758 = vmatprep.subr.mxu0 0.0
  %1759 = vmatpush1.msra.mxu0 %v1741
  %1760 = vmatprep.subr.mxu0 0.0
  %1761 = vmatpush1.msra.mxu0 %v1743
  %1762 = vmatprep.subr.mxu0 0.0
  %1763 = vmatpush1.msra.mxu0 %v1745
  %1764 = vmatprep.subr.mxu0 0.0
  %1765 = vmatpush1.msra.mxu0 %v1747
  %1766 = vmatprep.subr.mxu0 0.0
  %1767 = vmatpush1.msra.mxu0 0.0
  %1768 = vmatprep.subr.mxu0 0.0
  %1769 = vmatpush1.msra.mxu0 0.0
  %1770 = vmatprep.subr.mxu0 0.0
  %1771 = vmatpush1.msra.mxu0 0.0
  %1772 = vmatprep.subr.mxu0 0.0
  %1773 = vmatpush1.msra.mxu0 0.0
  %1774 = vmatprep.subr.mxu0 0.0
  %1775 = vmatpush1.msra.mxu0 0.0
  %1776 = vmatprep.subr.mxu0 0.0
  %1777 = vmatpush1.msra.mxu0 0.0
  %1778 = vmatprep.subr.mxu0 0.0
  %1779 = vmatpush1.msra.mxu0 0.0
  %1780 = vmatprep.subr.mxu0 0.0
  %1781 = vmatpush1.msra.mxu0 0.0
  %1782 = vmatprep.subr.mxu0 0.0
  %1783 = vmatpush1.msra.mxu0 0.0
  %1784 = vmatprep.subr.mxu0 0.0
  %1785 = vmatpush1.msra.mxu0 0.0
  %1786 = vmatprep.subr.mxu0 0.0
  %1787 = vmatpush1.msra.mxu0 0.0
  %1788 = vmatprep.subr.mxu0 0.0
  %1789 = vmatpush1.msra.mxu0 0.0
  %1790 = vmatprep.subr.mxu0 0.0
  %1791 = vmatpush1.msra.mxu0 0.0
  %1792 = vmatprep.subr.mxu0 0.0
  %1793 = vmatpush1.msra.mxu0 0.0
  %1794 = vmatprep.subr.mxu0 0.0
  %1795 = vmatpush1.msra.mxu0 0.0
  %1796 = vmatprep.subr.mxu0 0.0
  %1797 = vmatpush1.msra.mxu0 0.0
  %1798 = vmatprep.subr.mxu0 0.0
  %1799 = vmatpush1.msra.mxu0 0.0
  %1800 = vmatprep.subr.mxu0 0.0
  %1801 = vmatpush1.msra.mxu0 0.0
  %1802 = vmatprep.subr.mxu0 0.0
  %1803 = vmatpush1.msra.mxu0 0.0
  %1804 = vmatprep.subr.mxu0 0.0
  %1805 = vmatpush1.msra.mxu0 0.0
  %1806 = vmatprep.subr.mxu0 0.0
  %1807 = vmatpush1.msra.mxu0 0.0
  %1808 = vmatprep.subr.mxu0 0.0
  %1809 = vmatpush1.msra.mxu0 0.0
  %1810 = vmatprep.subr.mxu0 0.0
  %1811 = vmatpush1.msra.mxu0 0.0
  %1812 = vmatprep.subr.mxu0 0.0
  %1813 = vmatpush1.msra.mxu0 0.0
  %1814 = vmatprep.subr.mxu0 0.0
  %1815 = vmatpush1.msra.mxu0 0.0
  %1816 = vmatprep.subr.mxu0 0.0
  %1817 = vmatpush1.msra.mxu0 0.0
  %1818 = vmatprep.subr.mxu0 0.0
  %1819 = vmatpush1.msra.mxu0 0.0
  %1820 = vmatprep.subr.mxu0 0.0
  %1821 = vmatpush1.msra.mxu0 0.0
  %1822 = vmatprep.mubr.f32.mxu0 0.0
  %1823 = vmatmul.mubr.f32.gmra.mrb[0].mxu0 %v1753
  %v1824 = vpop.f32.mrb[0].mxu0
  %v1825 = vadd.f32 0.0, %v1824
  %v1826 = vpop.f32.mrb[0].mxu0
  %1827 = vmatprep.mubr.f32.mxu0 0.0
  %1828 = vmatmul.mubr.f32.gmra.mrb[0].mxu0 %v1756
  %v1829 = vpop.f32.mrb[0].mxu0
  %v1830 = vadd.f32 0.0, %v1829
  %v1831 = vpop.f32.mrb[0].mxu0
  %1832 = vdwg.mxu0
  %v1833 = vadd.f32 %v1155, %v1825
  %v1834 = vadd.f32 %v1160, %v1830
  %v1835 = vld [vmem:[%s3 + $0xb] sm:$0x1]
  %v1836 = vlaneseq
  %v1837 = vshrl.u32 %v1836, 7
  %v1838 = vsub.s32 0, %v1837
  %v1839 = vrot.slane %v1835, %v1838
  %v1840 = vadd.f32 %v1833, %v1839
  %v1841 = vadd.f32 %v1834, %v1839
  %v1842 = vld [vmem:[%s3 + $0xc] sm:$0x1]
  %v1843 = vld [vmem:[%s3 + $0xd] sm:$0x1]
  %v1844 = vsel %vm474, %v1840, 0.0
  %1845 = vadd.xlane.f32.xlu0 %v1844
  %v1846 = vpop.xlane.xlu0 %1845
  %v1847 = vsel %vm474, %v1841, 0.0
  %1848 = vadd.xlane.f32.xlu0 %v1847
  %v1849 = vpop.xlane.xlu0 %1848
  %v1850 = vmul.f32 %v1846, %v482
  %v1851 = vmul.f32 %v1849, %v482
  %v1852 = vsub.f32 %v1840, %v1850
  %v1853 = vsub.f32 %v1841, %v1851
  %v1854 = vmul.f32 %v1852, %v1852
  %v1855 = vmul.f32 %v1853, %v1853
  %v1856 = vsel %vm474, %v1854, 0.0
  %1857 = vadd.xlane.f32.xlu0 %v1856
  %v1858 = vpop.xlane.xlu0 %1857
  %v1859 = vsel %vm474, %v1855, 0.0
  %1860 = vadd.xlane.f32.xlu0 %v1859
  %v1861 = vpop.xlane.xlu0 %1860
  %v1862 = vmul.f32 %v1858, %v482
  %v1863 = vmul.f32 %v1861, %v482
  %v1864 = vadd.f32 %v1862, 1e-05
  %v1865 = vadd.f32 %v1863, 1e-05
  %v1866 = vrsqrt.pop %v1864
  %v1867 = vrsqrt.pop %v1865
  %v1868 = vmul.f32 %v1852, %v1866
  %v1869 = vmul.f32 %v1853, %v1867
  %v1870 = vlaneseq
  %v1871 = vshrl.u32 %v1870, 7
  %v1872 = vsub.s32 0, %v1871
  %v1873 = vrot.slane %v1842, %v1872
  %v1874 = vmul.f32 %v1868, %v1873
  %v1875 = vmul.f32 %v1869, %v1873
  %v1876 = vlaneseq
  %v1877 = vshrl.u32 %v1876, 7
  %v1878 = vsub.s32 0, %v1877
  %v1879 = vrot.slane %v1843, %v1878
  %v1880 = vadd.f32 %v1874, %v1879
  %v1881 = vadd.f32 %v1875, %v1879
  %v1882 = vld [vmem:[%s3 + $0xe] sm:$0x1]
  %v1883 = vlaneseq
  %v1884 = vshrl.u32 %v1883, 7
  %v1885 = vsub.s32 0, %v1884
  %v1886 = vrot.slane %v1882, %v1885
  %v1888 = vsel %vm474, %v1880, 0
  %v1891 = vsel %vm474, %v1881, 0
  %1893 = vmatprep.subr.mxu0 0.0
  %1894 = vmatpush1.msra.mxu0 %v1164
  %1895 = vmatprep.subr.mxu0 0.0
  %1896 = vmatpush1.msra.mxu0 %v1166
  %1897 = vmatprep.subr.mxu0 0.0
  %1898 = vmatpush1.msra.mxu0 %v1168
  %1899 = vmatprep.subr.mxu0 0.0
  %1900 = vmatpush1.msra.mxu0 %v1170
  %1901 = vmatprep.subr.mxu0 0.0
  %1902 = vmatpush1.msra.mxu0 0.0
  %1903 = vmatprep.subr.mxu0 0.0
  %1904 = vmatpush1.msra.mxu0 0.0
  %1905 = vmatprep.subr.mxu0 0.0
  %1906 = vmatpush1.msra.mxu0 0.0
  %1907 = vmatprep.subr.mxu0 0.0
  %1908 = vmatpush1.msra.mxu0 0.0
  %1909 = vmatprep.subr.mxu0 0.0
  %1910 = vmatpush1.msra.mxu0 0.0
  %1911 = vmatprep.subr.mxu0 0.0
  %1912 = vmatpush1.msra.mxu0 0.0
  %1913 = vmatprep.subr.mxu0 0.0
  %1914 = vmatpush1.msra.mxu0 0.0
  %1915 = vmatprep.subr.mxu0 0.0
  %1916 = vmatpush1.msra.mxu0 0.0
  %1917 = vmatprep.subr.mxu0 0.0
  %1918 = vmatpush1.msra.mxu0 0.0
  %1919 = vmatprep.subr.mxu0 0.0
  %1920 = vmatpush1.msra.mxu0 0.0
  %1921 = vmatprep.subr.mxu0 0.0
  %1922 = vmatpush1.msra.mxu0 0.0
  %1923 = vmatprep.subr.mxu0 0.0
  %1924 = vmatpush1.msra.mxu0 0.0
  %1925 = vmatprep.subr.mxu0 0.0
  %1926 = vmatpush1.msra.mxu0 0.0
  %1927 = vmatprep.subr.mxu0 0.0
  %1928 = vmatpush1.msra.mxu0 0.0
  %1929 = vmatprep.subr.mxu0 0.0
  %1930 = vmatpush1.msra.mxu0 0.0
  %1931 = vmatprep.subr.mxu0 0.0
  %1932 = vmatpush1.msra.mxu0 0.0
  %1933 = vmatprep.subr.mxu0 0.0
  %1934 = vmatpush1.msra.mxu0 0.0
  %1935 = vmatprep.subr.mxu0 0.0
  %1936 = vmatpush1.msra.mxu0 0.0
  %1937 = vmatprep.subr.mxu0 0.0
  %1938 = vmatpush1.msra.mxu0 0.0
  %1939 = vmatprep.subr.mxu0 0.0
  %1940 = vmatpush1.msra.mxu0 0.0
  %1941 = vmatprep.subr.mxu0 0.0
  %1942 = vmatpush1.msra.mxu0 0.0
  %1943 = vmatprep.subr.mxu0 0.0
  %1944 = vmatpush1.msra.mxu0 0.0
  %1945 = vmatprep.subr.mxu0 0.0
  %1946 = vmatpush1.msra.mxu0 0.0
  %1947 = vmatprep.subr.mxu0 0.0
  %1948 = vmatpush1.msra.mxu0 0.0
  %1949 = vmatprep.subr.mxu0 0.0
  %1950 = vmatpush1.msra.mxu0 0.0
  %1951 = vmatprep.subr.mxu0 0.0
  %1952 = vmatpush1.msra.mxu0 0.0
  %1953 = vmatprep.subr.mxu0 0.0
  %1954 = vmatpush1.msra.mxu0 0.0
  %1955 = vmatprep.subr.mxu0 0.0
  %1956 = vmatpush1.msra.mxu0 0.0
  %1957 = vmatprep.mubr.f32.mxu0 0.0
  %1958 = vmatmul.mubr.f32.gmra.mrb[0].mxu0 %v1888
  %v1959 = vpop.f32.mrb[0].mxu0
  %v1960 = vadd.f32 %v1886, %v1959
  %v1961 = vpop.f32.mrb[0].mxu0
  %1962 = vmatprep.mubr.f32.mxu0 0.0
  %1963 = vmatmul.mubr.f32.gmra.mrb[0].mxu0 %v1891
  %v1964 = vpop.f32.mrb[0].mxu0
  %v1965 = vadd.f32 %v1886, %v1964
  %v1966 = vpop.f32.mrb[0].mxu0
  %1967 = vdwg.mxu0
  %v1968 = vmul.f32 %v1960, 0.5
  %v1969 = vmul.f32 %v1965, 0.5
  %v1970 = vmul.f32 %v1960, 0.70710677
  %v1971 = vmul.f32 %v1965, 0.70710677
  %v1972 = vand.u32 2147483647, %v1970
  %v1973 = vand.u32 2147483647, %v1971
  %v1974 = vmul.f32 %v1972, 0.3275911
  %v1975 = vmul.f32 %v1973, 0.3275911
  %v1976 = vadd.f32 %v1974, 1.0
  %v1977 = vadd.f32 %v1975, 1.0
  %v1978 = vrcp.pop %v1976
  %v1979 = vmul.f32 1.0, %v1978
  %v1980 = vrcp.pop %v1977
  %v1981 = vmul.f32 1.0, %v1980
  %v1982 = vmul.f32 %v1979, 1.0614054
  %v1983 = vmul.f32 %v1981, 1.0614054
  %v1984 = vadd.f32 %v1982, -1.4531521
  %v1985 = vadd.f32 %v1983, -1.4531521
  %v1986 = vmul.f32 %v1984, %v1979
  %v1987 = vmul.f32 %v1985, %v1981
  %v1988 = vadd.f32 %v1986, 1.4214138
  %v1989 = vadd.f32 %v1987, 1.4214138
  %v1990 = vmul.f32 %v1988, %v1979
  %v1991 = vmul.f32 %v1989, %v1981
  %v1992 = vadd.f32 %v1990, -0.28449672
  %v1993 = vadd.f32 %v1991, -0.28449672
  %v1994 = vmul.f32 %v1992, %v1979
  %v1995 = vmul.f32 %v1993, %v1981
  %v1996 = vadd.f32 %v1994, 0.2548296
  %v1997 = vadd.f32 %v1995, 0.2548296
  %v1998 = vmul.f32 %v1996, %v1979
  %v1999 = vmul.f32 %v1997, %v1981
  %v2000 = vsub.f32 0.0, %v1972
  %v2001 = vsub.f32 0.0, %v1973
  %v2002 = vmul.f32 %v2000, %v1972
  %v2003 = vmul.f32 %v2001, %v1973
  %v2004 = vmul.f32 %v2002, 1.442695
  %v2005 = vpow.pop %v2004
  %v2006 = vmul.f32 %v2003, 1.442695
  %v2007 = vpow.pop %v2006
  %v2008 = vmul.f32 %v1998, %v2005
  %v2009 = vmul.f32 %v1999, %v2007
  %v2010 = vsub.f32 1.0, %v2008
  %v2011 = vsub.f32 1.0, %v2009
  %vm2012 = vcmp.ge.f32.partialorder %v1970, 0.0
  %vm2013 = vcmp.ge.f32.partialorder %v1971, 0.0
  %v2014 = vsub.f32 0.0, %v2010
  %v2015 = vsub.f32 0.0, %v2011
  %v2016 = vsel %vm2012, %v2010, %v2014
  %v2017 = vsel %vm2013, %v2011, %v2015
  %v2018 = vadd.f32 %v2016, 1.0
  %v2019 = vadd.f32 %v2017, 1.0
  %v2020 = vmul.f32 %v1968, %v2018
  %v2021 = vmul.f32 %v1969, %v2019
  %2022 = vmatprep.subr.mxu0 0.0
  %2023 = vmatpush1.msra.mxu0 %v1171
  %2024 = vmatprep.subr.mxu0 0.0
  %2025 = vmatpush1.msra.mxu0 %v1172
  %2026 = vmatprep.subr.mxu0 0.0
  %2027 = vmatpush1.msra.mxu0 %v1173
  %2028 = vmatprep.subr.mxu0 0.0
  %2029 = vmatpush1.msra.mxu0 %v1174
  %2030 = vmatprep.subr.mxu0 0.0
  %2031 = vmatpush1.msra.mxu0 %v1175
  %2032 = vmatprep.subr.mxu0 0.0
  %2033 = vmatpush1.msra.mxu0 %v1176
  %2034 = vmatprep.subr.mxu0 0.0
  %2035 = vmatpush1.msra.mxu0 %v1177
  %2036 = vmatprep.subr.mxu0 0.0
  %2037 = vmatpush1.msra.mxu0 %v1178
  %2038 = vmatprep.subr.mxu0 0.0
  %2039 = vmatpush1.msra.mxu0 %v1179
  %2040 = vmatprep.subr.mxu0 0.0
  %2041 = vmatpush1.msra.mxu0 %v1180
  %2042 = vmatprep.subr.mxu0 0.0
  %2043 = vmatpush1.msra.mxu0 %v1181
  %2044 = vmatprep.subr.mxu0 0.0
  %2045 = vmatpush1.msra.mxu0 %v1182
  %2046 = vmatprep.subr.mxu0 0.0
  %2047 = vmatpush1.msra.mxu0 %v1183
  %2048 = vmatprep.subr.mxu0 0.0
  %2049 = vmatpush1.msra.mxu0 %v1184
  %2050 = vmatprep.subr.mxu0 0.0
  %2051 = vmatpush1.msra.mxu0 %v1185
  %2052 = vmatprep.subr.mxu0 0.0
  %2053 = vmatpush1.msra.mxu0 %v1186
  %2054 = vmatprep.subr.mxu0 0.0
  %2055 = vmatpush1.msra.mxu0 0.0
  %2056 = vmatprep.subr.mxu0 0.0
  %2057 = vmatpush1.msra.mxu0 0.0
  %2058 = vmatprep.subr.mxu0 0.0
  %2059 = vmatpush1.msra.mxu0 0.0
  %2060 = vmatprep.subr.mxu0 0.0
  %2061 = vmatpush1.msra.mxu0 0.0
  %2062 = vmatprep.subr.mxu0 0.0
  %2063 = vmatpush1.msra.mxu0 0.0
  %2064 = vmatprep.subr.mxu0 0.0
  %2065 = vmatpush1.msra.mxu0 0.0
  %2066 = vmatprep.subr.mxu0 0.0
  %2067 = vmatpush1.msra.mxu0 0.0
  %2068 = vmatprep.subr.mxu0 0.0
  %2069 = vmatpush1.msra.mxu0 0.0
  %2070 = vmatprep.subr.mxu0 0.0
  %2071 = vmatpush1.msra.mxu0 0.0
  %2072 = vmatprep.subr.mxu0 0.0
  %2073 = vmatpush1.msra.mxu0 0.0
  %2074 = vmatprep.subr.mxu0 0.0
  %2075 = vmatpush1.msra.mxu0 0.0
  %2076 = vmatprep.subr.mxu0 0.0
  %2077 = vmatpush1.msra.mxu0 0.0
  %2078 = vmatprep.subr.mxu0 0.0
  %2079 = vmatpush1.msra.mxu0 0.0
  %2080 = vmatprep.subr.mxu0 0.0
  %2081 = vmatpush1.msra.mxu0 0.0
  %2082 = vmatprep.subr.mxu0 0.0
  %2083 = vmatpush1.msra.mxu0 0.0
  %2084 = vmatprep.subr.mxu0 0.0
  %2085 = vmatpush1.msra.mxu0 0.0
  %2086 = vmatprep.mubr.f32.mxu0 0.0
  %2087 = vmatmul.mubr.f32.gmra.mrb[0].mxu0 %v2020
  %v2088 = vpop.f32.mrb[0].mxu0
  %v2089 = vadd.f32 0.0, %v2088
  %v2090 = vpop.f32.mrb[0].mxu0
  %2091 = vmatprep.mubr.f32.mxu0 0.0
  %2092 = vmatmul.mubr.f32.gmra.mrb[0].mxu0 %v2021
  %v2093 = vpop.f32.mrb[0].mxu0
  %v2094 = vadd.f32 0.0, %v2093
  %v2095 = vpop.f32.mrb[0].mxu0
  %2096 = vdwg.mxu0
  %v2097 = vadd.f32 %v1840, %v2089
  %v2098 = vadd.f32 %v1841, %v2094
  %v2099 = vld [vmem:[%s3 + $0xf] sm:$0x1]
  %v2100 = vlaneseq
  %v2101 = vshrl.u32 %v2100, 7
  %v2102 = vsub.s32 0, %v2101
  %v2103 = vrot.slane %v2099, %v2102
  %v2104 = vadd.f32 %v2097, %v2103
  %v2105 = vadd.f32 %v2098, %v2103
  %s2106 = scalar_lea.vmem %s6, 64
  %v2107 = vld [vmem:[%s2106] sm:$0xff]
  %v2108 = vld [vmem:[%s2106 + $0x8] sm:$0xff]
  %v2109 = vld [vmem:[%s2106 + $0x10] sm:$0xff]
  %v2110 = vld [vmem:[%s2106 + $0x18] sm:$0xff]
  %v2111 = vld [vmem:[%s2106 + $0x20] sm:$0xff]
  %v2112 = vld [vmem:[%s2106 + $0x28] sm:$0xff]
  %v2113 = vld [vmem:[%s2106 + $0x30] sm:$0xff]
  %v2114 = vld [vmem:[%s2106 + $0x38] sm:$0xff]
  %s2115 = scalar_lea.vmem %s7, 128
  %v2116 = vld [vmem:[%s2115] sm:$0xff]
  %v2117 = vld [vmem:[%s2115 + $0x8] sm:$0xff]
  %v2118 = vld [vmem:[%s2115 + $0x10] sm:$0xff]
  %v2119 = vld [vmem:[%s2115 + $0x18] sm:$0xff]
  %v2120 = vld [vmem:[%s2115 + $0x20] sm:$0xff]
  %v2121 = vld [vmem:[%s2115 + $0x28] sm:$0xff]
  %v2122 = vld [vmem:[%s2115 + $0x30] sm:$0xff]
  %v2123 = vld [vmem:[%s2115 + $0x38] sm:$0xff]
  %v2124 = vld [vmem:[%s2115 + $0x40] sm:$0xff]
  %v2125 = vld [vmem:[%s2115 + $0x48] sm:$0xff]
  %v2126 = vld [vmem:[%s2115 + $0x50] sm:$0xff]
  %v2127 = vld [vmem:[%s2115 + $0x58] sm:$0xff]
  %v2128 = vld [vmem:[%s2115 + $0x60] sm:$0xff]
  %v2129 = vld [vmem:[%s2115 + $0x68] sm:$0xff]
  %v2130 = vld [vmem:[%s2115 + $0x70] sm:$0xff]
  %v2131 = vld [vmem:[%s2115 + $0x78] sm:$0xff]
  %v2132 = vld [vmem:[%s3 + $0x10] sm:$0x1]
  %v2133 = vld [vmem:[%s3 + $0x11] sm:$0x1]
  %v2134 = vsel %vm474, %v2104, 0.0
  %2135 = vadd.xlane.f32.xlu0 %v2134
  %v2136 = vpop.xlane.xlu0 %2135
  %v2137 = vsel %vm474, %v2105, 0.0
  %2138 = vadd.xlane.f32.xlu0 %v2137
  %v2139 = vpop.xlane.xlu0 %2138
  %v2140 = vmul.f32 %v2136, %v482
  %v2141 = vmul.f32 %v2139, %v482
  %v2142 = vsub.f32 %v2104, %v2140
  %v2143 = vsub.f32 %v2105, %v2141
  %v2144 = vmul.f32 %v2142, %v2142
  %v2145 = vmul.f32 %v2143, %v2143
  %v2146 = vsel %vm474, %v2144, 0.0
  %2147 = vadd.xlane.f32.xlu0 %v2146
  %v2148 = vpop.xlane.xlu0 %2147
  %v2149 = vsel %vm474, %v2145, 0.0
  %2150 = vadd.xlane.f32.xlu0 %v2149
  %v2151 = vpop.xlane.xlu0 %2150
  %v2152 = vmul.f32 %v2148, %v482
  %v2153 = vmul.f32 %v2151, %v482
  %v2154 = vadd.f32 %v2152, 1e-05
  %v2155 = vadd.f32 %v2153, 1e-05
  %v2156 = vrsqrt.pop %v2154
  %v2157 = vrsqrt.pop %v2155
  %v2158 = vmul.f32 %v2142, %v2156
  %v2159 = vmul.f32 %v2143, %v2157
  %v2160 = vlaneseq
  %v2161 = vshrl.u32 %v2160, 7
  %v2162 = vsub.s32 0, %v2161
  %v2163 = vrot.slane %v2132, %v2162
  %v2164 = vmul.f32 %v2158, %v2163
  %v2165 = vmul.f32 %v2159, %v2163
  %v2166 = vlaneseq
  %v2167 = vshrl.u32 %v2166, 7
  %v2168 = vsub.s32 0, %v2167
  %v2169 = vrot.slane %v2133, %v2168
  %v2170 = vadd.f32 %v2164, %v2169
  %v2171 = vadd.f32 %v2165, %v2169
  %v2172 = vld [vmem:[%s3 + $0x12] sm:$0x1]
  %v2173 = vlaneseq
  %v2174 = vshrl.u32 %v2173, 7
  %v2175 = vsub.s32 0, %v2174
  %v2176 = vrot.slane %v2172, %v2175
  %v2178 = vsel %vm474, %v2170, 0
  %v2181 = vsel %vm474, %v2171, 0
  %2183 = vmatprep.subr.mxu0 0.0
  %2184 = vmatpush1.msra.mxu0 %v2107
  %2185 = vmatprep.subr.mxu0 0.0
  %2186 = vmatpush1.msra.mxu0 %v2109
  %2187 = vmatprep.subr.mxu0 0.0
  %2188 = vmatpush1.msra.mxu0 %v2111
  %2189 = vmatprep.subr.mxu0 0.0
  %2190 = vmatpush1.msra.mxu0 %v2113
  %2191 = vmatprep.subr.mxu0 0.0
  %2192 = vmatpush1.msra.mxu0 0.0
  %2193 = vmatprep.subr.mxu0 0.0
  %2194 = vmatpush1.msra.mxu0 0.0
  %2195 = vmatprep.subr.mxu0 0.0
  %2196 = vmatpush1.msra.mxu0 0.0
  %2197 = vmatprep.subr.mxu0 0.0
  %2198 = vmatpush1.msra.mxu0 0.0
  %2199 = vmatprep.subr.mxu0 0.0
  %2200 = vmatpush1.msra.mxu0 0.0
  %2201 = vmatprep.subr.mxu0 0.0
  %2202 = vmatpush1.msra.mxu0 0.0
  %2203 = vmatprep.subr.mxu0 0.0
  %2204 = vmatpush1.msra.mxu0 0.0
  %2205 = vmatprep.subr.mxu0 0.0
  %2206 = vmatpush1.msra.mxu0 0.0
  %2207 = vmatprep.subr.mxu0 0.0
  %2208 = vmatpush1.msra.mxu0 0.0
  %2209 = vmatprep.subr.mxu0 0.0
  %2210 = vmatpush1.msra.mxu0 0.0
  %2211 = vmatprep.subr.mxu0 0.0
  %2212 = vmatpush1.msra.mxu0 0.0
  %2213 = vmatprep.subr.mxu0 0.0
  %2214 = vmatpush1.msra.mxu0 0.0
  %2215 = vmatprep.subr.mxu0 0.0
  %2216 = vmatpush1.msra.mxu0 0.0
  %2217 = vmatprep.subr.mxu0 0.0
  %2218 = vmatpush1.msra.mxu0 0.0
  %2219 = vmatprep.subr.mxu0 0.0
  %2220 = vmatpush1.msra.mxu0 0.0
  %2221 = vmatprep.subr.mxu0 0.0
  %2222 = vmatpush1.msra.mxu0 0.0
  %2223 = vmatprep.subr.mxu0 0.0
  %2224 = vmatpush1.msra.mxu0 0.0
  %2225 = vmatprep.subr.mxu0 0.0
  %2226 = vmatpush1.msra.mxu0 0.0
  %2227 = vmatprep.subr.mxu0 0.0
  %2228 = vmatpush1.msra.mxu0 0.0
  %2229 = vmatprep.subr.mxu0 0.0
  %2230 = vmatpush1.msra.mxu0 0.0
  %2231 = vmatprep.subr.mxu0 0.0
  %2232 = vmatpush1.msra.mxu0 0.0
  %2233 = vmatprep.subr.mxu0 0.0
  %2234 = vmatpush1.msra.mxu0 0.0
  %2235 = vmatprep.subr.mxu0 0.0
  %2236 = vmatpush1.msra.mxu0 0.0
  %2237 = vmatprep.subr.mxu0 0.0
  %2238 = vmatpush1.msra.mxu0 0.0
  %2239 = vmatprep.subr.mxu0 0.0
  %2240 = vmatpush1.msra.mxu0 0.0
  %2241 = vmatprep.subr.mxu0 0.0
  %2242 = vmatpush1.msra.mxu0 0.0
  %2243 = vmatprep.subr.mxu0 0.0
  %2244 = vmatpush1.msra.mxu0 0.0
  %2245 = vmatprep.subr.mxu0 0.0
  %2246 = vmatpush1.msra.mxu0 0.0
  %2247 = vmatprep.mubr.f32.mxu0 0.0
  %2248 = vmatmul.mubr.f32.gmra.mrb[0].mxu0 %v2178
  %v2249 = vpop.f32.mrb[0].mxu0
  %v2250 = vadd.f32 %v2176, %v2249
  %v2251 = vpop.f32.mrb[0].mxu0
  %2252 = vmatprep.mubr.f32.mxu0 0.0
  %2253 = vmatmul.mubr.f32.gmra.mrb[0].mxu0 %v2181
  %v2254 = vpop.f32.mrb[0].mxu0
  %v2255 = vadd.f32 %v2176, %v2254
  %v2256 = vpop.f32.mrb[0].mxu0
  %2257 = vdwg.mxu0
  %2260 = vrot.lane.b32.xlu0 %v2250, 96
  %v2261 = vpop.permute.xlu0 %2260
  %2262 = vrot.lane.b32.xlu0 %v2255, 96
  %v2263 = vpop.permute.xlu0 %2262
  %v2264 = vsel %vm1319, %v2250, 0
  %v2266 = vsel %vm1319, %v2255, 0
  %v2268 = vsel %vm1319, %v2261, 0
  %v2270 = vsel %vm1319, %v2263, 0
  %2272 = vmatprep.subr.mxu0 0.0
  %2273 = vmatpush1.xpose.msra.mxu0 %v2268
  %2274 = vmatprep.subr.mxu0 0.0
  %2275 = vmatpush1.xpose.msra.mxu0 %v2270
  %2276 = vmatprep.subr.mxu0 0.0
  %2277 = vmatpush1.xpose.msra.mxu0 0.0
  %2278 = vmatprep.subr.mxu0 0.0
  %2279 = vmatpush1.xpose.msra.mxu0 0.0
  %2280 = vmatprep.subr.mxu0 0.0
  %2281 = vmatpush1.xpose.msra.mxu0 0.0
  %2282 = vmatprep.subr.mxu0 0.0
  %2283 = vmatpush1.xpose.msra.mxu0 0.0
  %2284 = vmatprep.subr.mxu0 0.0
  %2285 = vmatpush1.xpose.msra.mxu0 0.0
  %2286 = vmatprep.subr.mxu0 0.0
  %2287 = vmatpush1.xpose.msra.mxu0 0.0
  %2288 = vmatprep.subr.mxu0 0.0
  %2289 = vmatpush1.xpose.msra.mxu0 0.0
  %2290 = vmatprep.subr.mxu0 0.0
  %2291 = vmatpush1.xpose.msra.mxu0 0.0
  %2292 = vmatprep.subr.mxu0 0.0
  %2293 = vmatpush1.xpose.msra.mxu0 0.0
  %2294 = vmatprep.subr.mxu0 0.0
  %2295 = vmatpush1.xpose.msra.mxu0 0.0
  %2296 = vmatprep.subr.mxu0 0.0
  %2297 = vmatpush1.xpose.msra.mxu0 0.0
  %2298 = vmatprep.subr.mxu0 0.0
  %2299 = vmatpush1.xpose.msra.mxu0 0.0
  %2300 = vmatprep.subr.mxu0 0.0
  %2301 = vmatpush1.xpose.msra.mxu0 0.0
  %2302 = vmatprep.subr.mxu0 0.0
  %2303 = vmatpush1.xpose.msra.mxu0 0.0
  %2304 = vmatprep.subr.mxu0 0.0
  %2305 = vmatpush1.xpose.msra.mxu0 0.0
  %2306 = vmatprep.subr.mxu0 0.0
  %2307 = vmatpush1.xpose.msra.mxu0 0.0
  %2308 = vmatprep.subr.mxu0 0.0
  %2309 = vmatpush1.xpose.msra.mxu0 0.0
  %2310 = vmatprep.subr.mxu0 0.0
  %2311 = vmatpush1.xpose.msra.mxu0 0.0
  %2312 = vmatprep.subr.mxu0 0.0
  %2313 = vmatpush1.xpose.msra.mxu0 0.0
  %2314 = vmatprep.subr.mxu0 0.0
  %2315 = vmatpush1.xpose.msra.mxu0 0.0
  %2316 = vmatprep.subr.mxu0 0.0
  %2317 = vmatpush1.xpose.msra.mxu0 0.0
  %2318 = vmatprep.subr.mxu0 0.0
  %2319 = vmatpush1.xpose.msra.mxu0 0.0
  %2320 = vmatprep.subr.mxu0 0.0
  %2321 = vmatpush1.xpose.msra.mxu0 0.0
  %2322 = vmatprep.subr.mxu0 0.0
  %2323 = vmatpush1.xpose.msra.mxu0 0.0
  %2324 = vmatprep.subr.mxu0 0.0
  %2325 = vmatpush1.xpose.msra.mxu0 0.0
  %2326 = vmatprep.subr.mxu0 0.0
  %2327 = vmatpush1.xpose.msra.mxu0 0.0
  %2328 = vmatprep.subr.mxu0 0.0
  %2329 = vmatpush1.xpose.msra.mxu0 0.0
  %2330 = vmatprep.subr.mxu0 0.0
  %2331 = vmatpush1.xpose.msra.mxu0 0.0
  %2332 = vmatprep.subr.mxu0 0.0
  %2333 = vmatpush1.xpose.msra.mxu0 0.0
  %2334 = vmatprep.subr.mxu0 0.0
  %2335 = vmatpush1.xpose.msra.mxu0 0.0
  %2336 = vmatprep.mubr.f32.mxu0 0.0
  %2337 = vmatmul.mubr.f32.gmra.mrb[0].mxu0 %v2264
  %v2338 = vpop.f32.mrb[0].mxu0
  %v2339 = vadd.f32 0.0, %v2338
  %v2340 = vpop.f32.mrb[0].mxu0
  %2341 = vmatprep.mubr.f32.mxu0 0.0
  %2342 = vmatmul.mubr.f32.gmra.mrb[0].mxu0 %v2266
  %v2343 = vpop.f32.mrb[0].mxu0
  %v2344 = vadd.f32 0.0, %v2343
  %v2345 = vpop.f32.mrb[0].mxu0
  %2346 = vdwg.mxu0
  %v2347 = vmul.f32 %v2339, 0.25
  %v2348 = vmul.f32 %v2344, 0.25
  %v2349 = vadd.f32 %v2347, %v1406
  %v2350 = vadd.f32 %v2348, %v1408
  %v2351 = vsel %vm1319, %v2349, -inf
  %2352 = vmax.xlane.f32.xlu0 %v2351
  %v2353 = vpop.xlane.xlu0 %2352
  %v2354 = vsel %vm1319, %v2350, -inf
  %2355 = vmax.xlane.f32.xlu0 %v2354
  %v2356 = vpop.xlane.xlu0 %2355
  %v2357 = vsub.f32 %v2349, %v2353
  %v2358 = vsub.f32 %v2350, %v2356
  %v2359 = vmul.f32 %v2357, 1.442695
  %v2360 = vpow.pop %v2359
  %v2361 = vmul.f32 %v2358, 1.442695
  %v2362 = vpow.pop %v2361
  %v2363 = vsel %vm1319, %v2360, 0.0
  %2364 = vadd.xlane.f32.xlu0 %v2363
  %v2365 = vpop.xlane.xlu0 %2364
  %v2366 = vsel %vm1319, %v2362, 0.0
  %2367 = vadd.xlane.f32.xlu0 %v2366
  %v2368 = vpop.xlane.xlu0 %2367
  %v2369 = vrcp.pop %v2365
  %v2370 = vmul.f32 %v2360, %v2369
  %v2371 = vrcp.pop %v2368
  %v2372 = vmul.f32 %v2362, %v2371
  %2373 = vrot.lane.b32.xlu0 %v2250, 64
  %v2374 = vpop.permute.xlu0 %2373
  %2375 = vrot.lane.b32.xlu0 %v2255, 64
  %v2376 = vpop.permute.xlu0 %2375
  %v2380 = vsel %vm1319, %v2370, 0
  %v2383 = vsel %vm1319, %v2372, 0
  %2385 = vmatprep.subr.mxu0 0.0
  %2386 = vmatpush1.msra.mxu0 %v2374
  %2387 = vmatprep.subr.mxu0 0.0
  %2388 = vmatpush1.msra.mxu0 %v2376
  %2389 = vmatprep.subr.mxu0 0.0
  %2390 = vmatpush1.msra.mxu0 0.0
  %2391 = vmatprep.subr.mxu0 0.0
  %2392 = vmatpush1.msra.mxu0 0.0
  %2393 = vmatprep.subr.mxu0 0.0
  %2394 = vmatpush1.msra.mxu0 0.0
  %2395 = vmatprep.subr.mxu0 0.0
  %2396 = vmatpush1.msra.mxu0 0.0
  %2397 = vmatprep.subr.mxu0 0.0
  %2398 = vmatpush1.msra.mxu0 0.0
  %2399 = vmatprep.subr.mxu0 0.0
  %2400 = vmatpush1.msra.mxu0 0.0
  %2401 = vmatprep.subr.mxu0 0.0
  %2402 = vmatpush1.msra.mxu0 0.0
  %2403 = vmatprep.subr.mxu0 0.0
  %2404 = vmatpush1.msra.mxu0 0.0
  %2405 = vmatprep.subr.mxu0 0.0
  %2406 = vmatpush1.msra.mxu0 0.0
  %2407 = vmatprep.subr.mxu0 0.0
  %2408 = vmatpush1.msra.mxu0 0.0
  %2409 = vmatprep.subr.mxu0 0.0
  %2410 = vmatpush1.msra.mxu0 0.0
  %2411 = vmatprep.subr.mxu0 0.0
  %2412 = vmatpush1.msra.mxu0 0.0
  %2413 = vmatprep.subr.mxu0 0.0
  %2414 = vmatpush1.msra.mxu0 0.0
  %2415 = vmatprep.subr.mxu0 0.0
  %2416 = vmatpush1.msra.mxu0 0.0
  %2417 = vmatprep.subr.mxu0 0.0
  %2418 = vmatpush1.msra.mxu0 0.0
  %2419 = vmatprep.subr.mxu0 0.0
  %2420 = vmatpush1.msra.mxu0 0.0
  %2421 = vmatprep.subr.mxu0 0.0
  %2422 = vmatpush1.msra.mxu0 0.0
  %2423 = vmatprep.subr.mxu0 0.0
  %2424 = vmatpush1.msra.mxu0 0.0
  %2425 = vmatprep.subr.mxu0 0.0
  %2426 = vmatpush1.msra.mxu0 0.0
  %2427 = vmatprep.subr.mxu0 0.0
  %2428 = vmatpush1.msra.mxu0 0.0
  %2429 = vmatprep.subr.mxu0 0.0
  %2430 = vmatpush1.msra.mxu0 0.0
  %2431 = vmatprep.subr.mxu0 0.0
  %2432 = vmatpush1.msra.mxu0 0.0
  %2433 = vmatprep.subr.mxu0 0.0
  %2434 = vmatpush1.msra.mxu0 0.0
  %2435 = vmatprep.subr.mxu0 0.0
  %2436 = vmatpush1.msra.mxu0 0.0
  %2437 = vmatprep.subr.mxu0 0.0
  %2438 = vmatpush1.msra.mxu0 0.0
  %2439 = vmatprep.subr.mxu0 0.0
  %2440 = vmatpush1.msra.mxu0 0.0
  %2441 = vmatprep.subr.mxu0 0.0
  %2442 = vmatpush1.msra.mxu0 0.0
  %2443 = vmatprep.subr.mxu0 0.0
  %2444 = vmatpush1.msra.mxu0 0.0
  %2445 = vmatprep.subr.mxu0 0.0
  %2446 = vmatpush1.msra.mxu0 0.0
  %2447 = vmatprep.subr.mxu0 0.0
  %2448 = vmatpush1.msra.mxu0 0.0
  %2449 = vmatprep.mubr.f32.mxu0 0.0
  %2450 = vmatmul.mubr.f32.gmra.mrb[0].mxu0 %v2380
  %v2451 = vpop.f32.mrb[0].mxu0
  %v2452 = vadd.f32 0.0, %v2451
  %v2453 = vpop.f32.mrb[0].mxu0
  %2454 = vmatprep.mubr.f32.mxu0 0.0
  %2455 = vmatmul.mubr.f32.gmra.mrb[0].mxu0 %v2383
  %v2456 = vpop.f32.mrb[0].mxu0
  %v2457 = vadd.f32 0.0, %v2456
  %v2458 = vpop.f32.mrb[0].mxu0
  %2459 = vdwg.mxu0
  %2460 = vrot.lane.b32.xlu0 %v2250, 112
  %v2461 = vpop.permute.xlu0 %2460
  %2462 = vrot.lane.b32.xlu0 %v2255, 112
  %v2463 = vpop.permute.xlu0 %2462
  %2464 = vrot.lane.b32.xlu0 %v2250, 80
  %v2465 = vpop.permute.xlu0 %2464
  %2466 = vrot.lane.b32.xlu0 %v2255, 80
  %v2467 = vpop.permute.xlu0 %2466
  %v2468 = vsel %vm1319, %v2461, 0
  %v2470 = vsel %vm1319, %v2463, 0
  %v2472 = vsel %vm1319, %v2465, 0
  %v2474 = vsel %vm1319, %v2467, 0
  %2476 = vmatprep.subr.mxu0 0.0
  %2477 = vmatpush1.xpose.msra.mxu0 %v2472
  %2478 = vmatprep.subr.mxu0 0.0
  %2479 = vmatpush1.xpose.msra.mxu0 %v2474
  %2480 = vmatprep.subr.mxu0 0.0
  %2481 = vmatpush1.xpose.msra.mxu0 0.0
  %2482 = vmatprep.subr.mxu0 0.0
  %2483 = vmatpush1.xpose.msra.mxu0 0.0
  %2484 = vmatprep.subr.mxu0 0.0
  %2485 = vmatpush1.xpose.msra.mxu0 0.0
  %2486 = vmatprep.subr.mxu0 0.0
  %2487 = vmatpush1.xpose.msra.mxu0 0.0
  %2488 = vmatprep.subr.mxu0 0.0
  %2489 = vmatpush1.xpose.msra.mxu0 0.0
  %2490 = vmatprep.subr.mxu0 0.0
  %2491 = vmatpush1.xpose.msra.mxu0 0.0
  %2492 = vmatprep.subr.mxu0 0.0
  %2493 = vmatpush1.xpose.msra.mxu0 0.0
  %2494 = vmatprep.subr.mxu0 0.0
  %2495 = vmatpush1.xpose.msra.mxu0 0.0
  %2496 = vmatprep.subr.mxu0 0.0
  %2497 = vmatpush1.xpose.msra.mxu0 0.0
  %2498 = vmatprep.subr.mxu0 0.0
  %2499 = vmatpush1.xpose.msra.mxu0 0.0
  %2500 = vmatprep.subr.mxu0 0.0
  %2501 = vmatpush1.xpose.msra.mxu0 0.0
  %2502 = vmatprep.subr.mxu0 0.0
  %2503 = vmatpush1.xpose.msra.mxu0 0.0
  %2504 = vmatprep.subr.mxu0 0.0
  %2505 = vmatpush1.xpose.msra.mxu0 0.0
  %2506 = vmatprep.subr.mxu0 0.0
  %2507 = vmatpush1.xpose.msra.mxu0 0.0
  %2508 = vmatprep.subr.mxu0 0.0
  %2509 = vmatpush1.xpose.msra.mxu0 0.0
  %2510 = vmatprep.subr.mxu0 0.0
  %2511 = vmatpush1.xpose.msra.mxu0 0.0
  %2512 = vmatprep.subr.mxu0 0.0
  %2513 = vmatpush1.xpose.msra.mxu0 0.0
  %2514 = vmatprep.subr.mxu0 0.0
  %2515 = vmatpush1.xpose.msra.mxu0 0.0
  %2516 = vmatprep.subr.mxu0 0.0
  %2517 = vmatpush1.xpose.msra.mxu0 0.0
  %2518 = vmatprep.subr.mxu0 0.0
  %2519 = vmatpush1.xpose.msra.mxu0 0.0
  %2520 = vmatprep.subr.mxu0 0.0
  %2521 = vmatpush1.xpose.msra.mxu0 0.0
  %2522 = vmatprep.subr.mxu0 0.0
  %2523 = vmatpush1.xpose.msra.mxu0 0.0
  %2524 = vmatprep.subr.mxu0 0.0
  %2525 = vmatpush1.xpose.msra.mxu0 0.0
  %2526 = vmatprep.subr.mxu0 0.0
  %2527 = vmatpush1.xpose.msra.mxu0 0.0
  %2528 = vmatprep.subr.mxu0 0.0
  %2529 = vmatpush1.xpose.msra.mxu0 0.0
  %2530 = vmatprep.subr.mxu0 0.0
  %2531 = vmatpush1.xpose.msra.mxu0 0.0
  %2532 = vmatprep.subr.mxu0 0.0
  %2533 = vmatpush1.xpose.msra.mxu0 0.0
  %2534 = vmatprep.subr.mxu0 0.0
  %2535 = vmatpush1.xpose.msra.mxu0 0.0
  %2536 = vmatprep.subr.mxu0 0.0
  %2537 = vmatpush1.xpose.msra.mxu0 0.0
  %2538 = vmatprep.subr.mxu0 0.0
  %2539 = vmatpush1.xpose.msra.mxu0 0.0
  %2540 = vmatprep.mubr.f32.mxu0 0.0
  %2541 = vmatmul.mubr.f32.gmra.mrb[0].mxu0 %v2468
  %v2542 = vpop.f32.mrb[0].mxu0
  %v2543 = vadd.f32 0.0, %v2542
  %v2544 = vpop.f32.mrb[0].mxu0
  %2545 = vmatprep.mubr.f32.mxu0 0.0
  %2546 = vmatmul.mubr.f32.gmra.mrb[0].mxu0 %v2470
  %v2547 = vpop.f32.mrb[0].mxu0
  %v2548 = vadd.f32 0.0, %v2547
  %v2549 = vpop.f32.mrb[0].mxu0
  %2550 = vdwg.mxu0
  %v2551 = vmul.f32 %v2543, 0.25
  %v2552 = vmul.f32 %v2548, 0.25
  %v2553 = vadd.f32 %v2551, %v1406
  %v2554 = vadd.f32 %v2552, %v1408
  %v2555 = vsel %vm1319, %v2553, -inf
  %2556 = vmax.xlane.f32.xlu0 %v2555
  %v2557 = vpop.xlane.xlu0 %2556
  %v2558 = vsel %vm1319, %v2554, -inf
  %2559 = vmax.xlane.f32.xlu0 %v2558
  %v2560 = vpop.xlane.xlu0 %2559
  %v2561 = vsub.f32 %v2553, %v2557
  %v2562 = vsub.f32 %v2554, %v2560
  %v2563 = vmul.f32 %v2561, 1.442695
  %v2564 = vpow.pop %v2563
  %v2565 = vmul.f32 %v2562, 1.442695
  %v2566 = vpow.pop %v2565
  %v2567 = vsel %vm1319, %v2564, 0.0
  %2568 = vadd.xlane.f32.xlu0 %v2567
  %v2569 = vpop.xlane.xlu0 %2568
  %v2570 = vsel %vm1319, %v2566, 0.0
  %2571 = vadd.xlane.f32.xlu0 %v2570
  %v2572 = vpop.xlane.xlu0 %2571
  %v2573 = vrcp.pop %v2569
  %v2574 = vmul.f32 %v2564, %v2573
  %v2575 = vrcp.pop %v2572
  %v2576 = vmul.f32 %v2566, %v2575
  %2577 = vrot.lane.b32.xlu0 %v2250, 48
  %v2578 = vpop.permute.xlu0 %2577
  %2579 = vrot.lane.b32.xlu0 %v2255, 48
  %v2580 = vpop.permute.xlu0 %2579
  %v2584 = vsel %vm1319, %v2574, 0
  %v2587 = vsel %vm1319, %v2576, 0
  %2589 = vmatprep.subr.mxu0 0.0
  %2590 = vmatpush1.msra.mxu0 %v2578
  %2591 = vmatprep.subr.mxu0 0.0
  %2592 = vmatpush1.msra.mxu0 %v2580
  %2593 = vmatprep.subr.mxu0 0.0
  %2594 = vmatpush1.msra.mxu0 0.0
  %2595 = vmatprep.subr.mxu0 0.0
  %2596 = vmatpush1.msra.mxu0 0.0
  %2597 = vmatprep.subr.mxu0 0.0
  %2598 = vmatpush1.msra.mxu0 0.0
  %2599 = vmatprep.subr.mxu0 0.0
  %2600 = vmatpush1.msra.mxu0 0.0
  %2601 = vmatprep.subr.mxu0 0.0
  %2602 = vmatpush1.msra.mxu0 0.0
  %2603 = vmatprep.subr.mxu0 0.0
  %2604 = vmatpush1.msra.mxu0 0.0
  %2605 = vmatprep.subr.mxu0 0.0
  %2606 = vmatpush1.msra.mxu0 0.0
  %2607 = vmatprep.subr.mxu0 0.0
  %2608 = vmatpush1.msra.mxu0 0.0
  %2609 = vmatprep.subr.mxu0 0.0
  %2610 = vmatpush1.msra.mxu0 0.0
  %2611 = vmatprep.subr.mxu0 0.0
  %2612 = vmatpush1.msra.mxu0 0.0
  %2613 = vmatprep.subr.mxu0 0.0
  %2614 = vmatpush1.msra.mxu0 0.0
  %2615 = vmatprep.subr.mxu0 0.0
  %2616 = vmatpush1.msra.mxu0 0.0
  %2617 = vmatprep.subr.mxu0 0.0
  %2618 = vmatpush1.msra.mxu0 0.0
  %2619 = vmatprep.subr.mxu0 0.0
  %2620 = vmatpush1.msra.mxu0 0.0
  %2621 = vmatprep.subr.mxu0 0.0
  %2622 = vmatpush1.msra.mxu0 0.0
  %2623 = vmatprep.subr.mxu0 0.0
  %2624 = vmatpush1.msra.mxu0 0.0
  %2625 = vmatprep.subr.mxu0 0.0
  %2626 = vmatpush1.msra.mxu0 0.0
  %2627 = vmatprep.subr.mxu0 0.0
  %2628 = vmatpush1.msra.mxu0 0.0
  %2629 = vmatprep.subr.mxu0 0.0
  %2630 = vmatpush1.msra.mxu0 0.0
  %2631 = vmatprep.subr.mxu0 0.0
  %2632 = vmatpush1.msra.mxu0 0.0
  %2633 = vmatprep.subr.mxu0 0.0
  %2634 = vmatpush1.msra.mxu0 0.0
  %2635 = vmatprep.subr.mxu0 0.0
  %2636 = vmatpush1.msra.mxu0 0.0
  %2637 = vmatprep.subr.mxu0 0.0
  %2638 = vmatpush1.msra.mxu0 0.0
  %2639 = vmatprep.subr.mxu0 0.0
  %2640 = vmatpush1.msra.mxu0 0.0
  %2641 = vmatprep.subr.mxu0 0.0
  %2642 = vmatpush1.msra.mxu0 0.0
  %2643 = vmatprep.subr.mxu0 0.0
  %2644 = vmatpush1.msra.mxu0 0.0
  %2645 = vmatprep.subr.mxu0 0.0
  %2646 = vmatpush1.msra.mxu0 0.0
  %2647 = vmatprep.subr.mxu0 0.0
  %2648 = vmatpush1.msra.mxu0 0.0
  %2649 = vmatprep.subr.mxu0 0.0
  %2650 = vmatpush1.msra.mxu0 0.0
  %2651 = vmatprep.subr.mxu0 0.0
  %2652 = vmatpush1.msra.mxu0 0.0
  %2653 = vmatprep.mubr.f32.mxu0 0.0
  %2654 = vmatmul.mubr.f32.gmra.mrb[0].mxu0 %v2584
  %v2655 = vpop.f32.mrb[0].mxu0
  %v2656 = vadd.f32 0.0, %v2655
  %v2657 = vpop.f32.mrb[0].mxu0
  %2658 = vmatprep.mubr.f32.mxu0 0.0
  %2659 = vmatmul.mubr.f32.gmra.mrb[0].mxu0 %v2587
  %v2660 = vpop.f32.mrb[0].mxu0
  %v2661 = vadd.f32 0.0, %v2660
  %v2662 = vpop.f32.mrb[0].mxu0
  %2663 = vdwg.mxu0
  %2666 = vrot.lane.b32.xlu0 %v2656, 16
  %v2667 = vpop.permute.xlu0 %2666
  %2668 = vrot.lane.b32.xlu0 %v2661, 16
  %v2669 = vpop.permute.xlu0 %2668
  %v2672 = vsel %vm1319, %v2452, %v2667
  %v2673 = vsel %vm1319, %v2457, %v2669
  %2678 = vrot.lane.b32.xlu0 %v2107, 32
  %v2679 = vpop.permute.xlu0 %2678
  %2680 = vrot.lane.b32.xlu0 %v2109, 32
  %v2681 = vpop.permute.xlu0 %2680
  %2682 = vrot.lane.b32.xlu0 %v2111, 32
  %v2683 = vpop.permute.xlu0 %2682
  %2684 = vrot.lane.b32.xlu0 %v2113, 32
  %v2685 = vpop.permute.xlu0 %2684
  %v2691 = vsel %vm474, %v2672, 0
  %v2694 = vsel %vm474, %v2673, 0
  %2696 = vmatprep.subr.mxu0 0.0
  %2697 = vmatpush1.msra.mxu0 %v2679
  %2698 = vmatprep.subr.mxu0 0.0
  %2699 = vmatpush1.msra.mxu0 %v2681
  %2700 = vmatprep.subr.mxu0 0.0
  %2701 = vmatpush1.msra.mxu0 %v2683
  %2702 = vmatprep.subr.mxu0 0.0
  %2703 = vmatpush1.msra.mxu0 %v2685
  %2704 = vmatprep.subr.mxu0 0.0
  %2705 = vmatpush1.msra.mxu0 0.0
  %2706 = vmatprep.subr.mxu0 0.0
  %2707 = vmatpush1.msra.mxu0 0.0
  %2708 = vmatprep.subr.mxu0 0.0
  %2709 = vmatpush1.msra.mxu0 0.0
  %2710 = vmatprep.subr.mxu0 0.0
  %2711 = vmatpush1.msra.mxu0 0.0
  %2712 = vmatprep.subr.mxu0 0.0
  %2713 = vmatpush1.msra.mxu0 0.0
  %2714 = vmatprep.subr.mxu0 0.0
  %2715 = vmatpush1.msra.mxu0 0.0
  %2716 = vmatprep.subr.mxu0 0.0
  %2717 = vmatpush1.msra.mxu0 0.0
  %2718 = vmatprep.subr.mxu0 0.0
  %2719 = vmatpush1.msra.mxu0 0.0
  %2720 = vmatprep.subr.mxu0 0.0
  %2721 = vmatpush1.msra.mxu0 0.0
  %2722 = vmatprep.subr.mxu0 0.0
  %2723 = vmatpush1.msra.mxu0 0.0
  %2724 = vmatprep.subr.mxu0 0.0
  %2725 = vmatpush1.msra.mxu0 0.0
  %2726 = vmatprep.subr.mxu0 0.0
  %2727 = vmatpush1.msra.mxu0 0.0
  %2728 = vmatprep.subr.mxu0 0.0
  %2729 = vmatpush1.msra.mxu0 0.0
  %2730 = vmatprep.subr.mxu0 0.0
  %2731 = vmatpush1.msra.mxu0 0.0
  %2732 = vmatprep.subr.mxu0 0.0
  %2733 = vmatpush1.msra.mxu0 0.0
  %2734 = vmatprep.subr.mxu0 0.0
  %2735 = vmatpush1.msra.mxu0 0.0
  %2736 = vmatprep.subr.mxu0 0.0
  %2737 = vmatpush1.msra.mxu0 0.0
  %2738 = vmatprep.subr.mxu0 0.0
  %2739 = vmatpush1.msra.mxu0 0.0
  %2740 = vmatprep.subr.mxu0 0.0
  %2741 = vmatpush1.msra.mxu0 0.0
  %2742 = vmatprep.subr.mxu0 0.0
  %2743 = vmatpush1.msra.mxu0 0.0
  %2744 = vmatprep.subr.mxu0 0.0
  %2745 = vmatpush1.msra.mxu0 0.0
  %2746 = vmatprep.subr.mxu0 0.0
  %2747 = vmatpush1.msra.mxu0 0.0
  %2748 = vmatprep.subr.mxu0 0.0
  %2749 = vmatpush1.msra.mxu0 0.0
  %2750 = vmatprep.subr.mxu0 0.0
  %2751 = vmatpush1.msra.mxu0 0.0
  %2752 = vmatprep.subr.mxu0 0.0
  %2753 = vmatpush1.msra.mxu0 0.0
  %2754 = vmatprep.subr.mxu0 0.0
  %2755 = vmatpush1.msra.mxu0 0.0
  %2756 = vmatprep.subr.mxu0 0.0
  %2757 = vmatpush1.msra.mxu0 0.0
  %2758 = vmatprep.subr.mxu0 0.0
  %2759 = vmatpush1.msra.mxu0 0.0
  %2760 = vmatprep.mubr.f32.mxu0 0.0
  %2761 = vmatmul.mubr.f32.gmra.mrb[0].mxu0 %v2691
  %v2762 = vpop.f32.mrb[0].mxu0
  %v2763 = vadd.f32 0.0, %v2762
  %v2764 = vpop.f32.mrb[0].mxu0
  %2765 = vmatprep.mubr.f32.mxu0 0.0
  %2766 = vmatmul.mubr.f32.gmra.mrb[0].mxu0 %v2694
  %v2767 = vpop.f32.mrb[0].mxu0
  %v2768 = vadd.f32 0.0, %v2767
  %v2769 = vpop.f32.mrb[0].mxu0
  %2770 = vdwg.mxu0
  %v2771 = vadd.f32 %v2104, %v2763
  %v2772 = vadd.f32 %v2105, %v2768
  %v2773 = vld [vmem:[%s3 + $0x13] sm:$0x1]
  %v2774 = vlaneseq
  %v2775 = vshrl.u32 %v2774, 7
  %v2776 = vsub.s32 0, %v2775
  %v2777 = vrot.slane %v2773, %v2776
  %v2778 = vadd.f32 %v2771, %v2777
  %v2779 = vadd.f32 %v2772, %v2777
  %v2780 = vld [vmem:[%s3 + $0x14] sm:$0x1]
  %v2781 = vld [vmem:[%s3 + $0x15] sm:$0x1]
  %v2782 = vsel %vm474, %v2778, 0.0
  %2783 = vadd.xlane.f32.xlu0 %v2782
  %v2784 = vpop.xlane.xlu0 %2783
  %v2785 = vsel %vm474, %v2779, 0.0
  %2786 = vadd.xlane.f32.xlu0 %v2785
  %v2787 = vpop.xlane.xlu0 %2786
  %v2788 = vmul.f32 %v2784, %v482
  %v2789 = vmul.f32 %v2787, %v482
  %v2790 = vsub.f32 %v2778, %v2788
  %v2791 = vsub.f32 %v2779, %v2789
  %v2792 = vmul.f32 %v2790, %v2790
  %v2793 = vmul.f32 %v2791, %v2791
  %v2794 = vsel %vm474, %v2792, 0.0
  %2795 = vadd.xlane.f32.xlu0 %v2794
  %v2796 = vpop.xlane.xlu0 %2795
  %v2797 = vsel %vm474, %v2793, 0.0
  %2798 = vadd.xlane.f32.xlu0 %v2797
  %v2799 = vpop.xlane.xlu0 %2798
  %v2800 = vmul.f32 %v2796, %v482
  %v2801 = vmul.f32 %v2799, %v482
  %v2802 = vadd.f32 %v2800, 1e-05
  %v2803 = vadd.f32 %v2801, 1e-05
  %v2804 = vrsqrt.pop %v2802
  %v2805 = vrsqrt.pop %v2803
  %v2806 = vmul.f32 %v2790, %v2804
  %v2807 = vmul.f32 %v2791, %v2805
  %v2808 = vlaneseq
  %v2809 = vshrl.u32 %v2808, 7
  %v2810 = vsub.s32 0, %v2809
  %v2811 = vrot.slane %v2780, %v2810
  %v2812 = vmul.f32 %v2806, %v2811
  %v2813 = vmul.f32 %v2807, %v2811
  %v2814 = vlaneseq
  %v2815 = vshrl.u32 %v2814, 7
  %v2816 = vsub.s32 0, %v2815
  %v2817 = vrot.slane %v2781, %v2816
  %v2818 = vadd.f32 %v2812, %v2817
  %v2819 = vadd.f32 %v2813, %v2817
  %v2820 = vld [vmem:[%s3 + $0x16] sm:$0x1]
  %v2821 = vlaneseq
  %v2822 = vshrl.u32 %v2821, 7
  %v2823 = vsub.s32 0, %v2822
  %v2824 = vrot.slane %v2820, %v2823
  %v2826 = vsel %vm474, %v2818, 0
  %v2829 = vsel %vm474, %v2819, 0
  %2831 = vmatprep.subr.mxu0 0.0
  %2832 = vmatpush1.msra.mxu0 %v2108
  %2833 = vmatprep.subr.mxu0 0.0
  %2834 = vmatpush1.msra.mxu0 %v2110
  %2835 = vmatprep.subr.mxu0 0.0
  %2836 = vmatpush1.msra.mxu0 %v2112
  %2837 = vmatprep.subr.mxu0 0.0
  %2838 = vmatpush1.msra.mxu0 %v2114
  %2839 = vmatprep.subr.mxu0 0.0
  %2840 = vmatpush1.msra.mxu0 0.0
  %2841 = vmatprep.subr.mxu0 0.0
  %2842 = vmatpush1.msra.mxu0 0.0
  %2843 = vmatprep.subr.mxu0 0.0
  %2844 = vmatpush1.msra.mxu0 0.0
  %2845 = vmatprep.subr.mxu0 0.0
  %2846 = vmatpush1.msra.mxu0 0.0
  %2847 = vmatprep.subr.mxu0 0.0
  %2848 = vmatpush1.msra.mxu0 0.0
  %2849 = vmatprep.subr.mxu0 0.0
  %2850 = vmatpush1.msra.mxu0 0.0
  %2851 = vmatprep.subr.mxu0 0.0
  %2852 = vmatpush1.msra.mxu0 0.0
  %2853 = vmatprep.subr.mxu0 0.0
  %2854 = vmatpush1.msra.mxu0 0.0
  %2855 = vmatprep.subr.mxu0 0.0
  %2856 = vmatpush1.msra.mxu0 0.0
  %2857 = vmatprep.subr.mxu0 0.0
  %2858 = vmatpush1.msra.mxu0 0.0
  %2859 = vmatprep.subr.mxu0 0.0
  %2860 = vmatpush1.msra.mxu0 0.0
  %2861 = vmatprep.subr.mxu0 0.0
  %2862 = vmatpush1.msra.mxu0 0.0
  %2863 = vmatprep.subr.mxu0 0.0
  %2864 = vmatpush1.msra.mxu0 0.0
  %2865 = vmatprep.subr.mxu0 0.0
  %2866 = vmatpush1.msra.mxu0 0.0
  %2867 = vmatprep.subr.mxu0 0.0
  %2868 = vmatpush1.msra.mxu0 0.0
  %2869 = vmatprep.subr.mxu0 0.0
  %2870 = vmatpush1.msra.mxu0 0.0
  %2871 = vmatprep.subr.mxu0 0.0
  %2872 = vmatpush1.msra.mxu0 0.0
  %2873 = vmatprep.subr.mxu0 0.0
  %2874 = vmatpush1.msra.mxu0 0.0
  %2875 = vmatprep.subr.mxu0 0.0
  %2876 = vmatpush1.msra.mxu0 0.0
  %2877 = vmatprep.subr.mxu0 0.0
  %2878 = vmatpush1.msra.mxu0 0.0
  %2879 = vmatprep.subr.mxu0 0.0
  %2880 = vmatpush1.msra.mxu0 0.0
  %2881 = vmatprep.subr.mxu0 0.0
  %2882 = vmatpush1.msra.mxu0 0.0
  %2883 = vmatprep.subr.mxu0 0.0
  %2884 = vmatpush1.msra.mxu0 0.0
  %2885 = vmatprep.subr.mxu0 0.0
  %2886 = vmatpush1.msra.mxu0 0.0
  %2887 = vmatprep.subr.mxu0 0.0
  %2888 = vmatpush1.msra.mxu0 0.0
  %2889 = vmatprep.subr.mxu0 0.0
  %2890 = vmatpush1.msra.mxu0 0.0
  %2891 = vmatprep.subr.mxu0 0.0
  %2892 = vmatpush1.msra.mxu0 0.0
  %2893 = vmatprep.subr.mxu0 0.0
  %2894 = vmatpush1.msra.mxu0 0.0
  %2895 = vmatprep.mubr.f32.mxu0 0.0
  %2896 = vmatmul.mubr.f32.gmra.mrb[0].mxu0 %v2826
  %v2897 = vpop.f32.mrb[0].mxu0
  %v2898 = vadd.f32 %v2824, %v2897
  %v2899 = vpop.f32.mrb[0].mxu0
  %2900 = vmatprep.mubr.f32.mxu0 0.0
  %2901 = vmatmul.mubr.f32.gmra.mrb[0].mxu0 %v2829
  %v2902 = vpop.f32.mrb[0].mxu0
  %v2903 = vadd.f32 %v2824, %v2902
  %v2904 = vpop.f32.mrb[0].mxu0
  %2905 = vdwg.mxu0
  %v2906 = vmul.f32 %v2898, 0.5
  %v2907 = vmul.f32 %v2903, 0.5
  %v2908 = vmul.f32 %v2898, 0.70710677
  %v2909 = vmul.f32 %v2903, 0.70710677
  %v2910 = vand.u32 2147483647, %v2908
  %v2911 = vand.u32 2147483647, %v2909
  %v2912 = vmul.f32 %v2910, 0.3275911
  %v2913 = vmul.f32 %v2911, 0.3275911
  %v2914 = vadd.f32 %v2912, 1.0
  %v2915 = vadd.f32 %v2913, 1.0
  %v2916 = vrcp.pop %v2914
  %v2917 = vmul.f32 1.0, %v2916
  %v2918 = vrcp.pop %v2915
  %v2919 = vmul.f32 1.0, %v2918
  %v2920 = vmul.f32 %v2917, 1.0614054
  %v2921 = vmul.f32 %v2919, 1.0614054
  %v2922 = vadd.f32 %v2920, -1.4531521
  %v2923 = vadd.f32 %v2921, -1.4531521
  %v2924 = vmul.f32 %v2922, %v2917
  %v2925 = vmul.f32 %v2923, %v2919
  %v2926 = vadd.f32 %v2924, 1.4214138
  %v2927 = vadd.f32 %v2925, 1.4214138
  %v2928 = vmul.f32 %v2926, %v2917
  %v2929 = vmul.f32 %v2927, %v2919
  %v2930 = vadd.f32 %v2928, -0.28449672
  %v2931 = vadd.f32 %v2929, -0.28449672
  %v2932 = vmul.f32 %v2930, %v2917
  %v2933 = vmul.f32 %v2931, %v2919
  %v2934 = vadd.f32 %v2932, 0.2548296
  %v2935 = vadd.f32 %v2933, 0.2548296
  %v2936 = vmul.f32 %v2934, %v2917
  %v2937 = vmul.f32 %v2935, %v2919
  %v2938 = vsub.f32 0.0, %v2910
  %v2939 = vsub.f32 0.0, %v2911
  %v2940 = vmul.f32 %v2938, %v2910
  %v2941 = vmul.f32 %v2939, %v2911
  %v2942 = vmul.f32 %v2940, 1.442695
  %v2943 = vpow.pop %v2942
  %v2944 = vmul.f32 %v2941, 1.442695
  %v2945 = vpow.pop %v2944
  %v2946 = vmul.f32 %v2936, %v2943
  %v2947 = vmul.f32 %v2937, %v2945
  %v2948 = vsub.f32 1.0, %v2946
  %v2949 = vsub.f32 1.0, %v2947
  %vm2950 = vcmp.ge.f32.partialorder %v2908, 0.0
  %vm2951 = vcmp.ge.f32.partialorder %v2909, 0.0
  %v2952 = vsub.f32 0.0, %v2948
  %v2953 = vsub.f32 0.0, %v2949
  %v2954 = vsel %vm2950, %v2948, %v2952
  %v2955 = vsel %vm2951, %v2949, %v2953
  %v2956 = vadd.f32 %v2954, 1.0
  %v2957 = vadd.f32 %v2955, 1.0
  %v2958 = vmul.f32 %v2906, %v2956
  %v2959 = vmul.f32 %v2907, %v2957
  %2960 = vmatprep.subr.mxu0 0.0
  %2961 = vmatpush1.msra.mxu0 %v2116
  %2962 = vmatprep.subr.mxu0 0.0
  %2963 = vmatpush1.msra.mxu0 %v2117
  %2964 = vmatprep.subr.mxu0 0.0
  %2965 = vmatpush1.msra.mxu0 %v2118
  %2966 = vmatprep.subr.mxu0 0.0
  %2967 = vmatpush1.msra.mxu0 %v2119
  %2968 = vmatprep.subr.mxu0 0.0
  %2969 = vmatpush1.msra.mxu0 %v2120
  %2970 = vmatprep.subr.mxu0 0.0
  %2971 = vmatpush1.msra.mxu0 %v2121
  %2972 = vmatprep.subr.mxu0 0.0
  %2973 = vmatpush1.msra.mxu0 %v2122
  %2974 = vmatprep.subr.mxu0 0.0
  %2975 = vmatpush1.msra.mxu0 %v2123
  %2976 = vmatprep.subr.mxu0 0.0
  %2977 = vmatpush1.msra.mxu0 %v2124
  %2978 = vmatprep.subr.mxu0 0.0
  %2979 = vmatpush1.msra.mxu0 %v2125
  %2980 = vmatprep.subr.mxu0 0.0
  %2981 = vmatpush1.msra.mxu0 %v2126
  %2982 = vmatprep.subr.mxu0 0.0
  %2983 = vmatpush1.msra.mxu0 %v2127
  %2984 = vmatprep.subr.mxu0 0.0
  %2985 = vmatpush1.msra.mxu0 %v2128
  %2986 = vmatprep.subr.mxu0 0.0
  %2987 = vmatpush1.msra.mxu0 %v2129
  %2988 = vmatprep.subr.mxu0 0.0
  %2989 = vmatpush1.msra.mxu0 %v2130
  %2990 = vmatprep.subr.mxu0 0.0
  %2991 = vmatpush1.msra.mxu0 %v2131
  %2992 = vmatprep.subr.mxu0 0.0
  %2993 = vmatpush1.msra.mxu0 0.0
  %2994 = vmatprep.subr.mxu0 0.0
  %2995 = vmatpush1.msra.mxu0 0.0
  %2996 = vmatprep.subr.mxu0 0.0
  %2997 = vmatpush1.msra.mxu0 0.0
  %2998 = vmatprep.subr.mxu0 0.0
  %2999 = vmatpush1.msra.mxu0 0.0
  %3000 = vmatprep.subr.mxu0 0.0
  %3001 = vmatpush1.msra.mxu0 0.0
  %3002 = vmatprep.subr.mxu0 0.0
  %3003 = vmatpush1.msra.mxu0 0.0
  %3004 = vmatprep.subr.mxu0 0.0
  %3005 = vmatpush1.msra.mxu0 0.0
  %3006 = vmatprep.subr.mxu0 0.0
  %3007 = vmatpush1.msra.mxu0 0.0
  %3008 = vmatprep.subr.mxu0 0.0
  %3009 = vmatpush1.msra.mxu0 0.0
  %3010 = vmatprep.subr.mxu0 0.0
  %3011 = vmatpush1.msra.mxu0 0.0
  %3012 = vmatprep.subr.mxu0 0.0
  %3013 = vmatpush1.msra.mxu0 0.0
  %3014 = vmatprep.subr.mxu0 0.0
  %3015 = vmatpush1.msra.mxu0 0.0
  %3016 = vmatprep.subr.mxu0 0.0
  %3017 = vmatpush1.msra.mxu0 0.0
  %3018 = vmatprep.subr.mxu0 0.0
  %3019 = vmatpush1.msra.mxu0 0.0
  %3020 = vmatprep.subr.mxu0 0.0
  %3021 = vmatpush1.msra.mxu0 0.0
  %3022 = vmatprep.subr.mxu0 0.0
  %3023 = vmatpush1.msra.mxu0 0.0
  %3024 = vmatprep.mubr.f32.mxu0 0.0
  %3025 = vmatmul.mubr.f32.gmra.mrb[0].mxu0 %v2958
  %v3026 = vpop.f32.mrb[0].mxu0
  %v3027 = vadd.f32 0.0, %v3026
  %v3028 = vpop.f32.mrb[0].mxu0
  %3029 = vmatprep.mubr.f32.mxu0 0.0
  %3030 = vmatmul.mubr.f32.gmra.mrb[0].mxu0 %v2959
  %v3031 = vpop.f32.mrb[0].mxu0
  %v3032 = vadd.f32 0.0, %v3031
  %v3033 = vpop.f32.mrb[0].mxu0
  %3034 = vdwg.mxu0
  %v3035 = vadd.f32 %v2778, %v3027
  %v3036 = vadd.f32 %v2779, %v3032
  %v3037 = vld [vmem:[%s3 + $0x17] sm:$0x1]
  %v3038 = vlaneseq
  %v3039 = vshrl.u32 %v3038, 7
  %v3040 = vsub.s32 0, %v3039
  %v3041 = vrot.slane %v3037, %v3040
  %v3042 = vadd.f32 %v3035, %v3041
  %v3043 = vadd.f32 %v3036, %v3041
  %v3044 = vld [vmem:[%s3 + $0x1b] sm:$0x1]
  %v3045 = vld [vmem:[%s3 + $0x1c] sm:$0x1]
  %v3046 = vsel %vm474, %v3042, 0.0
  %3047 = vadd.xlane.f32.xlu0 %v3046
  %v3048 = vpop.xlane.xlu0 %3047
  %v3049 = vsel %vm474, %v3043, 0.0
  %3050 = vadd.xlane.f32.xlu0 %v3049
  %v3051 = vpop.xlane.xlu0 %3050
  %v3052 = vmul.f32 %v3048, %v482
  %v3053 = vmul.f32 %v3051, %v482
  %v3054 = vsub.f32 %v3042, %v3052
  %v3055 = vsub.f32 %v3043, %v3053
  %v3056 = vmul.f32 %v3054, %v3054
  %v3057 = vmul.f32 %v3055, %v3055
  %v3058 = vsel %vm474, %v3056, 0.0
  %3059 = vadd.xlane.f32.xlu0 %v3058
  %v3060 = vpop.xlane.xlu0 %3059
  %v3061 = vsel %vm474, %v3057, 0.0
  %3062 = vadd.xlane.f32.xlu0 %v3061
  %v3063 = vpop.xlane.xlu0 %3062
  %v3064 = vmul.f32 %v3060, %v482
  %v3065 = vmul.f32 %v3063, %v482
  %v3066 = vadd.f32 %v3064, 1e-05
  %v3067 = vadd.f32 %v3065, 1e-05
  %v3068 = vrsqrt.pop %v3066
  %v3069 = vrsqrt.pop %v3067
  %v3070 = vmul.f32 %v3054, %v3068
  %v3071 = vmul.f32 %v3055, %v3069
  %v3072 = vlaneseq
  %v3073 = vshrl.u32 %v3072, 7
  %v3074 = vsub.s32 0, %v3073
  %v3075 = vrot.slane %v3044, %v3074
  %v3076 = vmul.f32 %v3070, %v3075
  %v3077 = vmul.f32 %v3071, %v3075
  %v3078 = vlaneseq
  %v3079 = vshrl.u32 %v3078, 7
  %v3080 = vsub.s32 0, %v3079
  %v3081 = vrot.slane %v3045, %v3080
  %v3082 = vadd.f32 %v3076, %v3081
  %v3083 = vadd.f32 %v3077, %v3081
  %v3084 = vld [vmem:[%s8] sm:$0xff]
  %v3085 = vld [vmem:[%s8 + $0x8] sm:$0xff]
  %v3086 = vld [vmem:[%s8 + $0x10] sm:$0xff]
  %v3087 = vld [vmem:[%s8 + $0x18] sm:$0xff]
  %v3089 = vsel %vm474, %v3082, 0
  %v3092 = vsel %vm474, %v3083, 0
  %3094 = vmatprep.subr.mxu0 0.0
  %3095 = vmatpush1.msra.mxu0 %v3084
  %3096 = vmatprep.subr.mxu0 0.0
  %3097 = vmatpush1.msra.mxu0 %v3085
  %3098 = vmatprep.subr.mxu0 0.0
  %3099 = vmatpush1.msra.mxu0 %v3086
  %3100 = vmatprep.subr.mxu0 0.0
  %3101 = vmatpush1.msra.mxu0 %v3087
  %3102 = vmatprep.subr.mxu0 0.0
  %3103 = vmatpush1.msra.mxu0 0.0
  %3104 = vmatprep.subr.mxu0 0.0
  %3105 = vmatpush1.msra.mxu0 0.0
  %3106 = vmatprep.subr.mxu0 0.0
  %3107 = vmatpush1.msra.mxu0 0.0
  %3108 = vmatprep.subr.mxu0 0.0
  %3109 = vmatpush1.msra.mxu0 0.0
  %3110 = vmatprep.subr.mxu0 0.0
  %3111 = vmatpush1.msra.mxu0 0.0
  %3112 = vmatprep.subr.mxu0 0.0
  %3113 = vmatpush1.msra.mxu0 0.0
  %3114 = vmatprep.subr.mxu0 0.0
  %3115 = vmatpush1.msra.mxu0 0.0
  %3116 = vmatprep.subr.mxu0 0.0
  %3117 = vmatpush1.msra.mxu0 0.0
  %3118 = vmatprep.subr.mxu0 0.0
  %3119 = vmatpush1.msra.mxu0 0.0
  %3120 = vmatprep.subr.mxu0 0.0
  %3121 = vmatpush1.msra.mxu0 0.0
  %3122 = vmatprep.subr.mxu0 0.0
  %3123 = vmatpush1.msra.mxu0 0.0
  %3124 = vmatprep.subr.mxu0 0.0
  %3125 = vmatpush1.msra.mxu0 0.0
  %3126 = vmatprep.subr.mxu0 0.0
  %3127 = vmatpush1.msra.mxu0 0.0
  %3128 = vmatprep.subr.mxu0 0.0
  %3129 = vmatpush1.msra.mxu0 0.0
  %3130 = vmatprep.subr.mxu0 0.0
  %3131 = vmatpush1.msra.mxu0 0.0
  %3132 = vmatprep.subr.mxu0 0.0
  %3133 = vmatpush1.msra.mxu0 0.0
  %3134 = vmatprep.subr.mxu0 0.0
  %3135 = vmatpush1.msra.mxu0 0.0
  %3136 = vmatprep.subr.mxu0 0.0
  %3137 = vmatpush1.msra.mxu0 0.0
  %3138 = vmatprep.subr.mxu0 0.0
  %3139 = vmatpush1.msra.mxu0 0.0
  %3140 = vmatprep.subr.mxu0 0.0
  %3141 = vmatpush1.msra.mxu0 0.0
  %3142 = vmatprep.subr.mxu0 0.0
  %3143 = vmatpush1.msra.mxu0 0.0
  %3144 = vmatprep.subr.mxu0 0.0
  %3145 = vmatpush1.msra.mxu0 0.0
  %3146 = vmatprep.subr.mxu0 0.0
  %3147 = vmatpush1.msra.mxu0 0.0
  %3148 = vmatprep.subr.mxu0 0.0
  %3149 = vmatpush1.msra.mxu0 0.0
  %3150 = vmatprep.subr.mxu0 0.0
  %3151 = vmatpush1.msra.mxu0 0.0
  %3152 = vmatprep.subr.mxu0 0.0
  %3153 = vmatpush1.msra.mxu0 0.0
  %3154 = vmatprep.subr.mxu0 0.0
  %3155 = vmatpush1.msra.mxu0 0.0
  %3156 = vmatprep.subr.mxu0 0.0
  %3157 = vmatpush1.msra.mxu0 0.0
  %3158 = vmatprep.mubr.f32.mxu0 0.0
  %3159 = vmatmul.mubr.f32.gmra.mrb[0].mxu0 %v3089
  %v3160 = vpop.f32.mrb[0].mxu0
  %v3161 = vadd.f32 0.0, %v3160
  %v3162 = vpop.f32.mrb[0].mxu0
  %3163 = vmatprep.mubr.f32.mxu0 0.0
  %3164 = vmatmul.mubr.f32.gmra.mrb[0].mxu0 %v3092
  %v3165 = vpop.f32.mrb[0].mxu0
  %v3166 = vadd.f32 0.0, %v3165
  %v3167 = vpop.f32.mrb[0].mxu0
  %3168 = vdwg.mxu0
  %3169 = vst [vmem:[%s9] sm:$0xff] %v3161
  %3170 = vst [vmem:[%s9 + $0x8] sm:$0xff] %v3166
  // Predicated region
  $region38: #{_lambda_.1} parent=0 // pred_check
    _
  $region39: #{_lambda_.1} parent=0 // pred_check_branch
    %3172 = sbr.rel (0) target = $region41
  $region40: #{_lambda_.1} parent=0 // pred_region
    _
  $region41: #{_lambda_.1} parent=0 // pred_fallthru
    _
  // Predicated region
  $region42: #{_lambda_.1} parent=0 // pred_check
    _
  $region43: #{_lambda_.1} parent=0 // pred_check_branch
    %3174 = sbr.rel (0) target = $region45
  $region44: #{_lambda_.1} parent=0 // pred_region
    _
  $region45: #{_lambda_.1} parent=0 // pred_fallthru
    _

</llo_original>
